<compile_context>
chip_gen: v7x
topology: tpu7x:2x2x1
jax: 0.10.0
libtpu: 0.0.40
codegen_flags: <defaults>
</compile_context>

<pallas_src>
from functools import partial

import jax
import jax.numpy as jnp
from jax import lax
from jax.experimental import pallas as pl
from jax.experimental.pallas import tpu as pltpu

EPS = 1e-5
LANES = 128
VMEM_LIMIT_BYTES = 32 * 1024 * 1024


# --------------------------- in-kernel helpers -------------------------------
def _im2col_dot(src_ref, pat_ref, w_ref, TH, W, Cp):
    """3x3 'same' conv of the (TH+2, W+2, Cp) padded window in src_ref as a
    single (TH*W, 9*Cp) @ (9*Cp, Cp) MXU matmul (pat_ref = im2col staging)."""
    for ky in range(3):
        for kx in range(3):
            k = ky * 3 + kx
            piece = src_ref[ky:ky + TH, kx:kx + W, :].reshape(TH * W, Cp)
            pat_ref[:, k * Cp:(k + 1) * Cp] = piece.astype(pat_ref.dtype)
    return jnp.dot(pat_ref[...], w_ref[...], preferred_element_type=jnp.float32)


def _im2col_parts_dot(main_ref, h0_ref, h1_ref, pat_ref, w_ref, TH, W, Cp):
    """Same im2col matmul, but the (TH+2)-row window is split into a pipelined
    main block (rows [0, TH)) and two 1-row halo blocks (rows TH, TH+1), so no
    window-assembly copy is needed."""
    halo = (h0_ref, h1_ref)
    for ky in range(3):
        for kx in range(3):
            col = slice((ky * 3 + kx) * Cp, (ky * 3 + kx + 1) * Cp)
            nb = TH - ky                                   # rows from main
            pat_ref[0:nb * W, col] = (
                main_ref[0, ky:TH, kx:kx + W, :]
                .reshape(nb * W, Cp).astype(pat_ref.dtype))
            for j in range(ky):                            # rows from halos
                r0 = (nb + j) * W
                pat_ref[r0:r0 + W, col] = (
                    halo[j][0, 0, kx:kx + W, :]
                    .reshape(W, Cp).astype(pat_ref.dtype))
    return jnp.dot(pat_ref[...], w_ref[...], preferred_element_type=jnp.float32)


def _partial_stats(acc):
    """One-pass BN partials: per-channel [sum ; sum of squares] of (M, Cp)."""
    s = jnp.sum(acc, axis=0, keepdims=True)
    ss = jnp.sum(acc * acc, axis=0, keepdims=True)
    return jnp.concatenate([s, ss], axis=0)              # (2, Cp)


# ------------------------------ kernels ---------------------------------------
def _conv1_kernel(xm_ref, xh0_ref, xh1_ref, w1_ref, y1_ref, st_ref, patbuf,
                  *, TH, W, Cp):
    # xm_ref: (1, TH, W+2, Cp) rows [r0, r0+TH) of the spatially padded input;
    # xh0/xh1: padded rows r0+TH, r0+TH+1 (the bottom halo of the conv window).
    acc = _im2col_parts_dot(xm_ref, xh0_ref, xh1_ref, patbuf, w1_ref, TH, W, Cp)
    y1_ref[...] = acc.reshape(1, TH, W, Cp)
    st_ref[...] = _partial_stats(acc).reshape(1, 1, 2, Cp)


def _bn1_conv2_kernel(y1_ref, ytop_ref, ybot_ref, sc1_ref, sh1_ref, w2_ref,
                      y2_ref, st_ref, hbuf, patbuf, *, TH, W, Cp, T):
    ti = pl.program_id(1)
    scale = sc1_ref[...].reshape(1, 1, Cp)
    shift = sh1_ref[...].reshape(1, 1, Cp)

    # conv2's zero padding: only the 1-px halo columns are zeroed each step.
    zcol = jnp.zeros((TH + 2, 1, Cp), jnp.float32)
    hbuf[:, 0:1, :] = zcol
    hbuf[:, W + 1:W + 2, :] = zcol

    # bn1 (folded batch-stat scale/shift) + ReLU on the main rows.
    hbuf[1:TH + 1, 1:W + 1, :] = jnp.maximum(y1_ref[0] * scale + shift, 0.0)

    # Halo rows (clamped fetch via index_map); zero them when they fall
    # outside the image because conv2's padding is zeros in h-space.
    top = jnp.maximum(ytop_ref[0] * scale + shift, 0.0)       # (1, W, Cp)
    bot = jnp.maximum(ybot_ref[0] * scale + shift, 0.0)
    top = jnp.where(ti == 0, 0.0, top)
    bot = jnp.where(ti == T - 1, 0.0, bot)
    hbuf[0:1, 1:W + 1, :] = top
    hbuf[TH + 1:TH + 2, 1:W + 1, :] = bot

    acc = _im2col_dot(hbuf, patbuf, w2_ref, TH, W, Cp)
    y2_ref[...] = acc.reshape(1, TH, W, Cp)
    st_ref[...] = _partial_stats(acc).reshape(1, 1, 2, Cp)


def _bn2_residual_kernel(x_ref, y2_ref, sc2_ref, sh2_ref, o_ref, *, Cp):
    scale = sc2_ref[...].reshape(1, 1, 1, Cp)
    shift = sh2_ref[...].reshape(1, 1, 1, Cp)
    o_ref[...] = jnp.maximum(y2_ref[...] * scale + shift + x_ref[...], 0.0)


# ------------------------------- wrapper ---------------------------------------
def _prep_weight(w_oihw, Cp, mxu_dtype):
    """OIHW conv weight -> lane-padded (9*Cp, Cp) im2col matrix."""
    Co, Ci, kh, kw = w_oihw.shape
    w = jnp.transpose(w_oihw, (2, 3, 1, 0)).astype(jnp.float32)   # (3,3,Ci,Co)
    w = jnp.pad(w, ((0, 0), (0, 0), (0, Cp - Ci), (0, Cp - Co)))
    return w.reshape(kh * kw * Cp, Cp).astype(mxu_dtype)


def _bn_scale_shift(partials, gamma, beta, count):
    """Fold batch-norm (train mode, biased var) into per-channel scale/shift."""
    s = jnp.sum(partials, axis=(0, 1))                            # (2, Cp)
    mean = s[0] / count
    var = jnp.maximum(s[1] / count - mean * mean, 0.0)
    scale = gamma * lax.rsqrt(var + EPS)
    shift = beta - mean * scale
    return scale.reshape(1, -1), shift.reshape(1, -1)


@partial(jax.jit, static_argnames=("tile_h", "mxu_dtype"))
def basic_block_e(x_nchw, w1_oihw, w2_oihw, g1, b1, g2, b2,
                  tile_h=8, mxu_dtype=jnp.float32):
    """BasicBlockE forward (train-mode BN). x_nchw: (N, C, H, W) float32."""
    N, C, H, W = x_nchw.shape
    Cp = ((C + LANES - 1) // LANES) * LANES
    TH = tile_h if (H % tile_h == 0 and H >= tile_h) else H
    T = H // TH

    # Single layout pass: NCHW -> NHWC, channel-pad to Cp lanes, 1-px spatial pad.
    x_nhwc = jnp.pad(jnp.transpose(x_nchw, (0, 2, 3, 1)).astype(jnp.float32),
                     ((0, 0), (0, 0), (0, 0), (0, Cp - C)))
    xp = jnp.pad(x_nhwc, ((0, 0), (1, 1), (1, 1), (0, 0)))        # (N, H+2, W+2, Cp)

    w1 = _prep_weight(w1_oihw, Cp, mxu_dtype)
    w2 = _prep_weight(w2_oihw, Cp, mxu_dtype)
    g1p = jnp.pad(g1.astype(jnp.float32), (0, Cp - C))
    b1p = jnp.pad(b1.astype(jnp.float32), (0, Cp - C))
    g2p = jnp.pad(g2.astype(jnp.float32), (0, Cp - C))
    b2p = jnp.pad(b2.astype(jnp.float32), (0, Cp - C))

    grid = (N, T)
    cparams = pltpu.CompilerParams(
        dimension_semantics=("parallel", "parallel"),
        vmem_limit_bytes=VMEM_LIMIT_BYTES)
    conv_flops = 2 * N * H * W * 9 * Cp * Cp
    act_bytes = N * H * W * Cp * 4

    # ---- pass 1: conv1 + BN1 partial statistics ------------------------------
    y1, part1 = pl.pallas_call(
        partial(_conv1_kernel, TH=TH, W=W, Cp=Cp),
        grid=grid,
        in_specs=[
            pl.BlockSpec((1, TH, W + 2, Cp), lambda n, t: (n, t, 0, 0)),
            pl.BlockSpec((1, 1, W + 2, Cp), lambda n, t: (n, (t + 1) * TH, 0, 0)),
            pl.BlockSpec((1, 1, W + 2, Cp), lambda n, t: (n, (t + 1) * TH + 1, 0, 0)),
            pl.BlockSpec((9 * Cp, Cp), lambda n, t: (0, 0)),
        ],
        out_specs=(pl.BlockSpec((1, TH, W, Cp), lambda n, t: (n, t, 0, 0)),
                   pl.BlockSpec((1, 1, 2, Cp), lambda n, t: (n, t, 0, 0))),
        out_shape=(jax.ShapeDtypeStruct((N, H, W, Cp), jnp.float32),
                   jax.ShapeDtypeStruct((N, T, 2, Cp), jnp.float32)),
        scratch_shapes=[pltpu.VMEM((TH * W, 9 * Cp), mxu_dtype)],
        compiler_params=cparams,
        cost_estimate=pl.CostEstimate(flops=conv_flops, transcendentals=0,
                                      bytes_accessed=3 * act_bytes),
    )(xp, xp, xp, w1)

    count = jnp.float32(N * H * W)
    scale1, shift1 = _bn_scale_shift(part1, g1p, b1p, count)

    # ---- pass 2: BN1 + ReLU + conv2 + BN2 partial statistics ------------------
    y2, part2 = pl.pallas_call(
        partial(_bn1_conv2_kernel, TH=TH, W=W, Cp=Cp, T=T),
        grid=grid,
        in_specs=[
            pl.BlockSpec((1, TH, W, Cp), lambda n, t: (n, t, 0, 0)),
            pl.BlockSpec((1, 1, W, Cp),
                         lambda n, t: (n, jnp.maximum(t * TH - 1, 0), 0, 0)),
            pl.BlockSpec((1, 1, W, Cp),
                         lambda n, t: (n, jnp.minimum((t + 1) * TH, H - 1), 0, 0)),
            pl.BlockSpec((1, Cp), lambda n, t: (0, 0)),
            pl.BlockSpec((1, Cp), lambda n, t: (0, 0)),
            pl.BlockSpec((9 * Cp, Cp), lambda n, t: (0, 0)),
        ],
        out_specs=(pl.BlockSpec((1, TH, W, Cp), lambda n, t: (n, t, 0, 0)),
                   pl.BlockSpec((1, 1, 2, Cp), lambda n, t: (n, t, 0, 0))),
        out_shape=(jax.ShapeDtypeStruct((N, H, W, Cp), jnp.float32),
                   jax.ShapeDtypeStruct((N, T, 2, Cp), jnp.float32)),
        scratch_shapes=[pltpu.VMEM((TH + 2, W + 2, Cp), jnp.float32),
                        pltpu.VMEM((TH * W, 9 * Cp), mxu_dtype)],
        compiler_params=cparams,
        cost_estimate=pl.CostEstimate(flops=conv_flops, transcendentals=0,
                                      bytes_accessed=3 * act_bytes),
    )(y1, y1, y1, scale1, shift1, w2)

    scale2, shift2 = _bn_scale_shift(part2, g2p, b2p, count)

    # ---- pass 3: BN2 + residual add + ReLU (pure pipelined elementwise) -------
    out = pl.pallas_call(
        partial(_bn2_residual_kernel, Cp=Cp),
        grid=grid,
        in_specs=[
            pl.BlockSpec((1, TH, W, Cp), lambda n, t: (n, t, 0, 0)),
            pl.BlockSpec((1, TH, W, Cp), lambda n, t: (n, t, 0, 0)),
            pl.BlockSpec((1, Cp), lambda n, t: (0, 0)),
            pl.BlockSpec((1, Cp), lambda n, t: (0, 0)),
        ],
        out_specs=pl.BlockSpec((1, TH, W, Cp), lambda n, t: (n, t, 0, 0)),
        out_shape=jax.ShapeDtypeStruct((N, H, W, Cp), jnp.float32),
        compiler_params=cparams,
        cost_estimate=pl.CostEstimate(flops=4 * N * H * W * Cp, transcendentals=0,
                                      bytes_accessed=3 * act_bytes),
    )(x_nhwc, y2, scale2, shift2)

    # Drop channel padding and return to the module's NCHW layout.
    return jnp.transpose(out[..., :C], (0, 3, 1, 2))


# ------------------------- pure-JAX reference (NCHW) ---------------------------
def reference(x, w1, w2, g1, b1, g2, b2):
    def conv(x, w):
        return lax.conv_general_dilated(
            x, w, (1, 1), ((1, 1), (1, 1)),
            dimension_numbers=("NCHW", "OIHW", "NCHW"))

    def bn(y, g, b):
        mean = jnp.mean(y, axis=(0, 2, 3), keepdims=True)
        var = jnp.mean((y - mean) ** 2, axis=(0, 2, 3), keepdims=True)
        return ((y - mean) * lax.rsqrt(var + EPS)
                * g.reshape(1, -1, 1, 1) + b.reshape(1, -1, 1, 1))

    h = jnp.maximum(bn(conv(x, w1), g1, b1), 0.0)
    out = bn(conv(h, w2), g2, b2) + x
    return jnp.maximum(out, 0.0)


if __name__ == "__main__":
    N, C, H, W = 2, 4, 16, 16          # inplanes == planes, stride=1, no downsample
    key = jax.random.PRNGKey(0)
    kx, kw1, kw2, kg1, kb1, kg2, kb2 = jax.random.split(key, 7)

    x = jax.random.normal(kx, (N, C, H, W), jnp.float32)
    w1 = jax.random.normal(kw1, (C, C, 3, 3), jnp.float32) * 0.1   # conv1 (OIHW, no bias)
    w2 = jax.random.normal(kw2, (C, C, 3, 3), jnp.float32) * 0.1   # conv2 (OIHW, no bias)
    g1 = 1.0 + 0.1 * jax.random.normal(kg1, (C,), jnp.float32)     # bn1 weight
    b1 = 0.1 * jax.random.normal(kb1, (C,), jnp.float32)           # bn1 bias
    g2 = 1.0 + 0.1 * jax.random.normal(kg2, (C,), jnp.float32)     # bn2 weight
    b2 = 0.1 * jax.random.normal(kb2, (C,), jnp.float32)           # bn2 bias

    ref = jax.block_until_ready(reference(x, w1, w2, g1, b1, g2, b2))

    # f32 MXU path: keeps the module's default numerics, tight tolerance.
    out = jax.block_until_ready(basic_block_e(x, w1, w2, g1, b1, g2, b2))
    assert out.shape == (N, C, H, W)
    assert jnp.allclose(out, ref, atol=1e-4, rtol=1e-4), \
        f"max abs err {jnp.max(jnp.abs(out - ref))}"

    # bf16 MXU operands + f32 accumulation (perf option for v6e/v7x);
    # loose sanity check only since bf16 rounding exceeds the f32 tolerance.
    out_bf16 = jax.block_until_ready(
        basic_block_e(x, w1, w2, g1, b1, g2, b2, mxu_dtype=jnp.bfloat16))
    assert jnp.all(jnp.isfinite(out_bf16))
    assert jnp.allclose(out_bf16, ref, atol=0.25, rtol=0.25), \
        f"bf16 max abs err {jnp.max(jnp.abs(out_bf16 - ref))}"

    print("KERNEL_OK")
</pallas_src>

<mosaic_0001>
module attributes {stable_mosaic.version = 11 : i64} {
  func.func @_conv1_kernel(%arg0: i32, %arg1: i32, %arg2: memref<1x8x18x128xf32, #tpu.memory_space<vmem>>, %arg3: memref<1x1x18x128xf32, #tpu.memory_space<vmem>>, %arg4: memref<1x1x18x128xf32, #tpu.memory_space<vmem>>, %arg5: memref<1152x128xf32, #tpu.memory_space<vmem>>, %arg6: memref<1x8x16x128xf32, #tpu.memory_space<vmem>>, %arg7: memref<1x1x2x128xf32, #tpu.memory_space<vmem>>, %arg8: memref<128x1152xf32, #tpu.memory_space<vmem>>) attributes {dimension_semantics = [#tpu.dimension_semantics<parallel>, #tpu.dimension_semantics<parallel>], iteration_bounds = array<i64: 2, 2>, scalar_prefetch = 0 : i64, scratch_operands = 1 : i64, tpu.core_type = #tpu.core_type<tc>, window_params = [{transform_indices = @transform_0, window_bounds = array<i64: 1, 8, 18, 128>}, {transform_indices = @transform_1, window_bounds = array<i64: 1, 1, 18, 128>}, {transform_indices = @transform_2, window_bounds = array<i64: 1, 1, 18, 128>}, {pipeline_mode = #tpu.pipeline_mode<synchronous>, transform_indices = @transform_3, window_bounds = array<i64: 1152, 128>}, {transform_indices = @transform_4, window_bounds = array<i64: 1, 8, 16, 128>}, {transform_indices = @transform_5, window_bounds = array<i64: 1, 1, 2, 128>}]} {
    %c0 = arith.constant 0 : index
    %c0_0 = arith.constant 0 : index
    %c0_1 = arith.constant 0 : index
    %c0_2 = arith.constant 0 : index
    %0 = vector.load %arg2[%c0, %c0_0, %c0_1, %c0_2] : memref<1x8x18x128xf32, #tpu.memory_space<vmem>>, vector<1x8x16x128xf32>
    %1 = vector.shape_cast %0 : vector<1x8x16x128xf32> to vector<8x16x128xf32>
    %2 = vector.shape_cast %1 : vector<8x16x128xf32> to vector<128x128xf32>
    %c0_3 = arith.constant 0 : index
    %c0_4 = arith.constant 0 : index
    %3 = vector.load %arg8[%c0_3, %c0_4] : memref<128x1152xf32, #tpu.memory_space<vmem>>, vector<128x128xf32>
    tpu.vector_store %arg8[%c0_3, %c0_4], %2 {strides = array<i32>} : memref<128x1152xf32, #tpu.memory_space<vmem>>, vector<128x128xf32>,
    %c0_5 = arith.constant 0 : index
    %c0_6 = arith.constant 0 : index
    %c1 = arith.constant 1 : index
    %c0_7 = arith.constant 0 : index
    %4 = vector.load %arg2[%c0_5, %c0_6, %c1, %c0_7] : memref<1x8x18x128xf32, #tpu.memory_space<vmem>>, vector<1x8x16x128xf32>
    %5 = vector.shape_cast %4 : vector<1x8x16x128xf32> to vector<8x16x128xf32>
    %6 = vector.shape_cast %5 : vector<8x16x128xf32> to vector<128x128xf32>
    %c0_8 = arith.constant 0 : index
    %c128 = arith.constant 128 : index
    %7 = vector.load %arg8[%c0_8, %c128] : memref<128x1152xf32, #tpu.memory_space<vmem>>, vector<128x128xf32>
    tpu.vector_store %arg8[%c0_8, %c128], %6 {strides = array<i32>} : memref<128x1152xf32, #tpu.memory_space<vmem>>, vector<128x128xf32>,
    %c0_9 = arith.constant 0 : index
    %c0_10 = arith.constant 0 : index
    %c2 = arith.constant 2 : index
    %c0_11 = arith.constant 0 : index
    %8 = vector.load %arg2[%c0_9, %c0_10, %c2, %c0_11] : memref<1x8x18x128xf32, #tpu.memory_space<vmem>>, vector<1x8x16x128xf32>
    %9 = vector.shape_cast %8 : vector<1x8x16x128xf32> to vector<8x16x128xf32>
    %10 = vector.shape_cast %9 : vector<8x16x128xf32> to vector<128x128xf32>
    %c0_12 = arith.constant 0 : index
    %c256 = arith.constant 256 : index
    %11 = vector.load %arg8[%c0_12, %c256] : memref<128x1152xf32, #tpu.memory_space<vmem>>, vector<128x128xf32>
    tpu.vector_store %arg8[%c0_12, %c256], %10 {strides = array<i32>} : memref<128x1152xf32, #tpu.memory_space<vmem>>, vector<128x128xf32>,
    %c0_13 = arith.constant 0 : index
    %c1_14 = arith.constant 1 : index
    %c0_15 = arith.constant 0 : index
    %c0_16 = arith.constant 0 : index
    %12 = vector.load %arg2[%c0_13, %c1_14, %c0_15, %c0_16] : memref<1x8x18x128xf32, #tpu.memory_space<vmem>>, vector<1x7x16x128xf32>
    %13 = vector.shape_cast %12 : vector<1x7x16x128xf32> to vector<7x16x128xf32>
    %14 = vector.shape_cast %13 : vector<7x16x128xf32> to vector<112x128xf32>
    %c0_17 = arith.constant 0 : index
    %c384 = arith.constant 384 : index
    %15 = vector.load %arg8[%c0_17, %c384] : memref<128x1152xf32, #tpu.memory_space<vmem>>, vector<112x128xf32>
    tpu.vector_store %arg8[%c0_17, %c384], %14 {strides = array<i32>} : memref<128x1152xf32, #tpu.memory_space<vmem>>, vector<112x128xf32>,
    %c0_18 = arith.constant 0 : index
    %c0_19 = arith.constant 0 : index
    %c0_20 = arith.constant 0 : index
    %c0_21 = arith.constant 0 : index
    %16 = vector.load %arg3[%c0_18, %c0_19, %c0_20, %c0_21] : memref<1x1x18x128xf32, #tpu.memory_space<vmem>>, vector<1x1x16x128xf32>
    %17 = vector.shape_cast %16 : vector<1x1x16x128xf32> to vector<16x128xf32>
    %c112 = arith.constant 112 : index
    %c384_22 = arith.constant 384 : index
    %18 = vector.load %arg8[%c112, %c384_22] : memref<128x1152xf32, #tpu.memory_space<vmem>>, vector<16x128xf32>
    tpu.vector_store %arg8[%c112, %c384_22], %17 {strides = array<i32>} : memref<128x1152xf32, #tpu.memory_space<vmem>>, vector<16x128xf32>,
    %c0_23 = arith.constant 0 : index
    %c1_24 = arith.constant 1 : index
    %c1_25 = arith.constant 1 : index
    %c0_26 = arith.constant 0 : index
    %19 = vector.load %arg2[%c0_23, %c1_24, %c1_25, %c0_26] : memref<1x8x18x128xf32, #tpu.memory_space<vmem>>, vector<1x7x16x128xf32>
    %20 = vector.shape_cast %19 : vector<1x7x16x128xf32> to vector<7x16x128xf32>
    %21 = vector.shape_cast %20 : vector<7x16x128xf32> to vector<112x128xf32>
    %c0_27 = arith.constant 0 : index
    %c512 = arith.constant 512 : index
    %22 = vector.load %arg8[%c0_27, %c512] : memref<128x1152xf32, #tpu.memory_space<vmem>>, vector<112x128xf32>
    tpu.vector_store %arg8[%c0_27, %c512], %21 {strides = array<i32>} : memref<128x1152xf32, #tpu.memory_space<vmem>>, vector<112x128xf32>,
    %c0_28 = arith.constant 0 : index
    %c0_29 = arith.constant 0 : index
    %c1_30 = arith.constant 1 : index
    %c0_31 = arith.constant 0 : index
    %23 = vector.load %arg3[%c0_28, %c0_29, %c1_30, %c0_31] : memref<1x1x18x128xf32, #tpu.memory_space<vmem>>, vector<1x1x16x128xf32>
    %24 = vector.shape_cast %23 : vector<1x1x16x128xf32> to vector<16x128xf32>
    %c112_32 = arith.constant 112 : index
    %c512_33 = arith.constant 512 : index
    %25 = vector.load %arg8[%c112_32, %c512_33] : memref<128x1152xf32, #tpu.memory_space<vmem>>, vector<16x128xf32>
    tpu.vector_store %arg8[%c112_32, %c512_33], %24 {strides = array<i32>} : memref<128x1152xf32, #tpu.memory_space<vmem>>, vector<16x128xf32>,
    %c0_34 = arith.constant 0 : index
    %c1_35 = arith.constant 1 : index
    %c2_36 = arith.constant 2 : index
    %c0_37 = arith.constant 0 : index
    %26 = vector.load %arg2[%c0_34, %c1_35, %c2_36, %c0_37] : memref<1x8x18x128xf32, #tpu.memory_space<vmem>>, vector<1x7x16x128xf32>
    %27 = vector.shape_cast %26 : vector<1x7x16x128xf32> to vector<7x16x128xf32>
    %28 = vector.shape_cast %27 : vector<7x16x128xf32> to vector<112x128xf32>
    %c0_38 = arith.constant 0 : index
    %c640 = arith.constant 640 : index
    %29 = vector.load %arg8[%c0_38, %c640] : memref<128x1152xf32, #tpu.memory_space<vmem>>, vector<112x128xf32>
    tpu.vector_store %arg8[%c0_38, %c640], %28 {strides = array<i32>} : memref<128x1152xf32, #tpu.memory_space<vmem>>, vector<112x128xf32>,
    %c0_39 = arith.constant 0 : index
    %c0_40 = arith.constant 0 : index
    %c2_41 = arith.constant 2 : index
    %c0_42 = arith.constant 0 : index
    %30 = vector.load %arg3[%c0_39, %c0_40, %c2_41, %c0_42] : memref<1x1x18x128xf32, #tpu.memory_space<vmem>>, vector<1x1x16x128xf32>
    %31 = vector.shape_cast %30 : vector<1x1x16x128xf32> to vector<16x128xf32>
    %c112_43 = arith.constant 112 : index
    %c640_44 = arith.constant 640 : index
    %32 = vector.load %arg8[%c112_43, %c640_44] : memref<128x1152xf32, #tpu.memory_space<vmem>>, vector<16x128xf32>
    tpu.vector_store %arg8[%c112_43, %c640_44], %31 {strides = array<i32>} : memref<128x1152xf32, #tpu.memory_space<vmem>>, vector<16x128xf32>,
    %c0_45 = arith.constant 0 : index
    %c2_46 = arith.constant 2 : index
    %c0_47 = arith.constant 0 : index
    %c0_48 = arith.constant 0 : index
    %33 = vector.load %arg2[%c0_45, %c2_46, %c0_47, %c0_48] : memref<1x8x18x128xf32, #tpu.memory_space<vmem>>, vector<1x6x16x128xf32>
    %34 = vector.shape_cast %33 : vector<1x6x16x128xf32> to vector<6x16x128xf32>
    %35 = vector.shape_cast %34 : vector<6x16x128xf32> to vector<96x128xf32>
    %c0_49 = arith.constant 0 : index
    %c768 = arith.constant 768 : index
    %36 = vector.load %arg8[%c0_49, %c768] : memref<128x1152xf32, #tpu.memory_space<vmem>>, vector<96x128xf32>
    tpu.vector_store %arg8[%c0_49, %c768], %35 {strides = array<i32>} : memref<128x1152xf32, #tpu.memory_space<vmem>>, vector<96x128xf32>,
    %c0_50 = arith.constant 0 : index
    %c0_51 = arith.constant 0 : index
    %c0_52 = arith.constant 0 : index
    %c0_53 = arith.constant 0 : index
    %37 = vector.load %arg3[%c0_50, %c0_51, %c0_52, %c0_53] : memref<1x1x18x128xf32, #tpu.memory_space<vmem>>, vector<1x1x16x128xf32>
    %38 = vector.shape_cast %37 : vector<1x1x16x128xf32> to vector<16x128xf32>
    %c96 = arith.constant 96 : index
    %c768_54 = arith.constant 768 : index
    %39 = vector.load %arg8[%c96, %c768_54] : memref<128x1152xf32, #tpu.memory_space<vmem>>, vector<16x128xf32>
    tpu.vector_store %arg8[%c96, %c768_54], %38 {strides = array<i32>} : memref<128x1152xf32, #tpu.memory_space<vmem>>, vector<16x128xf32>,
    %c0_55 = arith.constant 0 : index
    %c0_56 = arith.constant 0 : index
    %c0_57 = arith.constant 0 : index
    %c0_58 = arith.constant 0 : index
    %40 = vector.load %arg4[%c0_55, %c0_56, %c0_57, %c0_58] : memref<1x1x18x128xf32, #tpu.memory_space<vmem>>, vector<1x1x16x128xf32>
    %41 = vector.shape_cast %40 : vector<1x1x16x128xf32> to vector<16x128xf32>
    %c112_59 = arith.constant 112 : index
    %c768_60 = arith.constant 768 : index
    %42 = vector.load %arg8[%c112_59, %c768_60] : memref<128x1152xf32, #tpu.memory_space<vmem>>, vector<16x128xf32>
    tpu.vector_store %arg8[%c112_59, %c768_60], %41 {strides = array<i32>} : memref<128x1152xf32, #tpu.memory_space<vmem>>, vector<16x128xf32>,
    %c0_61 = arith.constant 0 : index
    %c2_62 = arith.constant 2 : index
    %c1_63 = arith.constant 1 : index
    %c0_64 = arith.constant 0 : index
    %43 = vector.load %arg2[%c0_61, %c2_62, %c1_63, %c0_64] : memref<1x8x18x128xf32, #tpu.memory_space<vmem>>, vector<1x6x16x128xf32>
    %44 = vector.shape_cast %43 : vector<1x6x16x128xf32> to vector<6x16x128xf32>
    %45 = vector.shape_cast %44 : vector<6x16x128xf32> to vector<96x128xf32>
    %c0_65 = arith.constant 0 : index
    %c896 = arith.constant 896 : index
    %46 = vector.load %arg8[%c0_65, %c896] : memref<128x1152xf32, #tpu.memory_space<vmem>>, vector<96x128xf32>
    tpu.vector_store %arg8[%c0_65, %c896], %45 {strides = array<i32>} : memref<128x1152xf32, #tpu.memory_space<vmem>>, vector<96x128xf32>,
    %c0_66 = arith.constant 0 : index
    %c0_67 = arith.constant 0 : index
    %c1_68 = arith.constant 1 : index
    %c0_69 = arith.constant 0 : index
    %47 = vector.load %arg3[%c0_66, %c0_67, %c1_68, %c0_69] : memref<1x1x18x128xf32, #tpu.memory_space<vmem>>, vector<1x1x16x128xf32>
    %48 = vector.shape_cast %47 : vector<1x1x16x128xf32> to vector<16x128xf32>
    %c96_70 = arith.constant 96 : index
    %c896_71 = arith.constant 896 : index
    %49 = vector.load %arg8[%c96_70, %c896_71] : memref<128x1152xf32, #tpu.memory_space<vmem>>, vector<16x128xf32>
    tpu.vector_store %arg8[%c96_70, %c896_71], %48 {strides = array<i32>} : memref<128x1152xf32, #tpu.memory_space<vmem>>, vector<16x128xf32>,
    %c0_72 = arith.constant 0 : index
    %c0_73 = arith.constant 0 : index
    %c1_74 = arith.constant 1 : index
    %c0_75 = arith.constant 0 : index
    %50 = vector.load %arg4[%c0_72, %c0_73, %c1_74, %c0_75] : memref<1x1x18x128xf32, #tpu.memory_space<vmem>>, vector<1x1x16x128xf32>
    %51 = vector.shape_cast %50 : vector<1x1x16x128xf32> to vector<16x128xf32>
    %c112_76 = arith.constant 112 : index
    %c896_77 = arith.constant 896 : index
    %52 = vector.load %arg8[%c112_76, %c896_77] : memref<128x1152xf32, #tpu.memory_space<vmem>>, vector<16x128xf32>
    tpu.vector_store %arg8[%c112_76, %c896_77], %51 {strides = array<i32>} : memref<128x1152xf32, #tpu.memory_space<vmem>>, vector<16x128xf32>,
    %c0_78 = arith.constant 0 : index
    %c2_79 = arith.constant 2 : index
    %c2_80 = arith.constant 2 : index
    %c0_81 = arith.constant 0 : index
    %53 = vector.load %arg2[%c0_78, %c2_79, %c2_80, %c0_81] : memref<1x8x18x128xf32, #tpu.memory_space<vmem>>, vector<1x6x16x128xf32>
    %54 = vector.shape_cast %53 : vector<1x6x16x128xf32> to vector<6x16x128xf32>
    %55 = vector.shape_cast %54 : vector<6x16x128xf32> to vector<96x128xf32>
    %c0_82 = arith.constant 0 : index
    %c1024 = arith.constant 1024 : index
    %56 = vector.load %arg8[%c0_82, %c1024] : memref<128x1152xf32, #tpu.memory_space<vmem>>, vector<96x128xf32>
    tpu.vector_store %arg8[%c0_82, %c1024], %55 {strides = array<i32>} : memref<128x1152xf32, #tpu.memory_space<vmem>>, vector<96x128xf32>,
    %c0_83 = arith.constant 0 : index
    %c0_84 = arith.constant 0 : index
    %c2_85 = arith.constant 2 : index
    %c0_86 = arith.constant 0 : index
    %57 = vector.load %arg3[%c0_83, %c0_84, %c2_85, %c0_86] : memref<1x1x18x128xf32, #tpu.memory_space<vmem>>, vector<1x1x16x128xf32>
    %58 = vector.shape_cast %57 : vector<1x1x16x128xf32> to vector<16x128xf32>
    %c96_87 = arith.constant 96 : index
    %c1024_88 = arith.constant 1024 : index
    %59 = vector.load %arg8[%c96_87, %c1024_88] : memref<128x1152xf32, #tpu.memory_space<vmem>>, vector<16x128xf32>
    tpu.vector_store %arg8[%c96_87, %c1024_88], %58 {strides = array<i32>} : memref<128x1152xf32, #tpu.memory_space<vmem>>, vector<16x128xf32>,
    %c0_89 = arith.constant 0 : index
    %c0_90 = arith.constant 0 : index
    %c2_91 = arith.constant 2 : index
    %c0_92 = arith.constant 0 : index
    %60 = vector.load %arg4[%c0_89, %c0_90, %c2_91, %c0_92] : memref<1x1x18x128xf32, #tpu.memory_space<vmem>>, vector<1x1x16x128xf32>
    %61 = vector.shape_cast %60 : vector<1x1x16x128xf32> to vector<16x128xf32>
    %c112_93 = arith.constant 112 : index
    %c1024_94 = arith.constant 1024 : index
    %62 = vector.load %arg8[%c112_93, %c1024_94] : memref<128x1152xf32, #tpu.memory_space<vmem>>, vector<16x128xf32>
    tpu.vector_store %arg8[%c112_93, %c1024_94], %61 {strides = array<i32>} : memref<128x1152xf32, #tpu.memory_space<vmem>>, vector<16x128xf32>,
    %c0_95 = arith.constant 0 : index
    %c0_96 = arith.constant 0 : index
    %63 = vector.load %arg8[%c0_95, %c0_96] : memref<128x1152xf32, #tpu.memory_space<vmem>>, vector<128x1152xf32>
    %c0_97 = arith.constant 0 : index
    %c0_98 = arith.constant 0 : index
    %64 = vector.load %arg5[%c0_97, %c0_98] : memref<1152x128xf32, #tpu.memory_space<vmem>>, vector<1152x128xf32>
    %cst = arith.constant dense<0.000000e+00> : vector<128x128xf32>
    %65 = tpu.matmul %63, %64, %cst {dimension_numbers = #tpu.dot_dimension_numbers<[1], [0], [0], [1], [0, 0, 1, 1], [], []>} : vector<128x1152xf32>, vector<1152x128xf32>, vector<128x128xf32> -> vector<128x128xf32>
    %66 = vector.shape_cast %65 : vector<128x128xf32> to vector<1x8x16x128xf32>
    %c0_99 = arith.constant 0 : index
    %c0_100 = arith.constant 0 : index
    %c0_101 = arith.constant 0 : index
    %c0_102 = arith.constant 0 : index
    %67 = vector.load %arg6[%c0_99, %c0_100, %c0_101, %c0_102] : memref<1x8x16x128xf32, #tpu.memory_space<vmem>>, vector<1x8x16x128xf32>
    tpu.vector_store %arg6[%c0_99, %c0_100, %c0_101, %c0_102], %66 {strides = array<i32>} : memref<1x8x16x128xf32, #tpu.memory_space<vmem>>, vector<1x8x16x128xf32>,
    %cst_103 = arith.constant dense<0.000000e+00> : vector<128xf32>
    %68 = vector.multi_reduction <add>, %65, %cst_103 [0] : vector<128x128xf32> to vector<128xf32>
    %69 = vector.shape_cast %68 : vector<128xf32> to vector<1x128xf32>
    %70 = arith.mulf %65, %65 : vector<128x128xf32>
    %cst_104 = arith.constant dense<0.000000e+00> : vector<128xf32>
    %71 = vector.multi_reduction <add>, %70, %cst_104 [0] : vector<128x128xf32> to vector<128xf32>
    %72 = vector.shape_cast %71 : vector<128xf32> to vector<1x128xf32>
    %73 = tpu.concatenate %69, %72 in 0 : vector<1x128xf32>, vector<1x128xf32> -> vector<2x128xf32>
    %74 = vector.shape_cast %73 : vector<2x128xf32> to vector<1x1x2x128xf32>
    %c0_105 = arith.constant 0 : index
    %c0_106 = arith.constant 0 : index
    %c0_107 = arith.constant 0 : index
    %c0_108 = arith.constant 0 : index
    %75 = vector.load %arg7[%c0_105, %c0_106, %c0_107, %c0_108] : memref<1x1x2x128xf32, #tpu.memory_space<vmem>>, vector<1x1x2x128xf32>
    tpu.vector_store %arg7[%c0_105, %c0_106, %c0_107, %c0_108], %74 {strides = array<i32>} : memref<1x1x2x128xf32, #tpu.memory_space<vmem>>, vector<1x1x2x128xf32>,
    return
  }
  func.func @transform_0(%arg0: i32, %arg1: i32) -> (i32, i32, i32, i32) {
    %c0_i32 = arith.constant 0 : i32
    %c0_i32_0 = arith.constant 0 : i32
    %c0_i32_1 = arith.constant 0 : i32
    return %arg0, %arg1, %c0_i32, %c0_i32_0 : i32, i32, i32, i32
  }
  func.func @transform_1(%arg0: i32, %arg1: i32) -> (i32, i32, i32, i32) {
    %c1_i32 = arith.constant 1 : i32
    %0 = arith.addi %arg1, %c1_i32 : i32
    %c8_i32 = arith.constant 8 : i32
    %1 = arith.muli %0, %c8_i32 : i32
    %c0_i32 = arith.constant 0 : i32
    %c0_i32_0 = arith.constant 0 : i32
    %c0_i32_1 = arith.constant 0 : i32
    return %arg0, %1, %c0_i32, %c0_i32_0 : i32, i32, i32, i32
  }
  func.func @transform_2(%arg0: i32, %arg1: i32) -> (i32, i32, i32, i32) {
    %c1_i32 = arith.constant 1 : i32
    %0 = arith.addi %arg1, %c1_i32 : i32
    %c8_i32 = arith.constant 8 : i32
    %1 = arith.muli %0, %c8_i32 : i32
    %c1_i32_0 = arith.constant 1 : i32
    %2 = arith.addi %1, %c1_i32_0 : i32
    %c0_i32 = arith.constant 0 : i32
    %c0_i32_1 = arith.constant 0 : i32
    %c0_i32_2 = arith.constant 0 : i32
    return %arg0, %2, %c0_i32, %c0_i32_1 : i32, i32, i32, i32
  }
  func.func @transform_3(%arg0: i32, %arg1: i32) -> (i32, i32) {
    %c0_i32 = arith.constant 0 : i32
    %c0_i32_0 = arith.constant 0 : i32
    %c0_i32_1 = arith.constant 0 : i32
    return %c0_i32, %c0_i32_0 : i32, i32
  }
  func.func @transform_4(%arg0: i32, %arg1: i32) -> (i32, i32, i32, i32) {
    %c0_i32 = arith.constant 0 : i32
    %c0_i32_0 = arith.constant 0 : i32
    %c0_i32_1 = arith.constant 0 : i32
    return %arg0, %arg1, %c0_i32, %c0_i32_0 : i32, i32, i32, i32
  }
  func.func @transform_5(%arg0: i32, %arg1: i32) -> (i32, i32, i32, i32) {
    %c0_i32 = arith.constant 0 : i32
    %c0_i32_0 = arith.constant 0 : i32
    %c0_i32_1 = arith.constant 0 : i32
    return %arg0, %arg1, %c0_i32, %c0_i32_0 : i32, i32, i32, i32
  }
}

module attributes {stable_mosaic.version = 11 : i64} {
  func.func @_bn2_residual_kernel(%arg0: i32, %arg1: i32, %arg2: memref<1x8x16x128xf32, #tpu.memory_space<vmem>>, %arg3: memref<1x8x16x128xf32, #tpu.memory_space<vmem>>, %arg4: memref<1x128xf32, #tpu.memory_space<vmem>>, %arg5: memref<1x128xf32, #tpu.memory_space<vmem>>, %arg6: memref<1x8x16x128xf32, #tpu.memory_space<vmem>>) attributes {dimension_semantics = [#tpu.dimension_semantics<parallel>, #tpu.dimension_semantics<parallel>], iteration_bounds = array<i64: 2, 2>, scalar_prefetch = 0 : i64, scratch_operands = 0 : i64, tpu.core_type = #tpu.core_type<tc>, window_params = [{transform_indices = @transform_0, window_bounds = array<i64: 1, 8, 16, 128>}, {transform_indices = @transform_1, window_bounds = array<i64: 1, 8, 16, 128>}, {pipeline_mode = #tpu.pipeline_mode<synchronous>, transform_indices = @transform_2, window_bounds = array<i64: 1, 128>}, {pipeline_mode = #tpu.pipeline_mode<synchronous>, transform_indices = @transform_3, window_bounds = array<i64: 1, 128>}, {transform_indices = @transform_4, window_bounds = array<i64: 1, 8, 16, 128>}]} {
    %c0 = arith.constant 0 : index
    %c0_0 = arith.constant 0 : index
    %0 = vector.load %arg4[%c0, %c0_0] : memref<1x128xf32, #tpu.memory_space<vmem>>, vector<1x128xf32>
    %1 = vector.shape_cast %0 : vector<1x128xf32> to vector<1x1x1x128xf32>
    %c0_1 = arith.constant 0 : index
    %c0_2 = arith.constant 0 : index
    %2 = vector.load %arg5[%c0_1, %c0_2] : memref<1x128xf32, #tpu.memory_space<vmem>>, vector<1x128xf32>
    %3 = vector.shape_cast %2 : vector<1x128xf32> to vector<1x1x1x128xf32>
    %c0_3 = arith.constant 0 : index
    %c0_4 = arith.constant 0 : index
    %c0_5 = arith.constant 0 : index
    %c0_6 = arith.constant 0 : index
    %4 = vector.load %arg3[%c0_3, %c0_4, %c0_5, %c0_6] : memref<1x8x16x128xf32, #tpu.memory_space<vmem>>, vector<1x8x16x128xf32>
    %5 = vector.broadcast %1 : vector<1x1x1x128xf32> to vector<1x8x16x128xf32>
    %6 = arith.mulf %4, %5 : vector<1x8x16x128xf32>
    %7 = vector.broadcast %3 : vector<1x1x1x128xf32> to vector<1x8x16x128xf32>
    %8 = arith.addf %6, %7 : vector<1x8x16x128xf32>
    %c0_7 = arith.constant 0 : index
    %c0_8 = arith.constant 0 : index
    %c0_9 = arith.constant 0 : index
    %c0_10 = arith.constant 0 : index
    %9 = vector.load %arg2[%c0_7, %c0_8, %c0_9, %c0_10] : memref<1x8x16x128xf32, #tpu.memory_space<vmem>>, vector<1x8x16x128xf32>
    %10 = arith.addf %8, %9 : vector<1x8x16x128xf32>
    %cst = arith.constant 0.000000e+00 : f32
    %11 = vector.broadcast %cst : f32 to vector<1x8x16x128xf32>
    %12 = arith.maximumf %10, %11 : vector<1x8x16x128xf32>
    %c0_11 = arith.constant 0 : index
    %c0_12 = arith.constant 0 : index
    %c0_13 = arith.constant 0 : index
    %c0_14 = arith.constant 0 : index
    %13 = vector.load %arg6[%c0_11, %c0_12, %c0_13, %c0_14] : memref<1x8x16x128xf32, #tpu.memory_space<vmem>>, vector<1x8x16x128xf32>
    tpu.vector_store %arg6[%c0_11, %c0_12, %c0_13, %c0_14], %12 {strides = array<i32>} : memref<1x8x16x128xf32, #tpu.memory_space<vmem>>, vector<1x8x16x128xf32>,
    return
  }
  func.func @transform_0(%arg0: i32, %arg1: i32) -> (i32, i32, i32, i32) {
    %c0_i32 = arith.constant 0 : i32
    %c0_i32_0 = arith.constant 0 : i32
    %c0_i32_1 = arith.constant 0 : i32
    return %arg0, %arg1, %c0_i32, %c0_i32_0 : i32, i32, i32, i32
  }
  func.func @transform_1(%arg0: i32, %arg1: i32) -> (i32, i32, i32, i32) {
    %c0_i32 = arith.constant 0 : i32
    %c0_i32_0 = arith.constant 0 : i32
    %c0_i32_1 = arith.constant 0 : i32
    return %arg0, %arg1, %c0_i32, %c0_i32_0 : i32, i32, i32, i32
  }
  func.func @transform_2(%arg0: i32, %arg1: i32) -> (i32, i32) {
    %c0_i32 = arith.constant 0 : i32
    %c0_i32_0 = arith.constant 0 : i32
    %c0_i32_1 = arith.constant 0 : i32
    return %c0_i32, %c0_i32_0 : i32, i32
  }
  func.func @transform_3(%arg0: i32, %arg1: i32) -> (i32, i32) {
    %c0_i32 = arith.constant 0 : i32
    %c0_i32_0 = arith.constant 0 : i32
    %c0_i32_1 = arith.constant 0 : i32
    return %c0_i32, %c0_i32_0 : i32, i32
  }
  func.func @transform_4(%arg0: i32, %arg1: i32) -> (i32, i32, i32, i32) {
    %c0_i32 = arith.constant 0 : i32
    %c0_i32_0 = arith.constant 0 : i32
    %c0_i32_1 = arith.constant 0 : i32
    return %arg0, %arg1, %c0_i32, %c0_i32_0 : i32, i32, i32, i32
  }
}

module attributes {stable_mosaic.version = 11 : i64} {
  func.func @_bn1_conv2_kernel(%arg0: i32, %arg1: i32, %arg2: memref<1x8x16x128xf32, #tpu.memory_space<vmem>>, %arg3: memref<1x1x16x128xf32, #tpu.memory_space<vmem>>, %arg4: memref<1x1x16x128xf32, #tpu.memory_space<vmem>>, %arg5: memref<1x128xf32, #tpu.memory_space<vmem>>, %arg6: memref<1x128xf32, #tpu.memory_space<vmem>>, %arg7: memref<1152x128xf32, #tpu.memory_space<vmem>>, %arg8: memref<1x8x16x128xf32, #tpu.memory_space<vmem>>, %arg9: memref<1x1x2x128xf32, #tpu.memory_space<vmem>>, %arg10: memref<10x18x128xf32, #tpu.memory_space<vmem>>, %arg11: memref<128x1152xf32, #tpu.memory_space<vmem>>) attributes {dimension_semantics = [#tpu.dimension_semantics<parallel>, #tpu.dimension_semantics<parallel>], iteration_bounds = array<i64: 2, 2>, scalar_prefetch = 0 : i64, scratch_operands = 2 : i64, tpu.core_type = #tpu.core_type<tc>, window_params = [{transform_indices = @transform_0, window_bounds = array<i64: 1, 8, 16, 128>}, {transform_indices = @transform_1, window_bounds = array<i64: 1, 1, 16, 128>}, {transform_indices = @transform_2, window_bounds = array<i64: 1, 1, 16, 128>}, {pipeline_mode = #tpu.pipeline_mode<synchronous>, transform_indices = @transform_3, window_bounds = array<i64: 1, 128>}, {pipeline_mode = #tpu.pipeline_mode<synchronous>, transform_indices = @transform_4, window_bounds = array<i64: 1, 128>}, {pipeline_mode = #tpu.pipeline_mode<synchronous>, transform_indices = @transform_5, window_bounds = array<i64: 1152, 128>}, {transform_indices = @transform_6, window_bounds = array<i64: 1, 8, 16, 128>}, {transform_indices = @transform_7, window_bounds = array<i64: 1, 1, 2, 128>}]} {
    %c0 = arith.constant 0 : index
    %c0_0 = arith.constant 0 : index
    %0 = vector.load %arg5[%c0, %c0_0] : memref<1x128xf32, #tpu.memory_space<vmem>>, vector<1x128xf32>
    %1 = vector.shape_cast %0 : vector<1x128xf32> to vector<1x1x128xf32>
    %c0_1 = arith.constant 0 : index
    %c0_2 = arith.constant 0 : index
    %2 = vector.load %arg6[%c0_1, %c0_2] : memref<1x128xf32, #tpu.memory_space<vmem>>, vector<1x128xf32>
    %3 = vector.shape_cast %2 : vector<1x128xf32> to vector<1x1x128xf32>
    %cst = arith.constant 0.000000e+00 : f32
    %4 = vector.broadcast %cst : f32 to vector<10x1x128xf32>
    %c0_3 = arith.constant 0 : index
    %c0_4 = arith.constant 0 : index
    %c0_5 = arith.constant 0 : index
    %5 = vector.load %arg10[%c0_3, %c0_4, %c0_5] : memref<10x18x128xf32, #tpu.memory_space<vmem>>, vector<10x1x128xf32>
    tpu.vector_store %arg10[%c0_3, %c0_4, %c0_5], %4 {strides = array<i32>} : memref<10x18x128xf32, #tpu.memory_space<vmem>>, vector<10x1x128xf32>,
    %c0_6 = arith.constant 0 : index
    %c17 = arith.constant 17 : index
    %c0_7 = arith.constant 0 : index
    %6 = vector.load %arg10[%c0_6, %c17, %c0_7] : memref<10x18x128xf32, #tpu.memory_space<vmem>>, vector<10x1x128xf32>
    tpu.vector_store %arg10[%c0_6, %c17, %c0_7], %4 {strides = array<i32>} : memref<10x18x128xf32, #tpu.memory_space<vmem>>, vector<10x1x128xf32>,
    %c0_8 = arith.constant 0 : index
    %c0_9 = arith.constant 0 : index
    %c0_10 = arith.constant 0 : index
    %c0_11 = arith.constant 0 : index
    %7 = vector.load %arg2[%c0_8, %c0_9, %c0_10, %c0_11] : memref<1x8x16x128xf32, #tpu.memory_space<vmem>>, vector<1x8x16x128xf32>
    %8 = vector.shape_cast %7 : vector<1x8x16x128xf32> to vector<8x16x128xf32>
    %9 = vector.broadcast %1 : vector<1x1x128xf32> to vector<8x16x128xf32>
    %10 = arith.mulf %8, %9 : vector<8x16x128xf32>
    %11 = vector.broadcast %3 : vector<1x1x128xf32> to vector<8x16x128xf32>
    %12 = arith.addf %10, %11 : vector<8x16x128xf32>
    %cst_12 = arith.constant 0.000000e+00 : f32
    %13 = vector.broadcast %cst_12 : f32 to vector<8x16x128xf32>
    %14 = arith.maximumf %12, %13 : vector<8x16x128xf32>
    %c1 = arith.constant 1 : index
    %c1_13 = arith.constant 1 : index
    %c0_14 = arith.constant 0 : index
    %15 = vector.load %arg10[%c1, %c1_13, %c0_14] : memref<10x18x128xf32, #tpu.memory_space<vmem>>, vector<8x16x128xf32>
    tpu.vector_store %arg10[%c1, %c1_13, %c0_14], %14 {strides = array<i32>} : memref<10x18x128xf32, #tpu.memory_space<vmem>>, vector<8x16x128xf32>,
    %c0_15 = arith.constant 0 : index
    %c0_16 = arith.constant 0 : index
    %c0_17 = arith.constant 0 : index
    %c0_18 = arith.constant 0 : index
    %16 = vector.load %arg3[%c0_15, %c0_16, %c0_17, %c0_18] : memref<1x1x16x128xf32, #tpu.memory_space<vmem>>, vector<1x1x16x128xf32>
    %17 = vector.shape_cast %16 : vector<1x1x16x128xf32> to vector<1x16x128xf32>
    %18 = vector.broadcast %1 : vector<1x1x128xf32> to vector<1x16x128xf32>
    %19 = arith.mulf %17, %18 : vector<1x16x128xf32>
    %20 = vector.broadcast %3 : vector<1x1x128xf32> to vector<1x16x128xf32>
    %21 = arith.addf %19, %20 : vector<1x16x128xf32>
    %cst_19 = arith.constant 0.000000e+00 : f32
    %22 = vector.broadcast %cst_19 : f32 to vector<1x16x128xf32>
    %23 = arith.maximumf %21, %22 : vector<1x16x128xf32>
    %c0_20 = arith.constant 0 : index
    %c0_21 = arith.constant 0 : index
    %c0_22 = arith.constant 0 : index
    %c0_23 = arith.constant 0 : index
    %24 = vector.load %arg4[%c0_20, %c0_21, %c0_22, %c0_23] : memref<1x1x16x128xf32, #tpu.memory_space<vmem>>, vector<1x1x16x128xf32>
    %25 = vector.shape_cast %24 : vector<1x1x16x128xf32> to vector<1x16x128xf32>
    %26 = vector.broadcast %1 : vector<1x1x128xf32> to vector<1x16x128xf32>
    %27 = arith.mulf %25, %26 : vector<1x16x128xf32>
    %28 = vector.broadcast %3 : vector<1x1x128xf32> to vector<1x16x128xf32>
    %29 = arith.addf %27, %28 : vector<1x16x128xf32>
    %cst_24 = arith.constant 0.000000e+00 : f32
    %30 = vector.broadcast %cst_24 : f32 to vector<1x16x128xf32>
    %31 = arith.maximumf %29, %30 : vector<1x16x128xf32>
    %c0_i32 = arith.constant 0 : i32
    %32 = arith.cmpi eq, %arg1, %c0_i32 : i32
    %cst_25 = arith.constant 0.000000e+00 : f32
    %33 = vector.broadcast %cst_25 : f32 to vector<1x16x128xf32>
    %34 = arith.select %32, %33, %23 : vector<1x16x128xf32>
    %c1_i32 = arith.constant 1 : i32
    %35 = arith.cmpi eq, %arg1, %c1_i32 : i32
    %cst_26 = arith.constant 0.000000e+00 : f32
    %36 = vector.broadcast %cst_26 : f32 to vector<1x16x128xf32>
    %37 = arith.select %35, %36, %31 : vector<1x16x128xf32>
    %c0_27 = arith.constant 0 : index
    %c1_28 = arith.constant 1 : index
    %c0_29 = arith.constant 0 : index
    %38 = vector.load %arg10[%c0_27, %c1_28, %c0_29] : memref<10x18x128xf32, #tpu.memory_space<vmem>>, vector<1x16x128xf32>
    tpu.vector_store %arg10[%c0_27, %c1_28, %c0_29], %34 {strides = array<i32>} : memref<10x18x128xf32, #tpu.memory_space<vmem>>, vector<1x16x128xf32>,
    %c9 = arith.constant 9 : index
    %c1_30 = arith.constant 1 : index
    %c0_31 = arith.constant 0 : index
    %39 = vector.load %arg10[%c9, %c1_30, %c0_31] : memref<10x18x128xf32, #tpu.memory_space<vmem>>, vector<1x16x128xf32>
    tpu.vector_store %arg10[%c9, %c1_30, %c0_31], %37 {strides = array<i32>} : memref<10x18x128xf32, #tpu.memory_space<vmem>>, vector<1x16x128xf32>,
    %c0_32 = arith.constant 0 : index
    %c0_33 = arith.constant 0 : index
    %c0_34 = arith.constant 0 : index
    %40 = vector.load %arg10[%c0_32, %c0_33, %c0_34] : memref<10x18x128xf32, #tpu.memory_space<vmem>>, vector<8x16x128xf32>
    %41 = vector.shape_cast %40 : vector<8x16x128xf32> to vector<128x128xf32>
    %c0_35 = arith.constant 0 : index
    %c0_36 = arith.constant 0 : index
    %42 = vector.load %arg11[%c0_35, %c0_36] : memref<128x1152xf32, #tpu.memory_space<vmem>>, vector<128x128xf32>
    tpu.vector_store %arg11[%c0_35, %c0_36], %41 {strides = array<i32>} : memref<128x1152xf32, #tpu.memory_space<vmem>>, vector<128x128xf32>,
    %c0_37 = arith.constant 0 : index
    %c1_38 = arith.constant 1 : index
    %c0_39 = arith.constant 0 : index
    %43 = vector.load %arg10[%c0_37, %c1_38, %c0_39] : memref<10x18x128xf32, #tpu.memory_space<vmem>>, vector<8x16x128xf32>
    %44 = vector.shape_cast %43 : vector<8x16x128xf32> to vector<128x128xf32>
    %c0_40 = arith.constant 0 : index
    %c128 = arith.constant 128 : index
    %45 = vector.load %arg11[%c0_40, %c128] : memref<128x1152xf32, #tpu.memory_space<vmem>>, vector<128x128xf32>
    tpu.vector_store %arg11[%c0_40, %c128], %44 {strides = array<i32>} : memref<128x1152xf32, #tpu.memory_space<vmem>>, vector<128x128xf32>,
    %c0_41 = arith.constant 0 : index
    %c2 = arith.constant 2 : index
    %c0_42 = arith.constant 0 : index
    %46 = vector.load %arg10[%c0_41, %c2, %c0_42] : memref<10x18x128xf32, #tpu.memory_space<vmem>>, vector<8x16x128xf32>
    %47 = vector.shape_cast %46 : vector<8x16x128xf32> to vector<128x128xf32>
    %c0_43 = arith.constant 0 : index
    %c256 = arith.constant 256 : index
    %48 = vector.load %arg11[%c0_43, %c256] : memref<128x1152xf32, #tpu.memory_space<vmem>>, vector<128x128xf32>
    tpu.vector_store %arg11[%c0_43, %c256], %47 {strides = array<i32>} : memref<128x1152xf32, #tpu.memory_space<vmem>>, vector<128x128xf32>,
    %c1_44 = arith.constant 1 : index
    %c0_45 = arith.constant 0 : index
    %c0_46 = arith.constant 0 : index
    %49 = vector.load %arg10[%c1_44, %c0_45, %c0_46] : memref<10x18x128xf32, #tpu.memory_space<vmem>>, vector<8x16x128xf32>
    %50 = vector.shape_cast %49 : vector<8x16x128xf32> to vector<128x128xf32>
    %c0_47 = arith.constant 0 : index
    %c384 = arith.constant 384 : index
    %51 = vector.load %arg11[%c0_47, %c384] : memref<128x1152xf32, #tpu.memory_space<vmem>>, vector<128x128xf32>
    tpu.vector_store %arg11[%c0_47, %c384], %50 {strides = array<i32>} : memref<128x1152xf32, #tpu.memory_space<vmem>>, vector<128x128xf32>,
    %c1_48 = arith.constant 1 : index
    %c1_49 = arith.constant 1 : index
    %c0_50 = arith.constant 0 : index
    %52 = vector.load %arg10[%c1_48, %c1_49, %c0_50] : memref<10x18x128xf32, #tpu.memory_space<vmem>>, vector<8x16x128xf32>
    %53 = vector.shape_cast %52 : vector<8x16x128xf32> to vector<128x128xf32>
    %c0_51 = arith.constant 0 : index
    %c512 = arith.constant 512 : index
    %54 = vector.load %arg11[%c0_51, %c512] : memref<128x1152xf32, #tpu.memory_space<vmem>>, vector<128x128xf32>
    tpu.vector_store %arg11[%c0_51, %c512], %53 {strides = array<i32>} : memref<128x1152xf32, #tpu.memory_space<vmem>>, vector<128x128xf32>,
    %c1_52 = arith.constant 1 : index
    %c2_53 = arith.constant 2 : index
    %c0_54 = arith.constant 0 : index
    %55 = vector.load %arg10[%c1_52, %c2_53, %c0_54] : memref<10x18x128xf32, #tpu.memory_space<vmem>>, vector<8x16x128xf32>
    %56 = vector.shape_cast %55 : vector<8x16x128xf32> to vector<128x128xf32>
    %c0_55 = arith.constant 0 : index
    %c640 = arith.constant 640 : index
    %57 = vector.load %arg11[%c0_55, %c640] : memref<128x1152xf32, #tpu.memory_space<vmem>>, vector<128x128xf32>
    tpu.vector_store %arg11[%c0_55, %c640], %56 {strides = array<i32>} : memref<128x1152xf32, #tpu.memory_space<vmem>>, vector<128x128xf32>,
    %c2_56 = arith.constant 2 : index
    %c0_57 = arith.constant 0 : index
    %c0_58 = arith.constant 0 : index
    %58 = vector.load %arg10[%c2_56, %c0_57, %c0_58] : memref<10x18x128xf32, #tpu.memory_space<vmem>>, vector<8x16x128xf32>
    %59 = vector.shape_cast %58 : vector<8x16x128xf32> to vector<128x128xf32>
    %c0_59 = arith.constant 0 : index
    %c768 = arith.constant 768 : index
    %60 = vector.load %arg11[%c0_59, %c768] : memref<128x1152xf32, #tpu.memory_space<vmem>>, vector<128x128xf32>
    tpu.vector_store %arg11[%c0_59, %c768], %59 {strides = array<i32>} : memref<128x1152xf32, #tpu.memory_space<vmem>>, vector<128x128xf32>,
    %c2_60 = arith.constant 2 : index
    %c1_61 = arith.constant 1 : index
    %c0_62 = arith.constant 0 : index
    %61 = vector.load %arg10[%c2_60, %c1_61, %c0_62] : memref<10x18x128xf32, #tpu.memory_space<vmem>>, vector<8x16x128xf32>
    %62 = vector.shape_cast %61 : vector<8x16x128xf32> to vector<128x128xf32>
    %c0_63 = arith.constant 0 : index
    %c896 = arith.constant 896 : index
    %63 = vector.load %arg11[%c0_63, %c896] : memref<128x1152xf32, #tpu.memory_space<vmem>>, vector<128x128xf32>
    tpu.vector_store %arg11[%c0_63, %c896], %62 {strides = array<i32>} : memref<128x1152xf32, #tpu.memory_space<vmem>>, vector<128x128xf32>,
    %c2_64 = arith.constant 2 : index
    %c2_65 = arith.constant 2 : index
    %c0_66 = arith.constant 0 : index
    %64 = vector.load %arg10[%c2_64, %c2_65, %c0_66] : memref<10x18x128xf32, #tpu.memory_space<vmem>>, vector<8x16x128xf32>
    %65 = vector.shape_cast %64 : vector<8x16x128xf32> to vector<128x128xf32>
    %c0_67 = arith.constant 0 : index
    %c1024 = arith.constant 1024 : index
    %66 = vector.load %arg11[%c0_67, %c1024] : memref<128x1152xf32, #tpu.memory_space<vmem>>, vector<128x128xf32>
    tpu.vector_store %arg11[%c0_67, %c1024], %65 {strides = array<i32>} : memref<128x1152xf32, #tpu.memory_space<vmem>>, vector<128x128xf32>,
    %c0_68 = arith.constant 0 : index
    %c0_69 = arith.constant 0 : index
    %67 = vector.load %arg11[%c0_68, %c0_69] : memref<128x1152xf32, #tpu.memory_space<vmem>>, vector<128x1152xf32>
    %c0_70 = arith.constant 0 : index
    %c0_71 = arith.constant 0 : index
    %68 = vector.load %arg7[%c0_70, %c0_71] : memref<1152x128xf32, #tpu.memory_space<vmem>>, vector<1152x128xf32>
    %cst_72 = arith.constant dense<0.000000e+00> : vector<128x128xf32>
    %69 = tpu.matmul %67, %68, %cst_72 {dimension_numbers = #tpu.dot_dimension_numbers<[1], [0], [0], [1], [0, 0, 1, 1], [], []>} : vector<128x1152xf32>, vector<1152x128xf32>, vector<128x128xf32> -> vector<128x128xf32>
    %70 = vector.shape_cast %69 : vector<128x128xf32> to vector<1x8x16x128xf32>
    %c0_73 = arith.constant 0 : index
    %c0_74 = arith.constant 0 : index
    %c0_75 = arith.constant 0 : index
    %c0_76 = arith.constant 0 : index
    %71 = vector.load %arg8[%c0_73, %c0_74, %c0_75, %c0_76] : memref<1x8x16x128xf32, #tpu.memory_space<vmem>>, vector<1x8x16x128xf32>
    tpu.vector_store %arg8[%c0_73, %c0_74, %c0_75, %c0_76], %70 {strides = array<i32>} : memref<1x8x16x128xf32, #tpu.memory_space<vmem>>, vector<1x8x16x128xf32>,
    %cst_77 = arith.constant dense<0.000000e+00> : vector<128xf32>
    %72 = vector.multi_reduction <add>, %69, %cst_77 [0] : vector<128x128xf32> to vector<128xf32>
    %73 = vector.shape_cast %72 : vector<128xf32> to vector<1x128xf32>
    %74 = arith.mulf %69, %69 : vector<128x128xf32>
    %cst_78 = arith.constant dense<0.000000e+00> : vector<128xf32>
    %75 = vector.multi_reduction <add>, %74, %cst_78 [0] : vector<128x128xf32> to vector<128xf32>
    %76 = vector.shape_cast %75 : vector<128xf32> to vector<1x128xf32>
    %77 = tpu.concatenate %73, %76 in 0 : vector<1x128xf32>, vector<1x128xf32> -> vector<2x128xf32>
    %78 = vector.shape_cast %77 : vector<2x128xf32> to vector<1x1x2x128xf32>
    %c0_79 = arith.constant 0 : index
    %c0_80 = arith.constant 0 : index
    %c0_81 = arith.constant 0 : index
    %c0_82 = arith.constant 0 : index
    %79 = vector.load %arg9[%c0_79, %c0_80, %c0_81, %c0_82] : memref<1x1x2x128xf32, #tpu.memory_space<vmem>>, vector<1x1x2x128xf32>
    tpu.vector_store %arg9[%c0_79, %c0_80, %c0_81, %c0_82], %78 {strides = array<i32>} : memref<1x1x2x128xf32, #tpu.memory_space<vmem>>, vector<1x1x2x128xf32>,
    return
  }
  func.func @transform_0(%arg0: i32, %arg1: i32) -> (i32, i32, i32, i32) {
    %c0_i32 = arith.constant 0 : i32
    %c0_i32_0 = arith.constant 0 : i32
    %c0_i32_1 = arith.constant 0 : i32
    return %arg0, %arg1, %c0_i32, %c0_i32_0 : i32, i32, i32, i32
  }
  func.func @transform_1(%arg0: i32, %arg1: i32) -> (i32, i32, i32, i32) {
    %c8_i32 = arith.constant 8 : i32
    %0 = arith.muli %arg1, %c8_i32 : i32
    %c1_i32 = arith.constant 1 : i32
    %1 = arith.subi %0, %c1_i32 : i32
    %c0_i32 = arith.constant 0 : i32
    %2 = arith.maxsi %1, %c0_i32 : i32
    %c0_i32_0 = arith.constant 0 : i32
    %c0_i32_1 = arith.constant 0 : i32
    %c0_i32_2 = arith.constant 0 : i32
    return %arg0, %2, %c0_i32_0, %c0_i32_1 : i32, i32, i32, i32
  }
  func.func @transform_2(%arg0: i32, %arg1: i32) -> (i32, i32, i32, i32) {
    %c1_i32 = arith.constant 1 : i32
    %0 = arith.addi %arg1, %c1_i32 : i32
    %c8_i32 = arith.constant 8 : i32
    %1 = arith.muli %0, %c8_i32 : i32
    %c15_i32 = arith.constant 15 : i32
    %2 = arith.minsi %1, %c15_i32 : i32
    %c0_i32 = arith.constant 0 : i32
    %c0_i32_0 = arith.constant 0 : i32
    %c0_i32_1 = arith.constant 0 : i32
    return %arg0, %2, %c0_i32, %c0_i32_0 : i32, i32, i32, i32
  }
  func.func @transform_3(%arg0: i32, %arg1: i32) -> (i32, i32) {
    %c0_i32 = arith.constant 0 : i32
    %c0_i32_0 = arith.constant 0 : i32
    %c0_i32_1 = arith.constant 0 : i32
    return %c0_i32, %c0_i32_0 : i32, i32
  }
  func.func @transform_4(%arg0: i32, %arg1: i32) -> (i32, i32) {
    %c0_i32 = arith.constant 0 : i32
    %c0_i32_0 = arith.constant 0 : i32
    %c0_i32_1 = arith.constant 0 : i32
    return %c0_i32, %c0_i32_0 : i32, i32
  }
  func.func @transform_5(%arg0: i32, %arg1: i32) -> (i32, i32) {
    %c0_i32 = arith.constant 0 : i32
    %c0_i32_0 = arith.constant 0 : i32
    %c0_i32_1 = arith.constant 0 : i32
    return %c0_i32, %c0_i32_0 : i32, i32
  }
  func.func @transform_6(%arg0: i32, %arg1: i32) -> (i32, i32, i32, i32) {
    %c0_i32 = arith.constant 0 : i32
    %c0_i32_0 = arith.constant 0 : i32
    %c0_i32_1 = arith.constant 0 : i32
    return %arg0, %arg1, %c0_i32, %c0_i32_0 : i32, i32, i32, i32
  }
  func.func @transform_7(%arg0: i32, %arg1: i32) -> (i32, i32, i32, i32) {
    %c0_i32 = arith.constant 0 : i32
    %c0_i32_0 = arith.constant 0 : i32
    %c0_i32_1 = arith.constant 0 : i32
    return %arg0, %arg1, %c0_i32, %c0_i32_0 : i32, i32, i32, i32
  }
}

</mosaic_0001>

<llo_original>
// kernel: basic_block_e.5
$region0: #{basic_block_e.5}
  #allocation0 [shape = 'u32[]', space=smem, size = 0x4, offset = 0x4, fixed_abs, tag = 'smem constant byte address 0x4 - core index']
  #allocation1 [shape = 'u32[144,128]{1,0:T(1,128)}', space=vmem, size = 0x12000, scoped, tag = 'internal scratch']
  %s0 = inlined_call_operand.vmem [shape: f32[2,16,16,128], index: 0, kind: input, shape index: {}]
  %s1 = inlined_call_operand.vmem [shape: f32[2,16,16,128], index: 1, kind: input, shape index: {}]
  %s2 = inlined_call_operand.vmem [shape: f32[1,128], index: 2, kind: input, shape index: {}]
  %s3 = inlined_call_operand.vmem [shape: f32[1,128], index: 3, kind: input, shape index: {}]
  %s4 = inlined_call_operand.vmem [shape: f32[2,16,16,128], index: 4, kind: output, shape index: {}]
  %s5 = sld [smem:[#allocation0]]
  $region49: #{basic_block_e.5} parent=0
    _
  %s7 = ssub.s32 1, %s5
  %s8 = scalar_select 0, %s7, %s5
  loop: start=0, step=1, limit=6
  $region2: #{basic_block_e.5} parent=0 // loop_pre_header
    _
  $region3: #{basic_block_e.5} parent=0 // loop_header
    %s10 = sphi 0, %s14
    %p11 = scmp.ge.s32.totalorder %s10, 6
    %s17 = sphi 0, %s29
    %s18 = sphi 0, %s25
    %s19 = sphi 0, %s17
    %s20 = sphi 0, %s18
    %s21 = sphi 0, %s19
    %s22 = sphi 0, %s20
    %s34 = sphi 0, %s36
    %s37 = sphi 0, %s34
    %s38 = sphi 0, %s37
    %s54 = sphi 0, %s38
    %s62 = sphi 0, %s64
    %s65 = sphi 0, %s62
    %s66 = sphi 0, %s65
    %s82 = sphi 0, %s66
    %s86 = sphi 0, %s86
    %s88 = sphi 0, %s86
    %s89 = sphi 0, %s88
    %s103 = sphi 0, %s89
    %s107 = sphi 0, %s107
    %s109 = sphi 0, %s107
    %s110 = sphi 0, %s109
    %s124 = sphi 0, %s110
    %s132 = sphi 0, %s134
    %s135 = sphi 0, %s132
    %s136 = sphi 0, %s135
    %s152 = sphi 0, %s136
  $region4: #{basic_block_e.5} parent=0 // loop_header_branch
    %13 = sbr.rel (%p11) target = $region8
  $region5: #{basic_block_e.5} parent=0 // loop_body
    %s15 = ssub.s32 %s10, 1
    %s16 = ssub.s32 %s10, 2
    %s23 = sadd.s32 1, %s18
    %p24 = scmp.ge.s32.totalorder %s23, 2
    %s25 = scalar_select %p24, 0, %s23
    %s26 = sadd.s32 1, %s17
    %s27 = scalar_select %p24, %s26, %s17
    %p28 = scmp.ge.s32.totalorder %s27, 2
    %s29 = scalar_select %p28, 0, %s27
    %s30 = ssub.s32 %s17, %s29
    %s31 = ssub.s32 %s18, %s25
    %s32 = sor.u32 %s30, %s31
    %p33 = scmp.eq.s32.totalorder %s32, 0
    %s35 = sadd.s32 %s34, 1
    %s36 = scalar_select %p33, %s34, %s35
    %p39 = pneg %p33
    %p40 = scmp.eq.s32.totalorder %s10, 3
    %p41 = por %p39, %p40
    %p42 = scmp.ne.s32.totalorder %s34, %s37
    %p43 = scmp.eq.s32.totalorder %s10, 0
    %p44 = por %p42, %p43
    %p45 = scmp.ne.s32.totalorder %s34, %s37
    %p46 = scmp.eq.s32.totalorder %s15, 3
    %p47 = por %p45, %p46
    %p48 = scmp.ne.s32.totalorder %s37, %s38
    %p49 = scmp.eq.s32.totalorder %s15, 0
    %p50 = por %p48, %p49
    %p51 = scmp.ne.s32.totalorder %s37, %s38
    %p52 = scmp.eq.s32.totalorder %s16, 3
    %p53 = por %p51, %p52
    %p55 = scmp.ne.s32.totalorder %s38, %s54
    %p56 = scmp.eq.s32.totalorder %s16, 0
    %p57 = por %p55, %p56
    %s58 = ssub.s32 %s17, %s29
    %s59 = ssub.s32 %s18, %s25
    %s60 = sor.u32 %s58, %s59
    %p61 = scmp.eq.s32.totalorder %s60, 0
    %s63 = sadd.s32 %s62, 1
    %s64 = scalar_select %p61, %s62, %s63
    %p67 = pneg %p61
    %p68 = scmp.eq.s32.totalorder %s10, 3
    %p69 = por %p67, %p68
    %p70 = scmp.ne.s32.totalorder %s62, %s65
    %p71 = scmp.eq.s32.totalorder %s10, 0
    %p72 = por %p70, %p71
    %p73 = scmp.ne.s32.totalorder %s62, %s65
    %p74 = scmp.eq.s32.totalorder %s15, 3
    %p75 = por %p73, %p74
    %p76 = scmp.ne.s32.totalorder %s65, %s66
    %p77 = scmp.eq.s32.totalorder %s15, 0
    %p78 = por %p76, %p77
    %p79 = scmp.ne.s32.totalorder %s65, %s66
    %p80 = scmp.eq.s32.totalorder %s16, 3
    %p81 = por %p79, %p80
    %p83 = scmp.ne.s32.totalorder %s66, %s82
    %p84 = scmp.eq.s32.totalorder %s16, 0
    %p85 = por %p83, %p84
    %s87 = sadd.s32 %s86, 1
    %p90 = scmp.eq.s32.totalorder %s10, 3
    %p91 = scmp.ne.s32.totalorder %s86, %s88
    %p92 = scmp.eq.s32.totalorder %s10, 0
    %p93 = por %p91, %p92
    %p94 = scmp.ne.s32.totalorder %s86, %s88
    %p95 = scmp.eq.s32.totalorder %s15, 3
    %p96 = por %p94, %p95
    %p97 = scmp.ne.s32.totalorder %s88, %s89
    %p98 = scmp.eq.s32.totalorder %s15, 0
    %p99 = por %p97, %p98
    %p100 = scmp.ne.s32.totalorder %s88, %s89
    %p101 = scmp.eq.s32.totalorder %s16, 3
    %p102 = por %p100, %p101
    %p104 = scmp.ne.s32.totalorder %s89, %s103
    %p105 = scmp.eq.s32.totalorder %s16, 0
    %p106 = por %p104, %p105
    %s108 = sadd.s32 %s107, 1
    %p111 = scmp.eq.s32.totalorder %s10, 3
    %p112 = scmp.ne.s32.totalorder %s107, %s109
    %p113 = scmp.eq.s32.totalorder %s10, 0
    %p114 = por %p112, %p113
    %p115 = scmp.ne.s32.totalorder %s107, %s109
    %p116 = scmp.eq.s32.totalorder %s15, 3
    %p117 = por %p115, %p116
    %p118 = scmp.ne.s32.totalorder %s109, %s110
    %p119 = scmp.eq.s32.totalorder %s15, 0
    %p120 = por %p118, %p119
    %p121 = scmp.ne.s32.totalorder %s109, %s110
    %p122 = scmp.eq.s32.totalorder %s16, 3
    %p123 = por %p121, %p122
    %p125 = scmp.ne.s32.totalorder %s110, %s124
    %p126 = scmp.eq.s32.totalorder %s16, 0
    %p127 = por %p125, %p126
    %s128 = ssub.s32 %s17, %s29
    %s129 = ssub.s32 %s18, %s25
    %s130 = sor.u32 %s128, %s129
    %p131 = scmp.eq.s32.totalorder %s130, 0
    %s133 = sadd.s32 %s132, 1
    %s134 = scalar_select %p131, %s132, %s133
    %p137 = pneg %p131
    %p138 = scmp.eq.s32.totalorder %s10, 3
    %p139 = por %p137, %p138
    %p140 = scmp.ne.s32.totalorder %s132, %s135
    %p141 = scmp.eq.s32.totalorder %s10, 0
    %p142 = por %p140, %p141
    %p143 = scmp.ne.s32.totalorder %s132, %s135
    %p144 = scmp.eq.s32.totalorder %s15, 3
    %p145 = por %p143, %p144
    %p146 = scmp.ne.s32.totalorder %s135, %s136
    %p147 = scmp.eq.s32.totalorder %s15, 0
    %p148 = por %p146, %p147
    %p149 = scmp.ne.s32.totalorder %s135, %s136
    %p150 = scmp.eq.s32.totalorder %s16, 3
    %p151 = por %p149, %p150
    %p153 = scmp.ne.s32.totalorder %s136, %s152
    %p154 = scmp.eq.s32.totalorder %s16, 0
    %p155 = por %p153, %p154
    %p156 = scmp.le.s32.totalorder 1, %s10
    %p157 = scmp.lt.s32.totalorder %s10, 5
    %p158 = pnand %p156, %p157
    %p159 = pneg %p158
    // Predicated region
    $region9: #{basic_block_e.5} parent=5 // pred_check
      _
    $region10: #{basic_block_e.5} parent=5 // pred_check_branch
      %161 = sbr.rel (%p158) target = $region12
    $region11: #{basic_block_e.5} parent=5 // pred_region
      %s162 = ssub.s32 %s10, 1
      // Predicated region
      $region13: #{basic_block_e.5} parent=11 // pred_check
        %p163 = pneg %p99
      $region14: #{basic_block_e.5} parent=11 // pred_check_branch
        %165 = sbr.rel (%p163) target = $region16
      $region15: #{basic_block_e.5} parent=11 // pred_region
        _
      $region16: #{basic_block_e.5} parent=11 // pred_fallthru
        _
      // Predicated region
      $region17: #{basic_block_e.5} parent=11 // pred_check
        %p166 = pneg %p120
      $region18: #{basic_block_e.5} parent=11 // pred_check_branch
        %168 = sbr.rel (%p166) target = $region20
      $region19: #{basic_block_e.5} parent=11 // pred_region
        _
      $region20: #{basic_block_e.5} parent=11 // pred_fallthru
        _
    $region12: #{basic_block_e.5} parent=5 // pred_fallthru
      _
    %p169 = scmp.lt.s32.totalorder %s10, 4
    // Predicated region
    $region21: #{basic_block_e.5} parent=5 // pred_check
      %p170 = pneg %p169
    $region22: #{basic_block_e.5} parent=5 // pred_check_branch
      %172 = sbr.rel (%p170) target = $region24
    $region23: #{basic_block_e.5} parent=5 // pred_region
      // Predicated region
      $region25: #{basic_block_e.5} parent=23 // pred_check
        %p173 = pneg %p44
      $region26: #{basic_block_e.5} parent=23 // pred_check_branch
        %175 = sbr.rel (%p173) target = $region28
      $region27: #{basic_block_e.5} parent=23 // pred_region
        %s176 = smul.u32 8, %s18
        %p177 = scmp.lt.s32.totalorder %s17, 1
        %s178 = scalar_select %p177, %s17, 1
        %p179 = scmp.lt.s32.totalorder %s176, 15
        %s180 = scalar_select %p179, %s176, 15
        %s181 = smul.addr %s180, 2
        %s182 = smul.addr %s178, 32
        %s183 = sadd.s32 %s181, %s182
        %s184 = smul.addr %s183, 8
        %s185 = scalar_lea.vmem %s0, %s184
        %s186 = smul.u32 8, %s18
      $region28: #{basic_block_e.5} parent=23 // pred_fallthru
        _
      // Predicated region
      $region29: #{basic_block_e.5} parent=23 // pred_check
        %p187 = pneg %p72
      $region30: #{basic_block_e.5} parent=23 // pred_check_branch
        %189 = sbr.rel (%p187) target = $region32
      $region31: #{basic_block_e.5} parent=23 // pred_region
        %s190 = smul.u32 8, %s18
        %p191 = scmp.lt.s32.totalorder %s17, 1
        %s192 = scalar_select %p191, %s17, 1
        %p193 = scmp.lt.s32.totalorder %s190, 15
        %s194 = scalar_select %p193, %s190, 15
        %s195 = smul.addr %s194, 2
        %s196 = smul.addr %s192, 32
        %s197 = sadd.s32 %s195, %s196
        %s198 = smul.addr %s197, 8
        %s199 = scalar_lea.vmem %s1, %s198
        %s200 = smul.u32 8, %s18
      $region32: #{basic_block_e.5} parent=23 // pred_fallthru
        _
    $region24: #{basic_block_e.5} parent=5 // pred_fallthru
      _
    %p201 = scmp.le.s32.totalorder 1, %s10
    %p202 = scmp.lt.s32.totalorder %s10, 5
    %p203 = pnand %p201, %p202
    %p204 = pneg %p203
    // Predicated region
    $region33: #{basic_block_e.5} parent=5 // pred_check
      _
    $region34: #{basic_block_e.5} parent=5 // pred_check_branch
      %206 = sbr.rel (%p203) target = $region36
    $region35: #{basic_block_e.5} parent=5 // pred_region
      %s207 = ssub.s32 %s10, 1
      %s208 = smul.u32 8, %s20
      %p209 = scmp.lt.s32.totalorder %s19, 1
      %s210 = scalar_select %p209, %s19, 1
      %p211 = scmp.lt.s32.totalorder %s208, 15
      %s212 = scalar_select %p211, %s208, 15
      %s213 = smul.addr %s212, 2
      %s214 = smul.addr %s210, 32
      %s215 = sadd.s32 %s213, %s214
      %s216 = smul.addr %s215, 8
      %s217 = scalar_lea.vmem %s0, %s216
      %p218 = pneg %p50
      %p219 = pneg %p47
      %s220 = smul.u32 8, %s20
      %p221 = scmp.lt.s32.totalorder %s19, 1
      %s222 = scalar_select %p221, %s19, 1
      %p223 = scmp.lt.s32.totalorder %s220, 15
      %s224 = scalar_select %p223, %s220, 15
      %s225 = smul.addr %s224, 2
      %s226 = smul.addr %s222, 32
      %s227 = sadd.s32 %s225, %s226
      %s228 = smul.addr %s227, 8
      %s229 = scalar_lea.vmem %s1, %s228
      %p230 = pneg %p78
      %p231 = pneg %p75
      %p232 = pneg %p99
      %p233 = pneg %p96
      %p234 = pneg %p120
      %p235 = pneg %p117
      %p236 = pneg %p148
      %p237 = pneg %p145
      %s238 = smul.u32 8, %s20
      %p239 = scmp.lt.s32.totalorder %s19, 1
      %s240 = scalar_select %p239, %s19, 1
      %p241 = scmp.lt.s32.totalorder %s238, 15
      %s242 = scalar_select %p241, %s238, 15
      %s243 = smul.addr %s242, 2
      %s244 = smul.addr %s240, 32
      %s245 = sadd.s32 %s243, %s244
      %s246 = smul.addr %s245, 8
      %s247 = scalar_lea.vmem %s4, %s246
      %s248 = smul.u32 8, %s20
      %p249 = scmp.lt.s32.totalorder %s19, 1
      %s250 = scalar_select %p249, %s19, 1
      %p251 = scmp.lt.s32.totalorder %s248, 15
      %s252 = scalar_select %p251, %s248, 15
      %s253 = smul.addr %s252, 2
      %s254 = smul.addr %s250, 32
      %s255 = sadd.s32 %s253, %s254
      %s256 = smul.addr %s255, 8
      %s257 = scalar_lea.vmem %s0, %s256
      %s258 = smul.u32 8, %s20
      %s259 = smul.u32 8, %s20
      %p260 = scmp.lt.s32.totalorder %s19, 1
      %s261 = scalar_select %p260, %s19, 1
      %p262 = scmp.lt.s32.totalorder %s259, 15
      %s263 = scalar_select %p262, %s259, 15
      %s264 = smul.addr %s263, 2
      %s265 = smul.addr %s261, 32
      %s266 = sadd.s32 %s264, %s265
      %s267 = smul.addr %s266, 8
      %s268 = scalar_lea.vmem %s1, %s267
      %s269 = smul.u32 8, %s20
      %s270 = smul.u32 8, %s20
      %p271 = scmp.lt.s32.totalorder %s19, 1
      %s272 = scalar_select %p271, %s19, 1
      %p273 = scmp.lt.s32.totalorder %s270, 15
      %s274 = scalar_select %p273, %s270, 15
      %s275 = smul.addr %s274, 2
      %s276 = smul.addr %s272, 32
      %s277 = sadd.s32 %s275, %s276
      %s278 = smul.addr %s277, 8
      %s279 = scalar_lea.vmem %s4, %s278
      %s280 = smul.u32 8, %s20
      %v281 = vld [vmem:[%s2] sm:$0x1]
      %v282 = vld [vmem:[%s3] sm:$0x1]
      %v283 = vld [vmem:[%s268] sm:$0xff]
      %v284 = vld [vmem:[%s268 + $0x8] sm:$0xff]
      %v285 = vld [vmem:[%s268 + $0x10] sm:$0xff]
      %v286 = vld [vmem:[%s268 + $0x18] sm:$0xff]
      %v287 = vld [vmem:[%s268 + $0x20] sm:$0xff]
      %v288 = vld [vmem:[%s268 + $0x28] sm:$0xff]
      %v289 = vld [vmem:[%s268 + $0x30] sm:$0xff]
      %v290 = vld [vmem:[%s268 + $0x38] sm:$0xff]
      %v291 = vld [vmem:[%s268 + $0x40] sm:$0xff]
      %v292 = vld [vmem:[%s268 + $0x48] sm:$0xff]
      %v293 = vld [vmem:[%s268 + $0x50] sm:$0xff]
      %v294 = vld [vmem:[%s268 + $0x58] sm:$0xff]
      %v295 = vld [vmem:[%s268 + $0x60] sm:$0xff]
      %v296 = vld [vmem:[%s268 + $0x68] sm:$0xff]
      %v297 = vld [vmem:[%s268 + $0x70] sm:$0xff]
      %v298 = vld [vmem:[%s268 + $0x78] sm:$0xff]
      %v300 = vlaneseq
      %v301 = vshrl.u32 %v300, 7
      %v302 = vsub.s32 0, %v301
      %v303 = vrot.slane %v281, %v302
      %v305 = vmul.f32 %v283, %v303
      %v306 = vmul.f32 %v284, %v303
      %v307 = vmul.f32 %v285, %v303
      %v308 = vmul.f32 %v286, %v303
      %v309 = vmul.f32 %v287, %v303
      %v310 = vmul.f32 %v288, %v303
      %v311 = vmul.f32 %v289, %v303
      %v312 = vmul.f32 %v290, %v303
      %v313 = vmul.f32 %v291, %v303
      %v314 = vmul.f32 %v292, %v303
      %v315 = vmul.f32 %v293, %v303
      %v316 = vmul.f32 %v294, %v303
      %v317 = vmul.f32 %v295, %v303
      %v318 = vmul.f32 %v296, %v303
      %v319 = vmul.f32 %v297, %v303
      %v320 = vmul.f32 %v298, %v303
      %v322 = vlaneseq
      %v323 = vshrl.u32 %v322, 7
      %v324 = vsub.s32 0, %v323
      %v325 = vrot.slane %v282, %v324
      %v327 = vadd.f32 %v305, %v325
      %v328 = vadd.f32 %v306, %v325
      %v329 = vadd.f32 %v307, %v325
      %v330 = vadd.f32 %v308, %v325
      %v331 = vadd.f32 %v309, %v325
      %v332 = vadd.f32 %v310, %v325
      %v333 = vadd.f32 %v311, %v325
      %v334 = vadd.f32 %v312, %v325
      %v335 = vadd.f32 %v313, %v325
      %v336 = vadd.f32 %v314, %v325
      %v337 = vadd.f32 %v315, %v325
      %v338 = vadd.f32 %v316, %v325
      %v339 = vadd.f32 %v317, %v325
      %v340 = vadd.f32 %v318, %v325
      %v341 = vadd.f32 %v319, %v325
      %v342 = vadd.f32 %v320, %v325
      %v343 = vld [vmem:[%s257] sm:$0xff]
      %v344 = vld [vmem:[%s257 + $0x8] sm:$0xff]
      %v345 = vld [vmem:[%s257 + $0x10] sm:$0xff]
      %v346 = vld [vmem:[%s257 + $0x18] sm:$0xff]
      %v347 = vld [vmem:[%s257 + $0x20] sm:$0xff]
      %v348 = vld [vmem:[%s257 + $0x28] sm:$0xff]
      %v349 = vld [vmem:[%s257 + $0x30] sm:$0xff]
      %v350 = vld [vmem:[%s257 + $0x38] sm:$0xff]
      %v351 = vld [vmem:[%s257 + $0x40] sm:$0xff]
      %v352 = vld [vmem:[%s257 + $0x48] sm:$0xff]
      %v353 = vld [vmem:[%s257 + $0x50] sm:$0xff]
      %v354 = vld [vmem:[%s257 + $0x58] sm:$0xff]
      %v355 = vld [vmem:[%s257 + $0x60] sm:$0xff]
      %v356 = vld [vmem:[%s257 + $0x68] sm:$0xff]
      %v357 = vld [vmem:[%s257 + $0x70] sm:$0xff]
      %v358 = vld [vmem:[%s257 + $0x78] sm:$0xff]
      %v359 = vadd.f32 %v327, %v343
      %v360 = vadd.f32 %v328, %v344
      %v361 = vadd.f32 %v329, %v345
      %v362 = vadd.f32 %v330, %v346
      %v363 = vadd.f32 %v331, %v347
      %v364 = vadd.f32 %v332, %v348
      %v365 = vadd.f32 %v333, %v349
      %v366 = vadd.f32 %v334, %v350
      %v367 = vadd.f32 %v335, %v351
      %v368 = vadd.f32 %v336, %v352
      %v369 = vadd.f32 %v337, %v353
      %v370 = vadd.f32 %v338, %v354
      %v371 = vadd.f32 %v339, %v355
      %v372 = vadd.f32 %v340, %v356
      %v373 = vadd.f32 %v341, %v357
      %v374 = vadd.f32 %v342, %v358
      %v375 = vmax.f32 %v359, 0.0
      %v376 = vmax.f32 %v360, 0.0
      %v377 = vmax.f32 %v361, 0.0
      %v378 = vmax.f32 %v362, 0.0
      %v379 = vmax.f32 %v363, 0.0
      %v380 = vmax.f32 %v364, 0.0
      %v381 = vmax.f32 %v365, 0.0
      %v382 = vmax.f32 %v366, 0.0
      %v383 = vmax.f32 %v367, 0.0
      %v384 = vmax.f32 %v368, 0.0
      %v385 = vmax.f32 %v369, 0.0
      %v386 = vmax.f32 %v370, 0.0
      %v387 = vmax.f32 %v371, 0.0
      %v388 = vmax.f32 %v372, 0.0
      %v389 = vmax.f32 %v373, 0.0
      %v390 = vmax.f32 %v374, 0.0
      %391 = vst [vmem:[%s279] sm:$0xff] %v375
      %392 = vst [vmem:[%s279 + $0x8] sm:$0xff] %v376
      %393 = vst [vmem:[%s279 + $0x10] sm:$0xff] %v377
      %394 = vst [vmem:[%s279 + $0x18] sm:$0xff] %v378
      %395 = vst [vmem:[%s279 + $0x20] sm:$0xff] %v379
      %396 = vst [vmem:[%s279 + $0x28] sm:$0xff] %v380
      %397 = vst [vmem:[%s279 + $0x30] sm:$0xff] %v381
      %398 = vst [vmem:[%s279 + $0x38] sm:$0xff] %v382
      %399 = vst [vmem:[%s279 + $0x40] sm:$0xff] %v383
      %400 = vst [vmem:[%s279 + $0x48] sm:$0xff] %v384
      %401 = vst [vmem:[%s279 + $0x50] sm:$0xff] %v385
      %402 = vst [vmem:[%s279 + $0x58] sm:$0xff] %v386
      %403 = vst [vmem:[%s279 + $0x60] sm:$0xff] %v387
      %404 = vst [vmem:[%s279 + $0x68] sm:$0xff] %v388
      %405 = vst [vmem:[%s279 + $0x70] sm:$0xff] %v389
      %406 = vst [vmem:[%s279 + $0x78] sm:$0xff] %v390
      %s407 = smul.u32 8, %s20
      %p408 = scmp.lt.s32.totalorder %s19, 1
      %s409 = scalar_select %p408, %s19, 1
      %p410 = scmp.lt.s32.totalorder %s407, 15
      %s411 = scalar_select %p410, %s407, 15
      %s412 = smul.addr %s411, 2
      %s413 = smul.addr %s409, 32
      %s414 = sadd.s32 %s412, %s413
      %s415 = smul.addr %s414, 8
      %s416 = scalar_lea.vmem %s4, %s415
      // Predicated region
      $region37: #{basic_block_e.5} parent=35 // pred_check
        %p417 = pneg %p145
      $region38: #{basic_block_e.5} parent=35 // pred_check_branch
        %419 = sbr.rel (%p417) target = $region40
      $region39: #{basic_block_e.5} parent=35 // pred_region
        %s420 = smul.u32 8, %s20
      $region40: #{basic_block_e.5} parent=35 // pred_fallthru
        _
    $region36: #{basic_block_e.5} parent=5 // pred_fallthru
      _
    %p421 = scmp.le.s32.totalorder 2, %s10
    // Predicated region
    $region41: #{basic_block_e.5} parent=5 // pred_check
      %p422 = pneg %p421
    $region42: #{basic_block_e.5} parent=5 // pred_check_branch
      %424 = sbr.rel (%p422) target = $region44
    $region43: #{basic_block_e.5} parent=5 // pred_region
      %s425 = ssub.s32 %s10, 2
      // Predicated region
      $region45: #{basic_block_e.5} parent=43 // pred_check
        %p426 = pneg %p151
      $region46: #{basic_block_e.5} parent=43 // pred_check_branch
        %428 = sbr.rel (%p426) target = $region48
      $region47: #{basic_block_e.5} parent=43 // pred_region
        %s429 = smul.u32 8, %s22
        %p430 = scmp.lt.s32.totalorder %s21, 1
        %s431 = scalar_select %p430, %s21, 1
        %p432 = scmp.lt.s32.totalorder %s429, 15
        %s433 = scalar_select %p432, %s429, 15
        %s434 = smul.addr %s433, 2
        %s435 = smul.addr %s431, 32
        %s436 = sadd.s32 %s434, %s435
        %s437 = smul.addr %s436, 8
        %s438 = scalar_lea.vmem %s4, %s437
      $region48: #{basic_block_e.5} parent=43 // pred_fallthru
        _
    $region44: #{basic_block_e.5} parent=5 // pred_fallthru
      _
  $region6: #{basic_block_e.5} parent=0 // loop_footer
    %s14 = sadd.s32 1, %s10
  $region7: #{basic_block_e.5} parent=0 // loop_footer_branch
    %9 = sbr.rel target = $region3
  $region8: #{basic_block_e.5} parent=0 // loop_exit
    _

// kernel: basic_block_e.3
$region0: #{basic_block_e.3}
  #allocation0 [shape = 'u32[]', space=smem, size = 0x4, offset = 0x4, fixed_abs, tag = 'smem constant byte address 0x4 - core index']
  #allocation1 [shape = 'u32[144,128]{1,0:T(1,128)}', space=vmem, size = 0x12000, scoped, tag = 'internal scratch']
  #allocation2 [shape = 'f32[128,1152]{1,0:T(8,128)}', space=vmem, size = 0x90000, scoped, tag = 'scratch operand']
  %s0 = inlined_call_operand.vmem [shape: f32[2,18,18,128], index: 0, kind: input, shape index: {}, may-alias: {0,1,2}]
  %s1 = inlined_call_operand.vmem [shape: f32[2,18,18,128], index: 1, kind: input, shape index: {}, may-alias: {0,1,2}]
  %s2 = inlined_call_operand.vmem [shape: f32[2,18,18,128], index: 2, kind: input, shape index: {}, may-alias: {0,1,2}]
  %s3 = inlined_call_operand.vmem [shape: f32[1152,128], index: 3, kind: input, shape index: {}]
  %s4 = inlined_call_operand.vmem [shape: f32[2,16,16,128], index: 4, kind: output, shape index: {0}]
  %s5 = inlined_call_operand.vmem [shape: f32[2,2,2,128], index: 5, kind: output, shape index: {1}]
  %6 = xla_tuple %s4, %s5
  %s7 = sld [smem:[#allocation0]]
  $region57: #{basic_block_e.3} parent=0
    _
  %s9 = ssub.s32 1, %s7
  %s10 = scalar_select 0, %s9, %s7
  loop: start=0, step=1, limit=6
  $region2: #{basic_block_e.3} parent=0 // loop_pre_header
    _
  $region3: #{basic_block_e.3} parent=0 // loop_header
    %s12 = sphi 0, %s16
    %p13 = scmp.ge.s32.totalorder %s12, 6
    %s19 = sphi 0, %s31
    %s20 = sphi 0, %s27
    %s21 = sphi 0, %s19
    %s22 = sphi 0, %s20
    %s23 = sphi 0, %s21
    %s24 = sphi 0, %s22
    %s36 = sphi 0, %s38
    %s39 = sphi 0, %s36
    %s40 = sphi 0, %s39
    %s56 = sphi 0, %s40
    %s68 = sphi 0, %s70
    %s71 = sphi 0, %s68
    %s72 = sphi 0, %s71
    %s88 = sphi 0, %s72
    %s102 = sphi 0, %s104
    %s105 = sphi 0, %s102
    %s106 = sphi 0, %s105
    %s122 = sphi 0, %s106
    %s126 = sphi 0, %s126
    %s128 = sphi 0, %s126
    %s129 = sphi 0, %s128
    %s143 = sphi 0, %s129
    %s151 = sphi 0, %s153
    %s154 = sphi 0, %s151
    %s155 = sphi 0, %s154
    %s171 = sphi 0, %s155
    %s179 = sphi 0, %s181
    %s182 = sphi 0, %s179
    %s183 = sphi 0, %s182
    %s199 = sphi 0, %s183
  $region4: #{basic_block_e.3} parent=0 // loop_header_branch
    %15 = sbr.rel (%p13) target = $region8
  $region5: #{basic_block_e.3} parent=0 // loop_body
    %s17 = ssub.s32 %s12, 1
    %s18 = ssub.s32 %s12, 2
    %s25 = sadd.s32 1, %s20
    %p26 = scmp.ge.s32.totalorder %s25, 2
    %s27 = scalar_select %p26, 0, %s25
    %s28 = sadd.s32 1, %s19
    %s29 = scalar_select %p26, %s28, %s19
    %p30 = scmp.ge.s32.totalorder %s29, 2
    %s31 = scalar_select %p30, 0, %s29
    %s32 = ssub.s32 %s19, %s31
    %s33 = ssub.s32 %s20, %s27
    %s34 = sor.u32 %s32, %s33
    %p35 = scmp.eq.s32.totalorder %s34, 0
    %s37 = sadd.s32 %s36, 1
    %s38 = scalar_select %p35, %s36, %s37
    %p41 = pneg %p35
    %p42 = scmp.eq.s32.totalorder %s12, 3
    %p43 = por %p41, %p42
    %p44 = scmp.ne.s32.totalorder %s36, %s39
    %p45 = scmp.eq.s32.totalorder %s12, 0
    %p46 = por %p44, %p45
    %p47 = scmp.ne.s32.totalorder %s36, %s39
    %p48 = scmp.eq.s32.totalorder %s17, 3
    %p49 = por %p47, %p48
    %p50 = scmp.ne.s32.totalorder %s39, %s40
    %p51 = scmp.eq.s32.totalorder %s17, 0
    %p52 = por %p50, %p51
    %p53 = scmp.ne.s32.totalorder %s39, %s40
    %p54 = scmp.eq.s32.totalorder %s18, 3
    %p55 = por %p53, %p54
    %p57 = scmp.ne.s32.totalorder %s40, %s56
    %p58 = scmp.eq.s32.totalorder %s18, 0
    %p59 = por %p57, %p58
    %s60 = sadd.s32 %s20, 1
    %s61 = smul.u32 %s60, 8
    %s62 = sadd.s32 %s27, 1
    %s63 = smul.u32 %s62, 8
    %s64 = ssub.s32 %s19, %s31
    %s65 = ssub.s32 %s61, %s63
    %s66 = sor.u32 %s64, %s65
    %p67 = scmp.eq.s32.totalorder %s66, 0
    %s69 = sadd.s32 %s68, 1
    %s70 = scalar_select %p67, %s68, %s69
    %p73 = pneg %p67
    %p74 = scmp.eq.s32.totalorder %s12, 3
    %p75 = por %p73, %p74
    %p76 = scmp.ne.s32.totalorder %s68, %s71
    %p77 = scmp.eq.s32.totalorder %s12, 0
    %p78 = por %p76, %p77
    %p79 = scmp.ne.s32.totalorder %s68, %s71
    %p80 = scmp.eq.s32.totalorder %s17, 3
    %p81 = por %p79, %p80
    %p82 = scmp.ne.s32.totalorder %s71, %s72
    %p83 = scmp.eq.s32.totalorder %s17, 0
    %p84 = por %p82, %p83
    %p85 = scmp.ne.s32.totalorder %s71, %s72
    %p86 = scmp.eq.s32.totalorder %s18, 3
    %p87 = por %p85, %p86
    %p89 = scmp.ne.s32.totalorder %s72, %s88
    %p90 = scmp.eq.s32.totalorder %s18, 0
    %p91 = por %p89, %p90
    %s92 = sadd.s32 %s20, 1
    %s93 = smul.u32 %s92, 8
    %s94 = sadd.s32 %s93, 1
    %s95 = sadd.s32 %s27, 1
    %s96 = smul.u32 %s95, 8
    %s97 = sadd.s32 %s96, 1
    %s98 = ssub.s32 %s19, %s31
    %s99 = ssub.s32 %s94, %s97
    %s100 = sor.u32 %s98, %s99
    %p101 = scmp.eq.s32.totalorder %s100, 0
    %s103 = sadd.s32 %s102, 1
    %s104 = scalar_select %p101, %s102, %s103
    %p107 = pneg %p101
    %p108 = scmp.eq.s32.totalorder %s12, 3
    %p109 = por %p107, %p108
    %p110 = scmp.ne.s32.totalorder %s102, %s105
    %p111 = scmp.eq.s32.totalorder %s12, 0
    %p112 = por %p110, %p111
    %p113 = scmp.ne.s32.totalorder %s102, %s105
    %p114 = scmp.eq.s32.totalorder %s17, 3
    %p115 = por %p113, %p114
    %p116 = scmp.ne.s32.totalorder %s105, %s106
    %p117 = scmp.eq.s32.totalorder %s17, 0
    %p118 = por %p116, %p117
    %p119 = scmp.ne.s32.totalorder %s105, %s106
    %p120 = scmp.eq.s32.totalorder %s18, 3
    %p121 = por %p119, %p120
    %p123 = scmp.ne.s32.totalorder %s106, %s122
    %p124 = scmp.eq.s32.totalorder %s18, 0
    %p125 = por %p123, %p124
    %s127 = sadd.s32 %s126, 1
    %p130 = scmp.eq.s32.totalorder %s12, 3
    %p131 = scmp.ne.s32.totalorder %s126, %s128
    %p132 = scmp.eq.s32.totalorder %s12, 0
    %p133 = por %p131, %p132
    %p134 = scmp.ne.s32.totalorder %s126, %s128
    %p135 = scmp.eq.s32.totalorder %s17, 3
    %p136 = por %p134, %p135
    %p137 = scmp.ne.s32.totalorder %s128, %s129
    %p138 = scmp.eq.s32.totalorder %s17, 0
    %p139 = por %p137, %p138
    %p140 = scmp.ne.s32.totalorder %s128, %s129
    %p141 = scmp.eq.s32.totalorder %s18, 3
    %p142 = por %p140, %p141
    %p144 = scmp.ne.s32.totalorder %s129, %s143
    %p145 = scmp.eq.s32.totalorder %s18, 0
    %p146 = por %p144, %p145
    %s147 = ssub.s32 %s19, %s31
    %s148 = ssub.s32 %s20, %s27
    %s149 = sor.u32 %s147, %s148
    %p150 = scmp.eq.s32.totalorder %s149, 0
    %s152 = sadd.s32 %s151, 1
    %s153 = scalar_select %p150, %s151, %s152
    %p156 = pneg %p150
    %p157 = scmp.eq.s32.totalorder %s12, 3
    %p158 = por %p156, %p157
    %p159 = scmp.ne.s32.totalorder %s151, %s154
    %p160 = scmp.eq.s32.totalorder %s12, 0
    %p161 = por %p159, %p160
    %p162 = scmp.ne.s32.totalorder %s151, %s154
    %p163 = scmp.eq.s32.totalorder %s17, 3
    %p164 = por %p162, %p163
    %p165 = scmp.ne.s32.totalorder %s154, %s155
    %p166 = scmp.eq.s32.totalorder %s17, 0
    %p167 = por %p165, %p166
    %p168 = scmp.ne.s32.totalorder %s154, %s155
    %p169 = scmp.eq.s32.totalorder %s18, 3
    %p170 = por %p168, %p169
    %p172 = scmp.ne.s32.totalorder %s155, %s171
    %p173 = scmp.eq.s32.totalorder %s18, 0
    %p174 = por %p172, %p173
    %s175 = ssub.s32 %s19, %s31
    %s176 = ssub.s32 %s20, %s27
    %s177 = sor.u32 %s175, %s176
    %p178 = scmp.eq.s32.totalorder %s177, 0
    %s180 = sadd.s32 %s179, 1
    %s181 = scalar_select %p178, %s179, %s180
    %p184 = pneg %p178
    %p185 = scmp.eq.s32.totalorder %s12, 3
    %p186 = por %p184, %p185
    %p187 = scmp.ne.s32.totalorder %s179, %s182
    %p188 = scmp.eq.s32.totalorder %s12, 0
    %p189 = por %p187, %p188
    %p190 = scmp.ne.s32.totalorder %s179, %s182
    %p191 = scmp.eq.s32.totalorder %s17, 3
    %p192 = por %p190, %p191
    %p193 = scmp.ne.s32.totalorder %s182, %s183
    %p194 = scmp.eq.s32.totalorder %s17, 0
    %p195 = por %p193, %p194
    %p196 = scmp.ne.s32.totalorder %s182, %s183
    %p197 = scmp.eq.s32.totalorder %s18, 3
    %p198 = por %p196, %p197
    %p200 = scmp.ne.s32.totalorder %s183, %s199
    %p201 = scmp.eq.s32.totalorder %s18, 0
    %p202 = por %p200, %p201
    %p203 = scmp.le.s32.totalorder 1, %s12
    %p204 = scmp.lt.s32.totalorder %s12, 5
    %p205 = pnand %p203, %p204
    %p206 = pneg %p205
    // Predicated region
    $region9: #{basic_block_e.3} parent=5 // pred_check
      _
    $region10: #{basic_block_e.3} parent=5 // pred_check_branch
      %208 = sbr.rel (%p205) target = $region12
    $region11: #{basic_block_e.3} parent=5 // pred_region
      %s209 = ssub.s32 %s12, 1
      // Predicated region
      $region13: #{basic_block_e.3} parent=11 // pred_check
        %p210 = pneg %p139
      $region14: #{basic_block_e.3} parent=11 // pred_check_branch
        %212 = sbr.rel (%p210) target = $region16
      $region15: #{basic_block_e.3} parent=11 // pred_region
        _
      $region16: #{basic_block_e.3} parent=11 // pred_fallthru
        _
    $region12: #{basic_block_e.3} parent=5 // pred_fallthru
      _
    %p213 = scmp.lt.s32.totalorder %s12, 4
    // Predicated region
    $region17: #{basic_block_e.3} parent=5 // pred_check
      %p214 = pneg %p213
    $region18: #{basic_block_e.3} parent=5 // pred_check_branch
      %216 = sbr.rel (%p214) target = $region20
    $region19: #{basic_block_e.3} parent=5 // pred_region
      // Predicated region
      $region21: #{basic_block_e.3} parent=19 // pred_check
        %p217 = pneg %p46
      $region22: #{basic_block_e.3} parent=19 // pred_check_branch
        %219 = sbr.rel (%p217) target = $region24
      $region23: #{basic_block_e.3} parent=19 // pred_region
        %s220 = smul.u32 8, %s20
        %s221 = ssub.s32 18, %s220
        %p222 = scmp.lt.s32.totalorder %s221, 8
        %s223 = scalar_select %p222, %s221, 8
        %s224 = smul.u32 128, %s223
        %s225 = smul.u32 %s224, 3
        %p226 = scmp.lt.s32.totalorder %s19, 1
        %s227 = scalar_select %p226, %s19, 1
        %p228 = scmp.lt.s32.totalorder %s220, 17
        %s229 = scalar_select %p228, %s220, 17
        %s230 = smul.addr %s229, 3
        %s231 = smul.addr %s227, 54
        %s232 = sadd.s32 %s230, %s231
        %s233 = smul.addr %s232, 8
        %s234 = scalar_lea.vmem %s0, %s233
        %s235 = smul.u32 8, %s20
        %s236 = ssub.s32 18, %s235
        %p237 = scmp.lt.s32.totalorder %s236, 8
        %s238 = scalar_select %p237, %s236, 8
        %s239 = smul.u32 128, %s238
        %s240 = smul.u32 %s239, 3
      $region24: #{basic_block_e.3} parent=19 // pred_fallthru
        _
      // Predicated region
      $region25: #{basic_block_e.3} parent=19 // pred_check
        %p241 = pneg %p78
      $region26: #{basic_block_e.3} parent=19 // pred_check_branch
        %243 = sbr.rel (%p241) target = $region28
      $region27: #{basic_block_e.3} parent=19 // pred_region
        %s244 = sadd.s32 %s20, 1
        %s245 = smul.u32 %s244, 8
        %p246 = scmp.lt.s32.totalorder %s19, 1
        %s247 = scalar_select %p246, %s19, 1
        %p248 = scmp.lt.s32.totalorder %s245, 17
        %s249 = scalar_select %p248, %s245, 17
        %s250 = smul.addr %s249, 3
        %s251 = smul.addr %s247, 54
        %s252 = sadd.s32 %s250, %s251
        %s253 = smul.addr %s252, 8
        %s254 = scalar_lea.vmem %s1, %s253
        %s255 = sadd.s32 %s20, 1
        %s256 = smul.u32 %s255, 8
      $region28: #{basic_block_e.3} parent=19 // pred_fallthru
        _
      // Predicated region
      $region29: #{basic_block_e.3} parent=19 // pred_check
        %p257 = pneg %p112
      $region30: #{basic_block_e.3} parent=19 // pred_check_branch
        %259 = sbr.rel (%p257) target = $region32
      $region31: #{basic_block_e.3} parent=19 // pred_region
        %s260 = sadd.s32 %s20, 1
        %s261 = smul.u32 %s260, 8
        %s262 = sadd.s32 %s261, 1
        %p263 = scmp.lt.s32.totalorder %s19, 1
        %s264 = scalar_select %p263, %s19, 1
        %p265 = scmp.lt.s32.totalorder %s262, 17
        %s266 = scalar_select %p265, %s262, 17
        %s267 = smul.addr %s266, 3
        %s268 = smul.addr %s264, 54
        %s269 = sadd.s32 %s267, %s268
        %s270 = smul.addr %s269, 8
        %s271 = scalar_lea.vmem %s2, %s270
        %s272 = sadd.s32 %s20, 1
        %s273 = smul.u32 %s272, 8
        %s274 = sadd.s32 %s273, 1
      $region32: #{basic_block_e.3} parent=19 // pred_fallthru
        _
    $region20: #{basic_block_e.3} parent=5 // pred_fallthru
      _
    %p275 = scmp.le.s32.totalorder 1, %s12
    %p276 = scmp.lt.s32.totalorder %s12, 5
    %p277 = pnand %p275, %p276
    %p278 = pneg %p277
    // Predicated region
    $region33: #{basic_block_e.3} parent=5 // pred_check
      _
    $region34: #{basic_block_e.3} parent=5 // pred_check_branch
      %280 = sbr.rel (%p277) target = $region36
    $region35: #{basic_block_e.3} parent=5 // pred_region
      %s281 = ssub.s32 %s12, 1
      %s282 = smul.u32 8, %s22
      %s283 = ssub.s32 18, %s282
      %p284 = scmp.lt.s32.totalorder %s283, 8
      %s285 = scalar_select %p284, %s283, 8
      %s286 = smul.u32 128, %s285
      %s287 = smul.u32 %s286, 3
      %p288 = scmp.lt.s32.totalorder %s21, 1
      %s289 = scalar_select %p288, %s21, 1
      %p290 = scmp.lt.s32.totalorder %s282, 17
      %s291 = scalar_select %p290, %s282, 17
      %s292 = smul.addr %s291, 3
      %s293 = smul.addr %s289, 54
      %s294 = sadd.s32 %s292, %s293
      %s295 = smul.addr %s294, 8
      %s296 = scalar_lea.vmem %s0, %s295
      %p297 = pneg %p52
      %p298 = pneg %p49
      %s299 = sadd.s32 %s22, 1
      %s300 = smul.u32 %s299, 8
      %p301 = scmp.lt.s32.totalorder %s21, 1
      %s302 = scalar_select %p301, %s21, 1
      %p303 = scmp.lt.s32.totalorder %s300, 17
      %s304 = scalar_select %p303, %s300, 17
      %s305 = smul.addr %s304, 3
      %s306 = smul.addr %s302, 54
      %s307 = sadd.s32 %s305, %s306
      %s308 = smul.addr %s307, 8
      %s309 = scalar_lea.vmem %s1, %s308
      %p310 = pneg %p84
      %p311 = pneg %p81
      %s312 = sadd.s32 %s22, 1
      %s313 = smul.u32 %s312, 8
      %s314 = sadd.s32 %s313, 1
      %p315 = scmp.lt.s32.totalorder %s21, 1
      %s316 = scalar_select %p315, %s21, 1
      %p317 = scmp.lt.s32.totalorder %s314, 17
      %s318 = scalar_select %p317, %s314, 17
      %s319 = smul.addr %s318, 3
      %s320 = smul.addr %s316, 54
      %s321 = sadd.s32 %s319, %s320
      %s322 = smul.addr %s321, 8
      %s323 = scalar_lea.vmem %s2, %s322
      %p324 = pneg %p118
      %p325 = pneg %p115
      %p326 = pneg %p139
      %p327 = pneg %p136
      %p328 = pneg %p167
      %p329 = pneg %p164
      %s330 = smul.u32 8, %s22
      %p331 = scmp.lt.s32.totalorder %s21, 1
      %s332 = scalar_select %p331, %s21, 1
      %p333 = scmp.lt.s32.totalorder %s330, 15
      %s334 = scalar_select %p333, %s330, 15
      %s335 = smul.addr %s334, 2
      %s336 = smul.addr %s332, 32
      %s337 = sadd.s32 %s335, %s336
      %s338 = smul.addr %s337, 8
      %s339 = scalar_lea.vmem %s4, %s338
      %p340 = pneg %p195
      %p341 = pneg %p192
      %p342 = scmp.lt.s32.totalorder %s21, 1
      %s343 = scalar_select %p342, %s21, 1
      %p344 = scmp.lt.s32.totalorder %s22, 1
      %s345 = scalar_select %p344, %s22, 1
      %s346 = smul.addr %s343, 2
      %s347 = sadd.s32 %s345, %s346
      %s348 = smul.addr %s347, 2
      %s349 = scalar_lea.vmem %s5, %s348
      %s350 = smul.u32 8, %s22
      %s351 = ssub.s32 18, %s350
      %p352 = scmp.lt.s32.totalorder %s351, 8
      %s353 = scalar_select %p352, %s351, 8
      %s354 = smul.u32 128, %s353
      %s355 = smul.u32 %s354, 3
      %p356 = scmp.lt.s32.totalorder %s21, 1
      %s357 = scalar_select %p356, %s21, 1
      %p358 = scmp.lt.s32.totalorder %s350, 17
      %s359 = scalar_select %p358, %s350, 17
      %s360 = smul.addr %s359, 3
      %s361 = smul.addr %s357, 54
      %s362 = sadd.s32 %s360, %s361
      %s363 = smul.addr %s362, 8
      %s364 = scalar_lea.vmem %s0, %s363
      %s365 = smul.u32 8, %s22
      %s366 = ssub.s32 18, %s365
      %p367 = scmp.lt.s32.totalorder %s366, 8
      %s368 = scalar_select %p367, %s366, 8
      %s369 = smul.u32 128, %s368
      %s370 = smul.u32 %s369, 3
      %s371 = sadd.s32 %s22, 1
      %s372 = smul.u32 %s371, 8
      %p373 = scmp.lt.s32.totalorder %s21, 1
      %s374 = scalar_select %p373, %s21, 1
      %p375 = scmp.lt.s32.totalorder %s372, 17
      %s376 = scalar_select %p375, %s372, 17
      %s377 = smul.addr %s376, 3
      %s378 = smul.addr %s374, 54
      %s379 = sadd.s32 %s377, %s378
      %s380 = smul.addr %s379, 8
      %s381 = scalar_lea.vmem %s1, %s380
      %s382 = sadd.s32 %s22, 1
      %s383 = smul.u32 %s382, 8
      %s384 = sadd.s32 %s22, 1
      %s385 = smul.u32 %s384, 8
      %s386 = sadd.s32 %s385, 1
      %p387 = scmp.lt.s32.totalorder %s21, 1
      %s388 = scalar_select %p387, %s21, 1
      %p389 = scmp.lt.s32.totalorder %s386, 17
      %s390 = scalar_select %p389, %s386, 17
      %s391 = smul.addr %s390, 3
      %s392 = smul.addr %s388, 54
      %s393 = sadd.s32 %s391, %s392
      %s394 = smul.addr %s393, 8
      %s395 = scalar_lea.vmem %s2, %s394
      %s396 = sadd.s32 %s22, 1
      %s397 = smul.u32 %s396, 8
      %s398 = sadd.s32 %s397, 1
      %s399 = smul.u32 8, %s22
      %p400 = scmp.lt.s32.totalorder %s21, 1
      %s401 = scalar_select %p400, %s21, 1
      %p402 = scmp.lt.s32.totalorder %s399, 15
      %s403 = scalar_select %p402, %s399, 15
      %s404 = smul.addr %s403, 2
      %s405 = smul.addr %s401, 32
      %s406 = sadd.s32 %s404, %s405
      %s407 = smul.addr %s406, 8
      %s408 = scalar_lea.vmem %s4, %s407
      %s409 = smul.u32 8, %s22
      %p410 = scmp.lt.s32.totalorder %s21, 1
      %s411 = scalar_select %p410, %s21, 1
      %p412 = scmp.lt.s32.totalorder %s22, 1
      %s413 = scalar_select %p412, %s22, 1
      %s414 = smul.addr %s411, 2
      %s415 = sadd.s32 %s413, %s414
      %s416 = smul.addr %s415, 2
      %s417 = scalar_lea.vmem %s5, %s416
      %v418 = vld [vmem:[%s364] sm:$0xff]
      %v419 = vld [vmem:[%s364 + $0x8] sm:$0xff]
      %v420 = vld [vmem:[%s364 + $0x18] sm:$0xff]
      %v421 = vld [vmem:[%s364 + $0x20] sm:$0xff]
      %v422 = vld [vmem:[%s364 + $0x30] sm:$0xff]
      %v423 = vld [vmem:[%s364 + $0x38] sm:$0xff]
      %v424 = vld [vmem:[%s364 + $0x48] sm:$0xff]
      %v425 = vld [vmem:[%s364 + $0x50] sm:$0xff]
      %v426 = vld [vmem:[%s364 + $0x60] sm:$0xff]
      %v427 = vld [vmem:[%s364 + $0x68] sm:$0xff]
      %v428 = vld [vmem:[%s364 + $0x78] sm:$0xff]
      %v429 = vld [vmem:[%s364 + $0x80] sm:$0xff]
      %v430 = vld [vmem:[%s364 + $0x90] sm:$0xff]
      %v431 = vld [vmem:[%s364 + $0x98] sm:$0xff]
      %v432 = vld [vmem:[%s364 + $0xa8] sm:$0xff]
      %v433 = vld [vmem:[%s364 + $0xb0] sm:$0xff]
      %434 = vst [vmem:[#allocation2] sm:$0xff] %v418
      %435 = vst [vmem:[#allocation2 + $0x48] sm:$0xff] %v419
      %436 = vst [vmem:[#allocation2 + $0x90] sm:$0xff] %v420
      %437 = vst [vmem:[#allocation2 + $0xd8] sm:$0xff] %v421
      %438 = vst [vmem:[#allocation2 + $0x120] sm:$0xff] %v422
      %439 = vst [vmem:[#allocation2 + $0x168] sm:$0xff] %v423
      %440 = vst [vmem:[#allocation2 + $0x1b0] sm:$0xff] %v424
      %441 = vst [vmem:[#allocation2 + $0x1f8] sm:$0xff] %v425
      %442 = vst [vmem:[#allocation2 + $0x240] sm:$0xff] %v426
      %443 = vst [vmem:[#allocation2 + $0x288] sm:$0xff] %v427
      %444 = vst [vmem:[#allocation2 + $0x2d0] sm:$0xff] %v428
      %445 = vst [vmem:[#allocation2 + $0x318] sm:$0xff] %v429
      %446 = vst [vmem:[#allocation2 + $0x360] sm:$0xff] %v430
      %447 = vst [vmem:[#allocation2 + $0x3a8] sm:$0xff] %v431
      %448 = vst [vmem:[#allocation2 + $0x3f0] sm:$0xff] %v432
      %449 = vst [vmem:[#allocation2 + $0x438] sm:$0xff] %v433
      %v450 = vld [vmem:[%s364 + $0x1] sm:$0xff]
      %v451 = vld [vmem:[%s364 + $0x9] sm:$0xff]
      %v452 = vld [vmem:[%s364 + $0x19] sm:$0xff]
      %v453 = vld [vmem:[%s364 + $0x21] sm:$0xff]
      %v454 = vld [vmem:[%s364 + $0x31] sm:$0xff]
      %v455 = vld [vmem:[%s364 + $0x39] sm:$0xff]
      %v456 = vld [vmem:[%s364 + $0x49] sm:$0xff]
      %v457 = vld [vmem:[%s364 + $0x51] sm:$0xff]
      %v458 = vld [vmem:[%s364 + $0x61] sm:$0xff]
      %v459 = vld [vmem:[%s364 + $0x69] sm:$0xff]
      %v460 = vld [vmem:[%s364 + $0x79] sm:$0xff]
      %v461 = vld [vmem:[%s364 + $0x81] sm:$0xff]
      %v462 = vld [vmem:[%s364 + $0x91] sm:$0xff]
      %v463 = vld [vmem:[%s364 + $0x99] sm:$0xff]
      %v464 = vld [vmem:[%s364 + $0xa9] sm:$0xff]
      %v465 = vld [vmem:[%s364 + $0xb1] sm:$0xff]
      %466 = vst [vmem:[#allocation2 + $0x8] sm:$0xff] %v450
      %467 = vst [vmem:[#allocation2 + $0x50] sm:$0xff] %v451
      %468 = vst [vmem:[#allocation2 + $0x98] sm:$0xff] %v452
      %469 = vst [vmem:[#allocation2 + $0xe0] sm:$0xff] %v453
      %470 = vst [vmem:[#allocation2 + $0x128] sm:$0xff] %v454
      %471 = vst [vmem:[#allocation2 + $0x170] sm:$0xff] %v455
      %472 = vst [vmem:[#allocation2 + $0x1b8] sm:$0xff] %v456
      %473 = vst [vmem:[#allocation2 + $0x200] sm:$0xff] %v457
      %474 = vst [vmem:[#allocation2 + $0x248] sm:$0xff] %v458
      %475 = vst [vmem:[#allocation2 + $0x290] sm:$0xff] %v459
      %476 = vst [vmem:[#allocation2 + $0x2d8] sm:$0xff] %v460
      %477 = vst [vmem:[#allocation2 + $0x320] sm:$0xff] %v461
      %478 = vst [vmem:[#allocation2 + $0x368] sm:$0xff] %v462
      %479 = vst [vmem:[#allocation2 + $0x3b0] sm:$0xff] %v463
      %480 = vst [vmem:[#allocation2 + $0x3f8] sm:$0xff] %v464
      %481 = vst [vmem:[#allocation2 + $0x440] sm:$0xff] %v465
      %v482 = vld [vmem:[%s364 + $0x2] sm:$0xff]
      %v483 = vld [vmem:[%s364 + $0xa] sm:$0xff]
      %v484 = vld [vmem:[%s364 + $0x1a] sm:$0xff]
      %v485 = vld [vmem:[%s364 + $0x22] sm:$0xff]
      %v486 = vld [vmem:[%s364 + $0x32] sm:$0xff]
      %v487 = vld [vmem:[%s364 + $0x3a] sm:$0xff]
      %v488 = vld [vmem:[%s364 + $0x4a] sm:$0xff]
      %v489 = vld [vmem:[%s364 + $0x52] sm:$0xff]
      %v490 = vld [vmem:[%s364 + $0x62] sm:$0xff]
      %v491 = vld [vmem:[%s364 + $0x6a] sm:$0xff]
      %v492 = vld [vmem:[%s364 + $0x7a] sm:$0xff]
      %v493 = vld [vmem:[%s364 + $0x82] sm:$0xff]
      %v494 = vld [vmem:[%s364 + $0x92] sm:$0xff]
      %v495 = vld [vmem:[%s364 + $0x9a] sm:$0xff]
      %v496 = vld [vmem:[%s364 + $0xaa] sm:$0xff]
      %v497 = vld [vmem:[%s364 + $0xb2] sm:$0xff]
      %498 = vst [vmem:[#allocation2 + $0x10] sm:$0xff] %v482
      %499 = vst [vmem:[#allocation2 + $0x58] sm:$0xff] %v483
      %500 = vst [vmem:[#allocation2 + $0xa0] sm:$0xff] %v484
      %501 = vst [vmem:[#allocation2 + $0xe8] sm:$0xff] %v485
      %502 = vst [vmem:[#allocation2 + $0x130] sm:$0xff] %v486
      %503 = vst [vmem:[#allocation2 + $0x178] sm:$0xff] %v487
      %504 = vst [vmem:[#allocation2 + $0x1c0] sm:$0xff] %v488
      %505 = vst [vmem:[#allocation2 + $0x208] sm:$0xff] %v489
      %506 = vst [vmem:[#allocation2 + $0x250] sm:$0xff] %v490
      %507 = vst [vmem:[#allocation2 + $0x298] sm:$0xff] %v491
      %508 = vst [vmem:[#allocation2 + $0x2e0] sm:$0xff] %v492
      %509 = vst [vmem:[#allocation2 + $0x328] sm:$0xff] %v493
      %510 = vst [vmem:[#allocation2 + $0x370] sm:$0xff] %v494
      %511 = vst [vmem:[#allocation2 + $0x3b8] sm:$0xff] %v495
      %512 = vst [vmem:[#allocation2 + $0x400] sm:$0xff] %v496
      %513 = vst [vmem:[#allocation2 + $0x448] sm:$0xff] %v497
      %s514 = scalar_lea.vmem %s364, 24
      %v515 = vld [vmem:[%s514] sm:$0xff]
      %v516 = vld [vmem:[%s514 + $0x8] sm:$0xff]
      %v517 = vld [vmem:[%s514 + $0x18] sm:$0xff]
      %v518 = vld [vmem:[%s514 + $0x20] sm:$0xff]
      %v519 = vld [vmem:[%s514 + $0x30] sm:$0xff]
      %v520 = vld [vmem:[%s514 + $0x38] sm:$0xff]
      %v521 = vld [vmem:[%s514 + $0x48] sm:$0xff]
      %v522 = vld [vmem:[%s514 + $0x50] sm:$0xff]
      %v523 = vld [vmem:[%s514 + $0x60] sm:$0xff]
      %v524 = vld [vmem:[%s514 + $0x68] sm:$0xff]
      %v525 = vld [vmem:[%s514 + $0x78] sm:$0xff]
      %v526 = vld [vmem:[%s514 + $0x80] sm:$0xff]
      %v527 = vld [vmem:[%s514 + $0x90] sm:$0xff]
      %v528 = vld [vmem:[%s514 + $0x98] sm:$0xff]
      %529 = vst [vmem:[#allocation2 + $0x18] sm:$0xff] %v515
      %530 = vst [vmem:[#allocation2 + $0x60] sm:$0xff] %v516
      %531 = vst [vmem:[#allocation2 + $0xa8] sm:$0xff] %v517
      %532 = vst [vmem:[#allocation2 + $0xf0] sm:$0xff] %v518
      %533 = vst [vmem:[#allocation2 + $0x138] sm:$0xff] %v519
      %534 = vst [vmem:[#allocation2 + $0x180] sm:$0xff] %v520
      %535 = vst [vmem:[#allocation2 + $0x1c8] sm:$0xff] %v521
      %536 = vst [vmem:[#allocation2 + $0x210] sm:$0xff] %v522
      %537 = vst [vmem:[#allocation2 + $0x258] sm:$0xff] %v523
      %538 = vst [vmem:[#allocation2 + $0x2a0] sm:$0xff] %v524
      %539 = vst [vmem:[#allocation2 + $0x2e8] sm:$0xff] %v525
      %540 = vst [vmem:[#allocation2 + $0x330] sm:$0xff] %v526
      %541 = vst [vmem:[#allocation2 + $0x378] sm:$0xff] %v527
      %542 = vst [vmem:[#allocation2 + $0x3c0] sm:$0xff] %v528
      %v543 = vld [vmem:[%s381] sm:$0xff]
      %v544 = vld [vmem:[%s381 + $0x8] sm:$0xff]
      %545 = vst [vmem:[#allocation2 + $0x408] sm:$0xff] %v543
      %546 = vst [vmem:[#allocation2 + $0x450] sm:$0xff] %v544
      %v547 = vld [vmem:[%s514 + $0x1] sm:$0xff]
      %v548 = vld [vmem:[%s514 + $0x9] sm:$0xff]
      %v549 = vld [vmem:[%s514 + $0x19] sm:$0xff]
      %v550 = vld [vmem:[%s514 + $0x21] sm:$0xff]
      %v551 = vld [vmem:[%s514 + $0x31] sm:$0xff]
      %v552 = vld [vmem:[%s514 + $0x39] sm:$0xff]
      %v553 = vld [vmem:[%s514 + $0x49] sm:$0xff]
      %v554 = vld [vmem:[%s514 + $0x51] sm:$0xff]
      %v555 = vld [vmem:[%s514 + $0x61] sm:$0xff]
      %v556 = vld [vmem:[%s514 + $0x69] sm:$0xff]
      %v557 = vld [vmem:[%s514 + $0x79] sm:$0xff]
      %v558 = vld [vmem:[%s514 + $0x81] sm:$0xff]
      %v559 = vld [vmem:[%s514 + $0x91] sm:$0xff]
      %v560 = vld [vmem:[%s514 + $0x99] sm:$0xff]
      %561 = vst [vmem:[#allocation2 + $0x20] sm:$0xff] %v547
      %562 = vst [vmem:[#allocation2 + $0x68] sm:$0xff] %v548
      %563 = vst [vmem:[#allocation2 + $0xb0] sm:$0xff] %v549
      %564 = vst [vmem:[#allocation2 + $0xf8] sm:$0xff] %v550
      %565 = vst [vmem:[#allocation2 + $0x140] sm:$0xff] %v551
      %566 = vst [vmem:[#allocation2 + $0x188] sm:$0xff] %v552
      %567 = vst [vmem:[#allocation2 + $0x1d0] sm:$0xff] %v553
      %568 = vst [vmem:[#allocation2 + $0x218] sm:$0xff] %v554
      %569 = vst [vmem:[#allocation2 + $0x260] sm:$0xff] %v555
      %570 = vst [vmem:[#allocation2 + $0x2a8] sm:$0xff] %v556
      %571 = vst [vmem:[#allocation2 + $0x2f0] sm:$0xff] %v557
      %572 = vst [vmem:[#allocation2 + $0x338] sm:$0xff] %v558
      %573 = vst [vmem:[#allocation2 + $0x380] sm:$0xff] %v559
      %574 = vst [vmem:[#allocation2 + $0x3c8] sm:$0xff] %v560
      %v575 = vld [vmem:[%s381 + $0x1] sm:$0xff]
      %v576 = vld [vmem:[%s381 + $0x9] sm:$0xff]
      %577 = vst [vmem:[#allocation2 + $0x410] sm:$0xff] %v575
      %578 = vst [vmem:[#allocation2 + $0x458] sm:$0xff] %v576
      %v579 = vld [vmem:[%s514 + $0x2] sm:$0xff]
      %v580 = vld [vmem:[%s514 + $0xa] sm:$0xff]
      %v581 = vld [vmem:[%s514 + $0x1a] sm:$0xff]
      %v582 = vld [vmem:[%s514 + $0x22] sm:$0xff]
      %v583 = vld [vmem:[%s514 + $0x32] sm:$0xff]
      %v584 = vld [vmem:[%s514 + $0x3a] sm:$0xff]
      %v585 = vld [vmem:[%s514 + $0x4a] sm:$0xff]
      %v586 = vld [vmem:[%s514 + $0x52] sm:$0xff]
      %v587 = vld [vmem:[%s514 + $0x62] sm:$0xff]
      %v588 = vld [vmem:[%s514 + $0x6a] sm:$0xff]
      %v589 = vld [vmem:[%s514 + $0x7a] sm:$0xff]
      %v590 = vld [vmem:[%s514 + $0x82] sm:$0xff]
      %v591 = vld [vmem:[%s514 + $0x92] sm:$0xff]
      %v592 = vld [vmem:[%s514 + $0x9a] sm:$0xff]
      %593 = vst [vmem:[#allocation2 + $0x28] sm:$0xff] %v579
      %594 = vst [vmem:[#allocation2 + $0x70] sm:$0xff] %v580
      %595 = vst [vmem:[#allocation2 + $0xb8] sm:$0xff] %v581
      %596 = vst [vmem:[#allocation2 + $0x100] sm:$0xff] %v582
      %597 = vst [vmem:[#allocation2 + $0x148] sm:$0xff] %v583
      %598 = vst [vmem:[#allocation2 + $0x190] sm:$0xff] %v584
      %599 = vst [vmem:[#allocation2 + $0x1d8] sm:$0xff] %v585
      %600 = vst [vmem:[#allocation2 + $0x220] sm:$0xff] %v586
      %601 = vst [vmem:[#allocation2 + $0x268] sm:$0xff] %v587
      %602 = vst [vmem:[#allocation2 + $0x2b0] sm:$0xff] %v588
      %603 = vst [vmem:[#allocation2 + $0x2f8] sm:$0xff] %v589
      %604 = vst [vmem:[#allocation2 + $0x340] sm:$0xff] %v590
      %605 = vst [vmem:[#allocation2 + $0x388] sm:$0xff] %v591
      %606 = vst [vmem:[#allocation2 + $0x3d0] sm:$0xff] %v592
      %v607 = vld [vmem:[%s381 + $0x2] sm:$0xff]
      %v608 = vld [vmem:[%s381 + $0xa] sm:$0xff]
      %609 = vst [vmem:[#allocation2 + $0x418] sm:$0xff] %v607
      %610 = vst [vmem:[#allocation2 + $0x460] sm:$0xff] %v608
      %s611 = scalar_lea.vmem %s364, 48
      %v612 = vld [vmem:[%s611] sm:$0xff]
      %v613 = vld [vmem:[%s611 + $0x8] sm:$0xff]
      %v614 = vld [vmem:[%s611 + $0x18] sm:$0xff]
      %v615 = vld [vmem:[%s611 + $0x20] sm:$0xff]
      %v616 = vld [vmem:[%s611 + $0x30] sm:$0xff]
      %v617 = vld [vmem:[%s611 + $0x38] sm:$0xff]
      %v618 = vld [vmem:[%s611 + $0x48] sm:$0xff]
      %v619 = vld [vmem:[%s611 + $0x50] sm:$0xff]
      %v620 = vld [vmem:[%s611 + $0x60] sm:$0xff]
      %v621 = vld [vmem:[%s611 + $0x68] sm:$0xff]
      %v622 = vld [vmem:[%s611 + $0x78] sm:$0xff]
      %v623 = vld [vmem:[%s611 + $0x80] sm:$0xff]
      %624 = vst [vmem:[#allocation2 + $0x30] sm:$0xff] %v612
      %625 = vst [vmem:[#allocation2 + $0x78] sm:$0xff] %v613
      %626 = vst [vmem:[#allocation2 + $0xc0] sm:$0xff] %v614
      %627 = vst [vmem:[#allocation2 + $0x108] sm:$0xff] %v615
      %628 = vst [vmem:[#allocation2 + $0x150] sm:$0xff] %v616
      %629 = vst [vmem:[#allocation2 + $0x198] sm:$0xff] %v617
      %630 = vst [vmem:[#allocation2 + $0x1e0] sm:$0xff] %v618
      %631 = vst [vmem:[#allocation2 + $0x228] sm:$0xff] %v619
      %632 = vst [vmem:[#allocation2 + $0x270] sm:$0xff] %v620
      %633 = vst [vmem:[#allocation2 + $0x2b8] sm:$0xff] %v621
      %634 = vst [vmem:[#allocation2 + $0x300] sm:$0xff] %v622
      %635 = vst [vmem:[#allocation2 + $0x348] sm:$0xff] %v623
      %v636 = vld [vmem:[%s381] sm:$0xff]
      %v637 = vld [vmem:[%s381 + $0x8] sm:$0xff]
      %638 = vst [vmem:[#allocation2 + $0x390] sm:$0xff] %v636
      %639 = vst [vmem:[#allocation2 + $0x3d8] sm:$0xff] %v637
      %v640 = vld [vmem:[%s395] sm:$0xff]
      %v641 = vld [vmem:[%s395 + $0x8] sm:$0xff]
      %642 = vst [vmem:[#allocation2 + $0x420] sm:$0xff] %v640
      %643 = vst [vmem:[#allocation2 + $0x468] sm:$0xff] %v641
      %v644 = vld [vmem:[%s611 + $0x1] sm:$0xff]
      %v645 = vld [vmem:[%s611 + $0x9] sm:$0xff]
      %v646 = vld [vmem:[%s611 + $0x19] sm:$0xff]
      %v647 = vld [vmem:[%s611 + $0x21] sm:$0xff]
      %v648 = vld [vmem:[%s611 + $0x31] sm:$0xff]
      %v649 = vld [vmem:[%s611 + $0x39] sm:$0xff]
      %v650 = vld [vmem:[%s611 + $0x49] sm:$0xff]
      %v651 = vld [vmem:[%s611 + $0x51] sm:$0xff]
      %v652 = vld [vmem:[%s611 + $0x61] sm:$0xff]
      %v653 = vld [vmem:[%s611 + $0x69] sm:$0xff]
      %v654 = vld [vmem:[%s611 + $0x79] sm:$0xff]
      %v655 = vld [vmem:[%s611 + $0x81] sm:$0xff]
      %656 = vst [vmem:[#allocation2 + $0x38] sm:$0xff] %v644
      %657 = vst [vmem:[#allocation2 + $0x80] sm:$0xff] %v645
      %658 = vst [vmem:[#allocation2 + $0xc8] sm:$0xff] %v646
      %659 = vst [vmem:[#allocation2 + $0x110] sm:$0xff] %v647
      %660 = vst [vmem:[#allocation2 + $0x158] sm:$0xff] %v648
      %661 = vst [vmem:[#allocation2 + $0x1a0] sm:$0xff] %v649
      %662 = vst [vmem:[#allocation2 + $0x1e8] sm:$0xff] %v650
      %663 = vst [vmem:[#allocation2 + $0x230] sm:$0xff] %v651
      %664 = vst [vmem:[#allocation2 + $0x278] sm:$0xff] %v652
      %665 = vst [vmem:[#allocation2 + $0x2c0] sm:$0xff] %v653
      %666 = vst [vmem:[#allocation2 + $0x308] sm:$0xff] %v654
      %667 = vst [vmem:[#allocation2 + $0x350] sm:$0xff] %v655
      %v668 = vld [vmem:[%s381 + $0x1] sm:$0xff]
      %v669 = vld [vmem:[%s381 + $0x9] sm:$0xff]
      %670 = vst [vmem:[#allocation2 + $0x398] sm:$0xff] %v668
      %671 = vst [vmem:[#allocation2 + $0x3e0] sm:$0xff] %v669
      %v672 = vld [vmem:[%s395 + $0x1] sm:$0xff]
      %v673 = vld [vmem:[%s395 + $0x9] sm:$0xff]
      %674 = vst [vmem:[#allocation2 + $0x428] sm:$0xff] %v672
      %675 = vst [vmem:[#allocation2 + $0x470] sm:$0xff] %v673
      %v676 = vld [vmem:[%s611 + $0x2] sm:$0xff]
      %v677 = vld [vmem:[%s611 + $0xa] sm:$0xff]
      %v678 = vld [vmem:[%s611 + $0x1a] sm:$0xff]
      %v679 = vld [vmem:[%s611 + $0x22] sm:$0xff]
      %v680 = vld [vmem:[%s611 + $0x32] sm:$0xff]
      %v681 = vld [vmem:[%s611 + $0x3a] sm:$0xff]
      %v682 = vld [vmem:[%s611 + $0x4a] sm:$0xff]
      %v683 = vld [vmem:[%s611 + $0x52] sm:$0xff]
      %v684 = vld [vmem:[%s611 + $0x62] sm:$0xff]
      %v685 = vld [vmem:[%s611 + $0x6a] sm:$0xff]
      %v686 = vld [vmem:[%s611 + $0x7a] sm:$0xff]
      %v687 = vld [vmem:[%s611 + $0x82] sm:$0xff]
      %688 = vst [vmem:[#allocation2 + $0x40] sm:$0xff] %v676
      %689 = vst [vmem:[#allocation2 + $0x88] sm:$0xff] %v677
      %690 = vst [vmem:[#allocation2 + $0xd0] sm:$0xff] %v678
      %691 = vst [vmem:[#allocation2 + $0x118] sm:$0xff] %v679
      %692 = vst [vmem:[#allocation2 + $0x160] sm:$0xff] %v680
      %693 = vst [vmem:[#allocation2 + $0x1a8] sm:$0xff] %v681
      %694 = vst [vmem:[#allocation2 + $0x1f0] sm:$0xff] %v682
      %695 = vst [vmem:[#allocation2 + $0x238] sm:$0xff] %v683
      %696 = vst [vmem:[#allocation2 + $0x280] sm:$0xff] %v684
      %697 = vst [vmem:[#allocation2 + $0x2c8] sm:$0xff] %v685
      %698 = vst [vmem:[#allocation2 + $0x310] sm:$0xff] %v686
      %699 = vst [vmem:[#allocation2 + $0x358] sm:$0xff] %v687
      %v700 = vld [vmem:[%s381 + $0x2] sm:$0xff]
      %v701 = vld [vmem:[%s381 + $0xa] sm:$0xff]
      %702 = vst [vmem:[#allocation2 + $0x3a0] sm:$0xff] %v700
      %703 = vst [vmem:[#allocation2 + $0x3e8] sm:$0xff] %v701
      %v704 = vld [vmem:[%s395 + $0x2] sm:$0xff]
      %v705 = vld [vmem:[%s395 + $0xa] sm:$0xff]
      %706 = vst [vmem:[#allocation2 + $0x430] sm:$0xff] %v704
      %707 = vst [vmem:[#allocation2 + $0x478] sm:$0xff] %v705
      %v708 = vld [vmem:[#allocation2] sm:$0xff]
      %v709 = vld [vmem:[#allocation2 + $0x8] sm:$0xff]
      %v710 = vld [vmem:[#allocation2 + $0x10] sm:$0xff]
      %v711 = vld [vmem:[#allocation2 + $0x18] sm:$0xff]
      %v712 = vld [vmem:[#allocation2 + $0x20] sm:$0xff]
      %v713 = vld [vmem:[#allocation2 + $0x28] sm:$0xff]
      %v714 = vld [vmem:[#allocation2 + $0x30] sm:$0xff]
      %v715 = vld [vmem:[#allocation2 + $0x38] sm:$0xff]
      %v716 = vld [vmem:[#allocation2 + $0x40] sm:$0xff]
      %v717 = vld [vmem:[#allocation2 + $0x48] sm:$0xff]
      %v718 = vld [vmem:[#allocation2 + $0x50] sm:$0xff]
      %v719 = vld [vmem:[#allocation2 + $0x58] sm:$0xff]
      %v720 = vld [vmem:[#allocation2 + $0x60] sm:$0xff]
      %v721 = vld [vmem:[#allocation2 + $0x68] sm:$0xff]
      %v722 = vld [vmem:[#allocation2 + $0x70] sm:$0xff]
      %v723 = vld [vmem:[#allocation2 + $0x78] sm:$0xff]
      %v724 = vld [vmem:[#allocation2 + $0x80] sm:$0xff]
      %v725 = vld [vmem:[#allocation2 + $0x88] sm:$0xff]
      %v726 = vld [vmem:[#allocation2 + $0x90] sm:$0xff]
      %v727 = vld [vmem:[#allocation2 + $0x98] sm:$0xff]
      %v728 = vld [vmem:[#allocation2 + $0xa0] sm:$0xff]
      %v729 = vld [vmem:[#allocation2 + $0xa8] sm:$0xff]
      %v730 = vld [vmem:[#allocation2 + $0xb0] sm:$0xff]
      %v731 = vld [vmem:[#allocation2 + $0xb8] sm:$0xff]
      %v732 = vld [vmem:[#allocation2 + $0xc0] sm:$0xff]
      %v733 = vld [vmem:[#allocation2 + $0xc8] sm:$0xff]
      %v734 = vld [vmem:[#allocation2 + $0xd0] sm:$0xff]
      %v735 = vld [vmem:[#allocation2 + $0xd8] sm:$0xff]
      %v736 = vld [vmem:[#allocation2 + $0xe0] sm:$0xff]
      %v737 = vld [vmem:[#allocation2 + $0xe8] sm:$0xff]
      %v738 = vld [vmem:[#allocation2 + $0xf0] sm:$0xff]
      %v739 = vld [vmem:[#allocation2 + $0xf8] sm:$0xff]
      %v740 = vld [vmem:[#allocation2 + $0x100] sm:$0xff]
      %v741 = vld [vmem:[#allocation2 + $0x108] sm:$0xff]
      %v742 = vld [vmem:[#allocation2 + $0x110] sm:$0xff]
      %v743 = vld [vmem:[#allocation2 + $0x118] sm:$0xff]
      %v744 = vld [vmem:[#allocation2 + $0x120] sm:$0xff]
      %v745 = vld [vmem:[#allocation2 + $0x128] sm:$0xff]
      %v746 = vld [vmem:[#allocation2 + $0x130] sm:$0xff]
      %v747 = vld [vmem:[#allocation2 + $0x138] sm:$0xff]
      %v748 = vld [vmem:[#allocation2 + $0x140] sm:$0xff]
      %v749 = vld [vmem:[#allocation2 + $0x148] sm:$0xff]
      %v750 = vld [vmem:[#allocation2 + $0x150] sm:$0xff]
      %v751 = vld [vmem:[#allocation2 + $0x158] sm:$0xff]
      %v752 = vld [vmem:[#allocation2 + $0x160] sm:$0xff]
      %v753 = vld [vmem:[#allocation2 + $0x168] sm:$0xff]
      %v754 = vld [vmem:[#allocation2 + $0x170] sm:$0xff]
      %v755 = vld [vmem:[#allocation2 + $0x178] sm:$0xff]
      %v756 = vld [vmem:[#allocation2 + $0x180] sm:$0xff]
      %v757 = vld [vmem:[#allocation2 + $0x188] sm:$0xff]
      %v758 = vld [vmem:[#allocation2 + $0x190] sm:$0xff]
      %v759 = vld [vmem:[#allocation2 + $0x198] sm:$0xff]
      %v760 = vld [vmem:[#allocation2 + $0x1a0] sm:$0xff]
      %v761 = vld [vmem:[#allocation2 + $0x1a8] sm:$0xff]
      %v762 = vld [vmem:[#allocation2 + $0x1b0] sm:$0xff]
      %v763 = vld [vmem:[#allocation2 + $0x1b8] sm:$0xff]
      %v764 = vld [vmem:[#allocation2 + $0x1c0] sm:$0xff]
      %v765 = vld [vmem:[#allocation2 + $0x1c8] sm:$0xff]
      %v766 = vld [vmem:[#allocation2 + $0x1d0] sm:$0xff]
      %v767 = vld [vmem:[#allocation2 + $0x1d8] sm:$0xff]
      %v768 = vld [vmem:[#allocation2 + $0x1e0] sm:$0xff]
      %v769 = vld [vmem:[#allocation2 + $0x1e8] sm:$0xff]
      %v770 = vld [vmem:[#allocation2 + $0x1f0] sm:$0xff]
      %v771 = vld [vmem:[#allocation2 + $0x1f8] sm:$0xff]
      %v772 = vld [vmem:[#allocation2 + $0x200] sm:$0xff]
      %v773 = vld [vmem:[#allocation2 + $0x208] sm:$0xff]
      %v774 = vld [vmem:[#allocation2 + $0x210] sm:$0xff]
      %v775 = vld [vmem:[#allocation2 + $0x218] sm:$0xff]
      %v776 = vld [vmem:[#allocation2 + $0x220] sm:$0xff]
      %v777 = vld [vmem:[#allocation2 + $0x228] sm:$0xff]
      %v778 = vld [vmem:[#allocation2 + $0x230] sm:$0xff]
      %v779 = vld [vmem:[#allocation2 + $0x238] sm:$0xff]
      %v780 = vld [vmem:[#allocation2 + $0x240] sm:$0xff]
      %v781 = vld [vmem:[#allocation2 + $0x248] sm:$0xff]
      %v782 = vld [vmem:[#allocation2 + $0x250] sm:$0xff]
      %v783 = vld [vmem:[#allocation2 + $0x258] sm:$0xff]
      %v784 = vld [vmem:[#allocation2 + $0x260] sm:$0xff]
      %v785 = vld [vmem:[#allocation2 + $0x268] sm:$0xff]
      %v786 = vld [vmem:[#allocation2 + $0x270] sm:$0xff]
      %v787 = vld [vmem:[#allocation2 + $0x278] sm:$0xff]
      %v788 = vld [vmem:[#allocation2 + $0x280] sm:$0xff]
      %v789 = vld [vmem:[#allocation2 + $0x288] sm:$0xff]
      %v790 = vld [vmem:[#allocation2 + $0x290] sm:$0xff]
      %v791 = vld [vmem:[#allocation2 + $0x298] sm:$0xff]
      %v792 = vld [vmem:[#allocation2 + $0x2a0] sm:$0xff]
      %v793 = vld [vmem:[#allocation2 + $0x2a8] sm:$0xff]
      %v794 = vld [vmem:[#allocation2 + $0x2b0] sm:$0xff]
      %v795 = vld [vmem:[#allocation2 + $0x2b8] sm:$0xff]
      %v796 = vld [vmem:[#allocation2 + $0x2c0] sm:$0xff]
      %v797 = vld [vmem:[#allocation2 + $0x2c8] sm:$0xff]
      %v798 = vld [vmem:[#allocation2 + $0x2d0] sm:$0xff]
      %v799 = vld [vmem:[#allocation2 + $0x2d8] sm:$0xff]
      %v800 = vld [vmem:[#allocation2 + $0x2e0] sm:$0xff]
      %v801 = vld [vmem:[#allocation2 + $0x2e8] sm:$0xff]
      %v802 = vld [vmem:[#allocation2 + $0x2f0] sm:$0xff]
      %v803 = vld [vmem:[#allocation2 + $0x2f8] sm:$0xff]
      %v804 = vld [vmem:[#allocation2 + $0x300] sm:$0xff]
      %v805 = vld [vmem:[#allocation2 + $0x308] sm:$0xff]
      %v806 = vld [vmem:[#allocation2 + $0x310] sm:$0xff]
      %v807 = vld [vmem:[#allocation2 + $0x318] sm:$0xff]
      %v808 = vld [vmem:[#allocation2 + $0x320] sm:$0xff]
      %v809 = vld [vmem:[#allocation2 + $0x328] sm:$0xff]
      %v810 = vld [vmem:[#allocation2 + $0x330] sm:$0xff]
      %v811 = vld [vmem:[#allocation2 + $0x338] sm:$0xff]
      %v812 = vld [vmem:[#allocation2 + $0x340] sm:$0xff]
      %v813 = vld [vmem:[#allocation2 + $0x348] sm:$0xff]
      %v814 = vld [vmem:[#allocation2 + $0x350] sm:$0xff]
      %v815 = vld [vmem:[#allocation2 + $0x358] sm:$0xff]
      %v816 = vld [vmem:[#allocation2 + $0x360] sm:$0xff]
      %v817 = vld [vmem:[#allocation2 + $0x368] sm:$0xff]
      %v818 = vld [vmem:[#allocation2 + $0x370] sm:$0xff]
      %v819 = vld [vmem:[#allocation2 + $0x378] sm:$0xff]
      %v820 = vld [vmem:[#allocation2 + $0x380] sm:$0xff]
      %v821 = vld [vmem:[#allocation2 + $0x388] sm:$0xff]
      %v822 = vld [vmem:[#allocation2 + $0x390] sm:$0xff]
      %v823 = vld [vmem:[#allocation2 + $0x398] sm:$0xff]
      %v824 = vld [vmem:[#allocation2 + $0x3a0] sm:$0xff]
      %v825 = vld [vmem:[#allocation2 + $0x3a8] sm:$0xff]
      %v826 = vld [vmem:[#allocation2 + $0x3b0] sm:$0xff]
      %v827 = vld [vmem:[#allocation2 + $0x3b8] sm:$0xff]
      %v828 = vld [vmem:[#allocation2 + $0x3c0] sm:$0xff]
      %v829 = vld [vmem:[#allocation2 + $0x3c8] sm:$0xff]
      %v830 = vld [vmem:[#allocation2 + $0x3d0] sm:$0xff]
      %v831 = vld [vmem:[#allocation2 + $0x3d8] sm:$0xff]
      %v832 = vld [vmem:[#allocation2 + $0x3e0] sm:$0xff]
      %v833 = vld [vmem:[#allocation2 + $0x3e8] sm:$0xff]
      %v834 = vld [vmem:[#allocation2 + $0x3f0] sm:$0xff]
      %v835 = vld [vmem:[#allocation2 + $0x3f8] sm:$0xff]
      %v836 = vld [vmem:[#allocation2 + $0x400] sm:$0xff]
      %v837 = vld [vmem:[#allocation2 + $0x408] sm:$0xff]
      %v838 = vld [vmem:[#allocation2 + $0x410] sm:$0xff]
      %v839 = vld [vmem:[#allocation2 + $0x418] sm:$0xff]
      %v840 = vld [vmem:[#allocation2 + $0x420] sm:$0xff]
      %v841 = vld [vmem:[#allocation2 + $0x428] sm:$0xff]
      %v842 = vld [vmem:[#allocation2 + $0x430] sm:$0xff]
      %v843 = vld [vmem:[#allocation2 + $0x438] sm:$0xff]
      %v844 = vld [vmem:[#allocation2 + $0x440] sm:$0xff]
      %v845 = vld [vmem:[#allocation2 + $0x448] sm:$0xff]
      %v846 = vld [vmem:[#allocation2 + $0x450] sm:$0xff]
      %v847 = vld [vmem:[#allocation2 + $0x458] sm:$0xff]
      %v848 = vld [vmem:[#allocation2 + $0x460] sm:$0xff]
      %v849 = vld [vmem:[#allocation2 + $0x468] sm:$0xff]
      %v850 = vld [vmem:[#allocation2 + $0x470] sm:$0xff]
      %v851 = vld [vmem:[#allocation2 + $0x478] sm:$0xff]
      %v852 = vld [vmem:[%s3] sm:$0xff]
      %v853 = vld [vmem:[%s3 + $0x8] sm:$0xff]
      %v854 = vld [vmem:[%s3 + $0x10] sm:$0xff]
      %v855 = vld [vmem:[%s3 + $0x18] sm:$0xff]
      %v856 = vld [vmem:[%s3 + $0x20] sm:$0xff]
      %v857 = vld [vmem:[%s3 + $0x28] sm:$0xff]
      %v858 = vld [vmem:[%s3 + $0x30] sm:$0xff]
      %v859 = vld [vmem:[%s3 + $0x38] sm:$0xff]
      %v860 = vld [vmem:[%s3 + $0x40] sm:$0xff]
      %v861 = vld [vmem:[%s3 + $0x48] sm:$0xff]
      %v862 = vld [vmem:[%s3 + $0x50] sm:$0xff]
      %v863 = vld [vmem:[%s3 + $0x58] sm:$0xff]
      %v864 = vld [vmem:[%s3 + $0x60] sm:$0xff]
      %v865 = vld [vmem:[%s3 + $0x68] sm:$0xff]
      %v866 = vld [vmem:[%s3 + $0x70] sm:$0xff]
      %v867 = vld [vmem:[%s3 + $0x78] sm:$0xff]
      %v868 = vld [vmem:[%s3 + $0x80] sm:$0xff]
      %v869 = vld [vmem:[%s3 + $0x88] sm:$0xff]
      %v870 = vld [vmem:[%s3 + $0x90] sm:$0xff]
      %v871 = vld [vmem:[%s3 + $0x98] sm:$0xff]
      %v872 = vld [vmem:[%s3 + $0xa0] sm:$0xff]
      %v873 = vld [vmem:[%s3 + $0xa8] sm:$0xff]
      %v874 = vld [vmem:[%s3 + $0xb0] sm:$0xff]
      %v875 = vld [vmem:[%s3 + $0xb8] sm:$0xff]
      %v876 = vld [vmem:[%s3 + $0xc0] sm:$0xff]
      %v877 = vld [vmem:[%s3 + $0xc8] sm:$0xff]
      %v878 = vld [vmem:[%s3 + $0xd0] sm:$0xff]
      %v879 = vld [vmem:[%s3 + $0xd8] sm:$0xff]
      %v880 = vld [vmem:[%s3 + $0xe0] sm:$0xff]
      %v881 = vld [vmem:[%s3 + $0xe8] sm:$0xff]
      %v882 = vld [vmem:[%s3 + $0xf0] sm:$0xff]
      %v883 = vld [vmem:[%s3 + $0xf8] sm:$0xff]
      %v884 = vld [vmem:[%s3 + $0x100] sm:$0xff]
      %v885 = vld [vmem:[%s3 + $0x108] sm:$0xff]
      %v886 = vld [vmem:[%s3 + $0x110] sm:$0xff]
      %v887 = vld [vmem:[%s3 + $0x118] sm:$0xff]
      %v888 = vld [vmem:[%s3 + $0x120] sm:$0xff]
      %v889 = vld [vmem:[%s3 + $0x128] sm:$0xff]
      %v890 = vld [vmem:[%s3 + $0x130] sm:$0xff]
      %v891 = vld [vmem:[%s3 + $0x138] sm:$0xff]
      %v892 = vld [vmem:[%s3 + $0x140] sm:$0xff]
      %v893 = vld [vmem:[%s3 + $0x148] sm:$0xff]
      %v894 = vld [vmem:[%s3 + $0x150] sm:$0xff]
      %v895 = vld [vmem:[%s3 + $0x158] sm:$0xff]
      %v896 = vld [vmem:[%s3 + $0x160] sm:$0xff]
      %v897 = vld [vmem:[%s3 + $0x168] sm:$0xff]
      %v898 = vld [vmem:[%s3 + $0x170] sm:$0xff]
      %v899 = vld [vmem:[%s3 + $0x178] sm:$0xff]
      %v900 = vld [vmem:[%s3 + $0x180] sm:$0xff]
      %v901 = vld [vmem:[%s3 + $0x188] sm:$0xff]
      %v902 = vld [vmem:[%s3 + $0x190] sm:$0xff]
      %v903 = vld [vmem:[%s3 + $0x198] sm:$0xff]
      %v904 = vld [vmem:[%s3 + $0x1a0] sm:$0xff]
      %v905 = vld [vmem:[%s3 + $0x1a8] sm:$0xff]
      %v906 = vld [vmem:[%s3 + $0x1b0] sm:$0xff]
      %v907 = vld [vmem:[%s3 + $0x1b8] sm:$0xff]
      %v908 = vld [vmem:[%s3 + $0x1c0] sm:$0xff]
      %v909 = vld [vmem:[%s3 + $0x1c8] sm:$0xff]
      %v910 = vld [vmem:[%s3 + $0x1d0] sm:$0xff]
      %v911 = vld [vmem:[%s3 + $0x1d8] sm:$0xff]
      %v912 = vld [vmem:[%s3 + $0x1e0] sm:$0xff]
      %v913 = vld [vmem:[%s3 + $0x1e8] sm:$0xff]
      %v914 = vld [vmem:[%s3 + $0x1f0] sm:$0xff]
      %v915 = vld [vmem:[%s3 + $0x1f8] sm:$0xff]
      %v916 = vld [vmem:[%s3 + $0x200] sm:$0xff]
      %v917 = vld [vmem:[%s3 + $0x208] sm:$0xff]
      %v918 = vld [vmem:[%s3 + $0x210] sm:$0xff]
      %v919 = vld [vmem:[%s3 + $0x218] sm:$0xff]
      %v920 = vld [vmem:[%s3 + $0x220] sm:$0xff]
      %v921 = vld [vmem:[%s3 + $0x228] sm:$0xff]
      %v922 = vld [vmem:[%s3 + $0x230] sm:$0xff]
      %v923 = vld [vmem:[%s3 + $0x238] sm:$0xff]
      %v924 = vld [vmem:[%s3 + $0x240] sm:$0xff]
      %v925 = vld [vmem:[%s3 + $0x248] sm:$0xff]
      %v926 = vld [vmem:[%s3 + $0x250] sm:$0xff]
      %v927 = vld [vmem:[%s3 + $0x258] sm:$0xff]
      %v928 = vld [vmem:[%s3 + $0x260] sm:$0xff]
      %v929 = vld [vmem:[%s3 + $0x268] sm:$0xff]
      %v930 = vld [vmem:[%s3 + $0x270] sm:$0xff]
      %v931 = vld [vmem:[%s3 + $0x278] sm:$0xff]
      %v932 = vld [vmem:[%s3 + $0x280] sm:$0xff]
      %v933 = vld [vmem:[%s3 + $0x288] sm:$0xff]
      %v934 = vld [vmem:[%s3 + $0x290] sm:$0xff]
      %v935 = vld [vmem:[%s3 + $0x298] sm:$0xff]
      %v936 = vld [vmem:[%s3 + $0x2a0] sm:$0xff]
      %v937 = vld [vmem:[%s3 + $0x2a8] sm:$0xff]
      %v938 = vld [vmem:[%s3 + $0x2b0] sm:$0xff]
      %v939 = vld [vmem:[%s3 + $0x2b8] sm:$0xff]
      %v940 = vld [vmem:[%s3 + $0x2c0] sm:$0xff]
      %v941 = vld [vmem:[%s3 + $0x2c8] sm:$0xff]
      %v942 = vld [vmem:[%s3 + $0x2d0] sm:$0xff]
      %v943 = vld [vmem:[%s3 + $0x2d8] sm:$0xff]
      %v944 = vld [vmem:[%s3 + $0x2e0] sm:$0xff]
      %v945 = vld [vmem:[%s3 + $0x2e8] sm:$0xff]
      %v946 = vld [vmem:[%s3 + $0x2f0] sm:$0xff]
      %v947 = vld [vmem:[%s3 + $0x2f8] sm:$0xff]
      %v948 = vld [vmem:[%s3 + $0x300] sm:$0xff]
      %v949 = vld [vmem:[%s3 + $0x308] sm:$0xff]
      %v950 = vld [vmem:[%s3 + $0x310] sm:$0xff]
      %v951 = vld [vmem:[%s3 + $0x318] sm:$0xff]
      %v952 = vld [vmem:[%s3 + $0x320] sm:$0xff]
      %v953 = vld [vmem:[%s3 + $0x328] sm:$0xff]
      %v954 = vld [vmem:[%s3 + $0x330] sm:$0xff]
      %v955 = vld [vmem:[%s3 + $0x338] sm:$0xff]
      %v956 = vld [vmem:[%s3 + $0x340] sm:$0xff]
      %v957 = vld [vmem:[%s3 + $0x348] sm:$0xff]
      %v958 = vld [vmem:[%s3 + $0x350] sm:$0xff]
      %v959 = vld [vmem:[%s3 + $0x358] sm:$0xff]
      %v960 = vld [vmem:[%s3 + $0x360] sm:$0xff]
      %v961 = vld [vmem:[%s3 + $0x368] sm:$0xff]
      %v962 = vld [vmem:[%s3 + $0x370] sm:$0xff]
      %v963 = vld [vmem:[%s3 + $0x378] sm:$0xff]
      %v964 = vld [vmem:[%s3 + $0x380] sm:$0xff]
      %v965 = vld [vmem:[%s3 + $0x388] sm:$0xff]
      %v966 = vld [vmem:[%s3 + $0x390] sm:$0xff]
      %v967 = vld [vmem:[%s3 + $0x398] sm:$0xff]
      %v968 = vld [vmem:[%s3 + $0x3a0] sm:$0xff]
      %v969 = vld [vmem:[%s3 + $0x3a8] sm:$0xff]
      %v970 = vld [vmem:[%s3 + $0x3b0] sm:$0xff]
      %v971 = vld [vmem:[%s3 + $0x3b8] sm:$0xff]
      %v972 = vld [vmem:[%s3 + $0x3c0] sm:$0xff]
      %v973 = vld [vmem:[%s3 + $0x3c8] sm:$0xff]
      %v974 = vld [vmem:[%s3 + $0x3d0] sm:$0xff]
      %v975 = vld [vmem:[%s3 + $0x3d8] sm:$0xff]
      %v976 = vld [vmem:[%s3 + $0x3e0] sm:$0xff]
      %v977 = vld [vmem:[%s3 + $0x3e8] sm:$0xff]
      %v978 = vld [vmem:[%s3 + $0x3f0] sm:$0xff]
      %v979 = vld [vmem:[%s3 + $0x3f8] sm:$0xff]
      %v980 = vld [vmem:[%s3 + $0x400] sm:$0xff]
      %v981 = vld [vmem:[%s3 + $0x408] sm:$0xff]
      %v982 = vld [vmem:[%s3 + $0x410] sm:$0xff]
      %v983 = vld [vmem:[%s3 + $0x418] sm:$0xff]
      %v984 = vld [vmem:[%s3 + $0x420] sm:$0xff]
      %v985 = vld [vmem:[%s3 + $0x428] sm:$0xff]
      %v986 = vld [vmem:[%s3 + $0x430] sm:$0xff]
      %v987 = vld [vmem:[%s3 + $0x438] sm:$0xff]
      %v988 = vld [vmem:[%s3 + $0x440] sm:$0xff]
      %v989 = vld [vmem:[%s3 + $0x448] sm:$0xff]
      %v990 = vld [vmem:[%s3 + $0x450] sm:$0xff]
      %v991 = vld [vmem:[%s3 + $0x458] sm:$0xff]
      %v992 = vld [vmem:[%s3 + $0x460] sm:$0xff]
      %v993 = vld [vmem:[%s3 + $0x468] sm:$0xff]
      %v994 = vld [vmem:[%s3 + $0x470] sm:$0xff]
      %v995 = vld [vmem:[%s3 + $0x478] sm:$0xff]
      %996 = vmatprep.subr.mxu0 0.0
      %997 = vmatpush1.msra.mxu0 %v852
      %998 = vmatprep.subr.mxu0 0.0
      %999 = vmatpush1.msra.mxu0 %v853
      %1000 = vmatprep.subr.mxu0 0.0
      %1001 = vmatpush1.msra.mxu0 %v854
      %1002 = vmatprep.subr.mxu0 0.0
      %1003 = vmatpush1.msra.mxu0 %v855
      %1004 = vmatprep.subr.mxu0 0.0
      %1005 = vmatpush1.msra.mxu0 %v856
      %1006 = vmatprep.subr.mxu0 0.0
      %1007 = vmatpush1.msra.mxu0 %v857
      %1008 = vmatprep.subr.mxu0 0.0
      %1009 = vmatpush1.msra.mxu0 %v858
      %1010 = vmatprep.subr.mxu0 0.0
      %1011 = vmatpush1.msra.mxu0 %v859
      %1012 = vmatprep.subr.mxu0 0.0
      %1013 = vmatpush1.msra.mxu0 %v860
      %1014 = vmatprep.subr.mxu0 0.0
      %1015 = vmatpush1.msra.mxu0 %v861
      %1016 = vmatprep.subr.mxu0 0.0
      %1017 = vmatpush1.msra.mxu0 %v862
      %1018 = vmatprep.subr.mxu0 0.0
      %1019 = vmatpush1.msra.mxu0 %v863
      %1020 = vmatprep.subr.mxu0 0.0
      %1021 = vmatpush1.msra.mxu0 %v864
      %1022 = vmatprep.subr.mxu0 0.0
      %1023 = vmatpush1.msra.mxu0 %v865
      %1024 = vmatprep.subr.mxu0 0.0
      %1025 = vmatpush1.msra.mxu0 %v866
      %1026 = vmatprep.subr.mxu0 0.0
      %1027 = vmatpush1.msra.mxu0 %v867
      %1028 = vmatprep.subr.mxu0 0.0
      %1029 = vmatpush1.msra.mxu0 %v868
      %1030 = vmatprep.subr.mxu0 0.0
      %1031 = vmatpush1.msra.mxu0 %v869
      %1032 = vmatprep.subr.mxu0 0.0
      %1033 = vmatpush1.msra.mxu0 %v870
      %1034 = vmatprep.subr.mxu0 0.0
      %1035 = vmatpush1.msra.mxu0 %v871
      %1036 = vmatprep.subr.mxu0 0.0
      %1037 = vmatpush1.msra.mxu0 %v872
      %1038 = vmatprep.subr.mxu0 0.0
      %1039 = vmatpush1.msra.mxu0 %v873
      %1040 = vmatprep.subr.mxu0 0.0
      %1041 = vmatpush1.msra.mxu0 %v874
      %1042 = vmatprep.subr.mxu0 0.0
      %1043 = vmatpush1.msra.mxu0 %v875
      %1044 = vmatprep.subr.mxu0 0.0
      %1045 = vmatpush1.msra.mxu0 %v876
      %1046 = vmatprep.subr.mxu0 0.0
      %1047 = vmatpush1.msra.mxu0 %v877
      %1048 = vmatprep.subr.mxu0 0.0
      %1049 = vmatpush1.msra.mxu0 %v878
      %1050 = vmatprep.subr.mxu0 0.0
      %1051 = vmatpush1.msra.mxu0 %v879
      %1052 = vmatprep.subr.mxu0 0.0
      %1053 = vmatpush1.msra.mxu0 %v880
      %1054 = vmatprep.subr.mxu0 0.0
      %1055 = vmatpush1.msra.mxu0 %v881
      %1056 = vmatprep.subr.mxu0 0.0
      %1057 = vmatpush1.msra.mxu0 %v882
      %1058 = vmatprep.subr.mxu0 0.0
      %1059 = vmatpush1.msra.mxu0 %v883
      %1060 = vmatprep.mubr.f32.mxu0 %v709
      %1061 = vmatmul.mubr.f32.gmra.mrb[0].mxu0 %v708
      %v1062 = vpop.f32.mrb[0].mxu0
      %v1063 = vadd.f32 0.0, %v1062
      %v1064 = vpop.f32.mrb[0].mxu0
      %1065 = vmatprep.mubr.f32.mxu0 %v718
      %1066 = vmatmul.mubr.f32.gmra.mrb[0].mxu0 %v717
      %v1067 = vpop.f32.mrb[0].mxu0
      %v1068 = vadd.f32 0.0, %v1067
      %v1069 = vpop.f32.mrb[0].mxu0
      %1070 = vmatprep.mubr.f32.mxu0 %v727
      %1071 = vmatmul.mubr.f32.gmra.mrb[0].mxu0 %v726
      %v1072 = vpop.f32.mrb[0].mxu0
      %v1073 = vadd.f32 0.0, %v1072
      %v1074 = vpop.f32.mrb[0].mxu0
      %1075 = vmatprep.mubr.f32.mxu0 %v736
      %1076 = vmatmul.mubr.f32.gmra.mrb[0].mxu0 %v735
      %v1077 = vpop.f32.mrb[0].mxu0
      %v1078 = vadd.f32 0.0, %v1077
      %v1079 = vpop.f32.mrb[0].mxu0
      %1080 = vmatprep.mubr.f32.mxu0 %v745
      %1081 = vmatmul.mubr.f32.gmra.mrb[0].mxu0 %v744
      %v1082 = vpop.f32.mrb[0].mxu0
      %v1083 = vadd.f32 0.0, %v1082
      %v1084 = vpop.f32.mrb[0].mxu0
      %1085 = vmatprep.mubr.f32.mxu0 %v754
      %1086 = vmatmul.mubr.f32.gmra.mrb[0].mxu0 %v753
      %v1087 = vpop.f32.mrb[0].mxu0
      %v1088 = vadd.f32 0.0, %v1087
      %v1089 = vpop.f32.mrb[0].mxu0
      %1090 = vmatprep.mubr.f32.mxu0 %v763
      %1091 = vmatmul.mubr.f32.gmra.mrb[0].mxu0 %v762
      %v1092 = vpop.f32.mrb[0].mxu0
      %v1093 = vadd.f32 0.0, %v1092
      %v1094 = vpop.f32.mrb[0].mxu0
      %1095 = vmatprep.mubr.f32.mxu0 %v772
      %1096 = vmatmul.mubr.f32.gmra.mrb[0].mxu0 %v771
      %v1097 = vpop.f32.mrb[0].mxu0
      %v1098 = vadd.f32 0.0, %v1097
      %v1099 = vpop.f32.mrb[0].mxu0
      %1100 = vmatprep.mubr.f32.mxu0 %v781
      %1101 = vmatmul.mubr.f32.gmra.mrb[0].mxu0 %v780
      %v1102 = vpop.f32.mrb[0].mxu0
      %v1103 = vadd.f32 0.0, %v1102
      %v1104 = vpop.f32.mrb[0].mxu0
      %1105 = vmatprep.mubr.f32.mxu0 %v790
      %1106 = vmatmul.mubr.f32.gmra.mrb[0].mxu0 %v789
      %v1107 = vpop.f32.mrb[0].mxu0
      %v1108 = vadd.f32 0.0, %v1107
      %v1109 = vpop.f32.mrb[0].mxu0
      %1110 = vmatprep.mubr.f32.mxu0 %v799
      %1111 = vmatmul.mubr.f32.gmra.mrb[0].mxu0 %v798
      %v1112 = vpop.f32.mrb[0].mxu0
      %v1113 = vadd.f32 0.0, %v1112
      %v1114 = vpop.f32.mrb[0].mxu0
      %1115 = vmatprep.mubr.f32.mxu0 %v808
      %1116 = vmatmul.mubr.f32.gmra.mrb[0].mxu0 %v807
      %v1117 = vpop.f32.mrb[0].mxu0
      %v1118 = vadd.f32 0.0, %v1117
      %v1119 = vpop.f32.mrb[0].mxu0
      %1120 = vmatprep.mubr.f32.mxu0 %v817
      %1121 = vmatmul.mubr.f32.gmra.mrb[0].mxu0 %v816
      %v1122 = vpop.f32.mrb[0].mxu0
      %v1123 = vadd.f32 0.0, %v1122
      %v1124 = vpop.f32.mrb[0].mxu0
      %1125 = vmatprep.mubr.f32.mxu0 %v826
      %1126 = vmatmul.mubr.f32.gmra.mrb[0].mxu0 %v825
      %v1127 = vpop.f32.mrb[0].mxu0
      %v1128 = vadd.f32 0.0, %v1127
      %v1129 = vpop.f32.mrb[0].mxu0
      %1130 = vmatprep.mubr.f32.mxu0 %v835
      %1131 = vmatmul.mubr.f32.gmra.mrb[0].mxu0 %v834
      %v1132 = vpop.f32.mrb[0].mxu0
      %v1133 = vadd.f32 0.0, %v1132
      %v1134 = vpop.f32.mrb[0].mxu0
      %1135 = vmatprep.mubr.f32.mxu0 %v844
      %1136 = vmatmul.mubr.f32.gmra.mrb[0].mxu0 %v843
      %v1137 = vpop.f32.mrb[0].mxu0
      %v1138 = vadd.f32 0.0, %v1137
      %v1139 = vpop.f32.mrb[0].mxu0
      %1140 = vdwg.mxu0
      %1141 = vmatprep.subr.mxu0 0.0
      %1142 = vmatpush1.msra.mxu0 %v884
      %1143 = vmatprep.subr.mxu0 0.0
      %1144 = vmatpush1.msra.mxu0 %v885
      %1145 = vmatprep.subr.mxu0 0.0
      %1146 = vmatpush1.msra.mxu0 %v886
      %1147 = vmatprep.subr.mxu0 0.0
      %1148 = vmatpush1.msra.mxu0 %v887
      %1149 = vmatprep.subr.mxu0 0.0
      %1150 = vmatpush1.msra.mxu0 %v888
      %1151 = vmatprep.subr.mxu0 0.0
      %1152 = vmatpush1.msra.mxu0 %v889
      %1153 = vmatprep.subr.mxu0 0.0
      %1154 = vmatpush1.msra.mxu0 %v890
      %1155 = vmatprep.subr.mxu0 0.0
      %1156 = vmatpush1.msra.mxu0 %v891
      %1157 = vmatprep.subr.mxu0 0.0
      %1158 = vmatpush1.msra.mxu0 %v892
      %1159 = vmatprep.subr.mxu0 0.0
      %1160 = vmatpush1.msra.mxu0 %v893
      %1161 = vmatprep.subr.mxu0 0.0
      %1162 = vmatpush1.msra.mxu0 %v894
      %1163 = vmatprep.subr.mxu0 0.0
      %1164 = vmatpush1.msra.mxu0 %v895
      %1165 = vmatprep.subr.mxu0 0.0
      %1166 = vmatpush1.msra.mxu0 %v896
      %1167 = vmatprep.subr.mxu0 0.0
      %1168 = vmatpush1.msra.mxu0 %v897
      %1169 = vmatprep.subr.mxu0 0.0
      %1170 = vmatpush1.msra.mxu0 %v898
      %1171 = vmatprep.subr.mxu0 0.0
      %1172 = vmatpush1.msra.mxu0 %v899
      %1173 = vmatprep.subr.mxu0 0.0
      %1174 = vmatpush1.msra.mxu0 %v900
      %1175 = vmatprep.subr.mxu0 0.0
      %1176 = vmatpush1.msra.mxu0 %v901
      %1177 = vmatprep.subr.mxu0 0.0
      %1178 = vmatpush1.msra.mxu0 %v902
      %1179 = vmatprep.subr.mxu0 0.0
      %1180 = vmatpush1.msra.mxu0 %v903
      %1181 = vmatprep.subr.mxu0 0.0
      %1182 = vmatpush1.msra.mxu0 %v904
      %1183 = vmatprep.subr.mxu0 0.0
      %1184 = vmatpush1.msra.mxu0 %v905
      %1185 = vmatprep.subr.mxu0 0.0
      %1186 = vmatpush1.msra.mxu0 %v906
      %1187 = vmatprep.subr.mxu0 0.0
      %1188 = vmatpush1.msra.mxu0 %v907
      %1189 = vmatprep.subr.mxu0 0.0
      %1190 = vmatpush1.msra.mxu0 %v908
      %1191 = vmatprep.subr.mxu0 0.0
      %1192 = vmatpush1.msra.mxu0 %v909
      %1193 = vmatprep.subr.mxu0 0.0
      %1194 = vmatpush1.msra.mxu0 %v910
      %1195 = vmatprep.subr.mxu0 0.0
      %1196 = vmatpush1.msra.mxu0 %v911
      %1197 = vmatprep.subr.mxu0 0.0
      %1198 = vmatpush1.msra.mxu0 %v912
      %1199 = vmatprep.subr.mxu0 0.0
      %1200 = vmatpush1.msra.mxu0 %v913
      %1201 = vmatprep.subr.mxu0 0.0
      %1202 = vmatpush1.msra.mxu0 %v914
      %1203 = vmatprep.subr.mxu0 0.0
      %1204 = vmatpush1.msra.mxu0 %v915
      %1205 = vmatprep.mubr.f32.mxu0 %v711
      %1206 = vmatmul.mubr.f32.gmra.mrb[0].mxu0 %v710
      %v1207 = vpop.f32.mrb[0].mxu0
      %v1208 = vadd.f32 %v1063, %v1207
      %v1209 = vpop.f32.mrb[0].mxu0
      %1210 = vmatprep.mubr.f32.mxu0 %v720
      %1211 = vmatmul.mubr.f32.gmra.mrb[0].mxu0 %v719
      %v1212 = vpop.f32.mrb[0].mxu0
      %v1213 = vadd.f32 %v1068, %v1212
      %v1214 = vpop.f32.mrb[0].mxu0
      %1215 = vmatprep.mubr.f32.mxu0 %v729
      %1216 = vmatmul.mubr.f32.gmra.mrb[0].mxu0 %v728
      %v1217 = vpop.f32.mrb[0].mxu0
      %v1218 = vadd.f32 %v1073, %v1217
      %v1219 = vpop.f32.mrb[0].mxu0
      %1220 = vmatprep.mubr.f32.mxu0 %v738
      %1221 = vmatmul.mubr.f32.gmra.mrb[0].mxu0 %v737
      %v1222 = vpop.f32.mrb[0].mxu0
      %v1223 = vadd.f32 %v1078, %v1222
      %v1224 = vpop.f32.mrb[0].mxu0
      %1225 = vmatprep.mubr.f32.mxu0 %v747
      %1226 = vmatmul.mubr.f32.gmra.mrb[0].mxu0 %v746
      %v1227 = vpop.f32.mrb[0].mxu0
      %v1228 = vadd.f32 %v1083, %v1227
      %v1229 = vpop.f32.mrb[0].mxu0
      %1230 = vmatprep.mubr.f32.mxu0 %v756
      %1231 = vmatmul.mubr.f32.gmra.mrb[0].mxu0 %v755
      %v1232 = vpop.f32.mrb[0].mxu0
      %v1233 = vadd.f32 %v1088, %v1232
      %v1234 = vpop.f32.mrb[0].mxu0
      %1235 = vmatprep.mubr.f32.mxu0 %v765
      %1236 = vmatmul.mubr.f32.gmra.mrb[0].mxu0 %v764
      %v1237 = vpop.f32.mrb[0].mxu0
      %v1238 = vadd.f32 %v1093, %v1237
      %v1239 = vpop.f32.mrb[0].mxu0
      %1240 = vmatprep.mubr.f32.mxu0 %v774
      %1241 = vmatmul.mubr.f32.gmra.mrb[0].mxu0 %v773
      %v1242 = vpop.f32.mrb[0].mxu0
      %v1243 = vadd.f32 %v1098, %v1242
      %v1244 = vpop.f32.mrb[0].mxu0
      %1245 = vmatprep.mubr.f32.mxu0 %v783
      %1246 = vmatmul.mubr.f32.gmra.mrb[0].mxu0 %v782
      %v1247 = vpop.f32.mrb[0].mxu0
      %v1248 = vadd.f32 %v1103, %v1247
      %v1249 = vpop.f32.mrb[0].mxu0
      %1250 = vmatprep.mubr.f32.mxu0 %v792
      %1251 = vmatmul.mubr.f32.gmra.mrb[0].mxu0 %v791
      %v1252 = vpop.f32.mrb[0].mxu0
      %v1253 = vadd.f32 %v1108, %v1252
      %v1254 = vpop.f32.mrb[0].mxu0
      %1255 = vmatprep.mubr.f32.mxu0 %v801
      %1256 = vmatmul.mubr.f32.gmra.mrb[0].mxu0 %v800
      %v1257 = vpop.f32.mrb[0].mxu0
      %v1258 = vadd.f32 %v1113, %v1257
      %v1259 = vpop.f32.mrb[0].mxu0
      %1260 = vmatprep.mubr.f32.mxu0 %v810
      %1261 = vmatmul.mubr.f32.gmra.mrb[0].mxu0 %v809
      %v1262 = vpop.f32.mrb[0].mxu0
      %v1263 = vadd.f32 %v1118, %v1262
      %v1264 = vpop.f32.mrb[0].mxu0
      %1265 = vmatprep.mubr.f32.mxu0 %v819
      %1266 = vmatmul.mubr.f32.gmra.mrb[0].mxu0 %v818
      %v1267 = vpop.f32.mrb[0].mxu0
      %v1268 = vadd.f32 %v1123, %v1267
      %v1269 = vpop.f32.mrb[0].mxu0
      %1270 = vmatprep.mubr.f32.mxu0 %v828
      %1271 = vmatmul.mubr.f32.gmra.mrb[0].mxu0 %v827
      %v1272 = vpop.f32.mrb[0].mxu0
      %v1273 = vadd.f32 %v1128, %v1272
      %v1274 = vpop.f32.mrb[0].mxu0
      %1275 = vmatprep.mubr.f32.mxu0 %v837
      %1276 = vmatmul.mubr.f32.gmra.mrb[0].mxu0 %v836
      %v1277 = vpop.f32.mrb[0].mxu0
      %v1278 = vadd.f32 %v1133, %v1277
      %v1279 = vpop.f32.mrb[0].mxu0
      %1280 = vmatprep.mubr.f32.mxu0 %v846
      %1281 = vmatmul.mubr.f32.gmra.mrb[0].mxu0 %v845
      %v1282 = vpop.f32.mrb[0].mxu0
      %v1283 = vadd.f32 %v1138, %v1282
      %v1284 = vpop.f32.mrb[0].mxu0
      %1285 = vdwg.mxu0
      %1286 = vmatprep.subr.mxu0 0.0
      %1287 = vmatpush1.msra.mxu0 %v916
      %1288 = vmatprep.subr.mxu0 0.0
      %1289 = vmatpush1.msra.mxu0 %v917
      %1290 = vmatprep.subr.mxu0 0.0
      %1291 = vmatpush1.msra.mxu0 %v918
      %1292 = vmatprep.subr.mxu0 0.0
      %1293 = vmatpush1.msra.mxu0 %v919
      %1294 = vmatprep.subr.mxu0 0.0
      %1295 = vmatpush1.msra.mxu0 %v920
      %1296 = vmatprep.subr.mxu0 0.0
      %1297 = vmatpush1.msra.mxu0 %v921
      %1298 = vmatprep.subr.mxu0 0.0
      %1299 = vmatpush1.msra.mxu0 %v922
      %1300 = vmatprep.subr.mxu0 0.0
      %1301 = vmatpush1.msra.mxu0 %v923
      %1302 = vmatprep.subr.mxu0 0.0
      %1303 = vmatpush1.msra.mxu0 %v924
      %1304 = vmatprep.subr.mxu0 0.0
      %1305 = vmatpush1.msra.mxu0 %v925
      %1306 = vmatprep.subr.mxu0 0.0
      %1307 = vmatpush1.msra.mxu0 %v926
      %1308 = vmatprep.subr.mxu0 0.0
      %1309 = vmatpush1.msra.mxu0 %v927
      %1310 = vmatprep.subr.mxu0 0.0
      %1311 = vmatpush1.msra.mxu0 %v928
      %1312 = vmatprep.subr.mxu0 0.0
      %1313 = vmatpush1.msra.mxu0 %v929
      %1314 = vmatprep.subr.mxu0 0.0
      %1315 = vmatpush1.msra.mxu0 %v930
      %1316 = vmatprep.subr.mxu0 0.0
      %1317 = vmatpush1.msra.mxu0 %v931
      %1318 = vmatprep.subr.mxu0 0.0
      %1319 = vmatpush1.msra.mxu0 %v932
      %1320 = vmatprep.subr.mxu0 0.0
      %1321 = vmatpush1.msra.mxu0 %v933
      %1322 = vmatprep.subr.mxu0 0.0
      %1323 = vmatpush1.msra.mxu0 %v934
      %1324 = vmatprep.subr.mxu0 0.0
      %1325 = vmatpush1.msra.mxu0 %v935
      %1326 = vmatprep.subr.mxu0 0.0
      %1327 = vmatpush1.msra.mxu0 %v936
      %1328 = vmatprep.subr.mxu0 0.0
      %1329 = vmatpush1.msra.mxu0 %v937
      %1330 = vmatprep.subr.mxu0 0.0
      %1331 = vmatpush1.msra.mxu0 %v938
      %1332 = vmatprep.subr.mxu0 0.0
      %1333 = vmatpush1.msra.mxu0 %v939
      %1334 = vmatprep.subr.mxu0 0.0
      %1335 = vmatpush1.msra.mxu0 %v940
      %1336 = vmatprep.subr.mxu0 0.0
      %1337 = vmatpush1.msra.mxu0 %v941
      %1338 = vmatprep.subr.mxu0 0.0
      %1339 = vmatpush1.msra.mxu0 %v942
      %1340 = vmatprep.subr.mxu0 0.0
      %1341 = vmatpush1.msra.mxu0 %v943
      %1342 = vmatprep.subr.mxu0 0.0
      %1343 = vmatpush1.msra.mxu0 %v944
      %1344 = vmatprep.subr.mxu0 0.0
      %1345 = vmatpush1.msra.mxu0 %v945
      %1346 = vmatprep.subr.mxu0 0.0
      %1347 = vmatpush1.msra.mxu0 %v946
      %1348 = vmatprep.subr.mxu0 0.0
      %1349 = vmatpush1.msra.mxu0 %v947
      %1350 = vmatprep.mubr.f32.mxu0 %v713
      %1351 = vmatmul.mubr.f32.gmra.mrb[0].mxu0 %v712
      %v1352 = vpop.f32.mrb[0].mxu0
      %v1353 = vadd.f32 %v1208, %v1352
      %v1354 = vpop.f32.mrb[0].mxu0
      %1355 = vmatprep.mubr.f32.mxu0 %v722
      %1356 = vmatmul.mubr.f32.gmra.mrb[0].mxu0 %v721
      %v1357 = vpop.f32.mrb[0].mxu0
      %v1358 = vadd.f32 %v1213, %v1357
      %v1359 = vpop.f32.mrb[0].mxu0
      %1360 = vmatprep.mubr.f32.mxu0 %v731
      %1361 = vmatmul.mubr.f32.gmra.mrb[0].mxu0 %v730
      %v1362 = vpop.f32.mrb[0].mxu0
      %v1363 = vadd.f32 %v1218, %v1362
      %v1364 = vpop.f32.mrb[0].mxu0
      %1365 = vmatprep.mubr.f32.mxu0 %v740
      %1366 = vmatmul.mubr.f32.gmra.mrb[0].mxu0 %v739
      %v1367 = vpop.f32.mrb[0].mxu0
      %v1368 = vadd.f32 %v1223, %v1367
      %v1369 = vpop.f32.mrb[0].mxu0
      %1370 = vmatprep.mubr.f32.mxu0 %v749
      %1371 = vmatmul.mubr.f32.gmra.mrb[0].mxu0 %v748
      %v1372 = vpop.f32.mrb[0].mxu0
      %v1373 = vadd.f32 %v1228, %v1372
      %v1374 = vpop.f32.mrb[0].mxu0
      %1375 = vmatprep.mubr.f32.mxu0 %v758
      %1376 = vmatmul.mubr.f32.gmra.mrb[0].mxu0 %v757
      %v1377 = vpop.f32.mrb[0].mxu0
      %v1378 = vadd.f32 %v1233, %v1377
      %v1379 = vpop.f32.mrb[0].mxu0
      %1380 = vmatprep.mubr.f32.mxu0 %v767
      %1381 = vmatmul.mubr.f32.gmra.mrb[0].mxu0 %v766
      %v1382 = vpop.f32.mrb[0].mxu0
      %v1383 = vadd.f32 %v1238, %v1382
      %v1384 = vpop.f32.mrb[0].mxu0
      %1385 = vmatprep.mubr.f32.mxu0 %v776
      %1386 = vmatmul.mubr.f32.gmra.mrb[0].mxu0 %v775
      %v1387 = vpop.f32.mrb[0].mxu0
      %v1388 = vadd.f32 %v1243, %v1387
      %v1389 = vpop.f32.mrb[0].mxu0
      %1390 = vmatprep.mubr.f32.mxu0 %v785
      %1391 = vmatmul.mubr.f32.gmra.mrb[0].mxu0 %v784
      %v1392 = vpop.f32.mrb[0].mxu0
      %v1393 = vadd.f32 %v1248, %v1392
      %v1394 = vpop.f32.mrb[0].mxu0
      %1395 = vmatprep.mubr.f32.mxu0 %v794
      %1396 = vmatmul.mubr.f32.gmra.mrb[0].mxu0 %v793
      %v1397 = vpop.f32.mrb[0].mxu0
      %v1398 = vadd.f32 %v1253, %v1397
      %v1399 = vpop.f32.mrb[0].mxu0
      %1400 = vmatprep.mubr.f32.mxu0 %v803
      %1401 = vmatmul.mubr.f32.gmra.mrb[0].mxu0 %v802
      %v1402 = vpop.f32.mrb[0].mxu0
      %v1403 = vadd.f32 %v1258, %v1402
      %v1404 = vpop.f32.mrb[0].mxu0
      %1405 = vmatprep.mubr.f32.mxu0 %v812
      %1406 = vmatmul.mubr.f32.gmra.mrb[0].mxu0 %v811
      %v1407 = vpop.f32.mrb[0].mxu0
      %v1408 = vadd.f32 %v1263, %v1407
      %v1409 = vpop.f32.mrb[0].mxu0
      %1410 = vmatprep.mubr.f32.mxu0 %v821
      %1411 = vmatmul.mubr.f32.gmra.mrb[0].mxu0 %v820
      %v1412 = vpop.f32.mrb[0].mxu0
      %v1413 = vadd.f32 %v1268, %v1412
      %v1414 = vpop.f32.mrb[0].mxu0
      %1415 = vmatprep.mubr.f32.mxu0 %v830
      %1416 = vmatmul.mubr.f32.gmra.mrb[0].mxu0 %v829
      %v1417 = vpop.f32.mrb[0].mxu0
      %v1418 = vadd.f32 %v1273, %v1417
      %v1419 = vpop.f32.mrb[0].mxu0
      %1420 = vmatprep.mubr.f32.mxu0 %v839
      %1421 = vmatmul.mubr.f32.gmra.mrb[0].mxu0 %v838
      %v1422 = vpop.f32.mrb[0].mxu0
      %v1423 = vadd.f32 %v1278, %v1422
      %v1424 = vpop.f32.mrb[0].mxu0
      %1425 = vmatprep.mubr.f32.mxu0 %v848
      %1426 = vmatmul.mubr.f32.gmra.mrb[0].mxu0 %v847
      %v1427 = vpop.f32.mrb[0].mxu0
      %v1428 = vadd.f32 %v1283, %v1427
      %v1429 = vpop.f32.mrb[0].mxu0
      %1430 = vdwg.mxu0
      %1431 = vmatprep.subr.mxu0 0.0
      %1432 = vmatpush1.msra.mxu0 %v948
      %1433 = vmatprep.subr.mxu0 0.0
      %1434 = vmatpush1.msra.mxu0 %v949
      %1435 = vmatprep.subr.mxu0 0.0
      %1436 = vmatpush1.msra.mxu0 %v950
      %1437 = vmatprep.subr.mxu0 0.0
      %1438 = vmatpush1.msra.mxu0 %v951
      %1439 = vmatprep.subr.mxu0 0.0
      %1440 = vmatpush1.msra.mxu0 %v952
      %1441 = vmatprep.subr.mxu0 0.0
      %1442 = vmatpush1.msra.mxu0 %v953
      %1443 = vmatprep.subr.mxu0 0.0
      %1444 = vmatpush1.msra.mxu0 %v954
      %1445 = vmatprep.subr.mxu0 0.0
      %1446 = vmatpush1.msra.mxu0 %v955
      %1447 = vmatprep.subr.mxu0 0.0
      %1448 = vmatpush1.msra.mxu0 %v956
      %1449 = vmatprep.subr.mxu0 0.0
      %1450 = vmatpush1.msra.mxu0 %v957
      %1451 = vmatprep.subr.mxu0 0.0
      %1452 = vmatpush1.msra.mxu0 %v958
      %1453 = vmatprep.subr.mxu0 0.0
      %1454 = vmatpush1.msra.mxu0 %v959
      %1455 = vmatprep.subr.mxu0 0.0
      %1456 = vmatpush1.msra.mxu0 %v960
      %1457 = vmatprep.subr.mxu0 0.0
      %1458 = vmatpush1.msra.mxu0 %v961
      %1459 = vmatprep.subr.mxu0 0.0
      %1460 = vmatpush1.msra.mxu0 %v962
      %1461 = vmatprep.subr.mxu0 0.0
      %1462 = vmatpush1.msra.mxu0 %v963
      %1463 = vmatprep.subr.mxu0 0.0
      %1464 = vmatpush1.msra.mxu0 %v964
      %1465 = vmatprep.subr.mxu0 0.0
      %1466 = vmatpush1.msra.mxu0 %v965
      %1467 = vmatprep.subr.mxu0 0.0
      %1468 = vmatpush1.msra.mxu0 %v966
      %1469 = vmatprep.subr.mxu0 0.0
      %1470 = vmatpush1.msra.mxu0 %v967
      %1471 = vmatprep.subr.mxu0 0.0
      %1472 = vmatpush1.msra.mxu0 %v968
      %1473 = vmatprep.subr.mxu0 0.0
      %1474 = vmatpush1.msra.mxu0 %v969
      %1475 = vmatprep.subr.mxu0 0.0
      %1476 = vmatpush1.msra.mxu0 %v970
      %1477 = vmatprep.subr.mxu0 0.0
      %1478 = vmatpush1.msra.mxu0 %v971
      %1479 = vmatprep.subr.mxu0 0.0
      %1480 = vmatpush1.msra.mxu0 %v972
      %1481 = vmatprep.subr.mxu0 0.0
      %1482 = vmatpush1.msra.mxu0 %v973
      %1483 = vmatprep.subr.mxu0 0.0
      %1484 = vmatpush1.msra.mxu0 %v974
      %1485 = vmatprep.subr.mxu0 0.0
      %1486 = vmatpush1.msra.mxu0 %v975
      %1487 = vmatprep.subr.mxu0 0.0
      %1488 = vmatpush1.msra.mxu0 %v976
      %1489 = vmatprep.subr.mxu0 0.0
      %1490 = vmatpush1.msra.mxu0 %v977
      %1491 = vmatprep.subr.mxu0 0.0
      %1492 = vmatpush1.msra.mxu0 %v978
      %1493 = vmatprep.subr.mxu0 0.0
      %1494 = vmatpush1.msra.mxu0 %v979
      %1495 = vmatprep.mubr.f32.mxu0 %v715
      %1496 = vmatmul.mubr.f32.gmra.mrb[0].mxu0 %v714
      %v1497 = vpop.f32.mrb[0].mxu0
      %v1498 = vadd.f32 %v1353, %v1497
      %v1499 = vpop.f32.mrb[0].mxu0
      %1500 = vmatprep.mubr.f32.mxu0 %v724
      %1501 = vmatmul.mubr.f32.gmra.mrb[0].mxu0 %v723
      %v1502 = vpop.f32.mrb[0].mxu0
      %v1503 = vadd.f32 %v1358, %v1502
      %v1504 = vpop.f32.mrb[0].mxu0
      %1505 = vmatprep.mubr.f32.mxu0 %v733
      %1506 = vmatmul.mubr.f32.gmra.mrb[0].mxu0 %v732
      %v1507 = vpop.f32.mrb[0].mxu0
      %v1508 = vadd.f32 %v1363, %v1507
      %v1509 = vpop.f32.mrb[0].mxu0
      %1510 = vmatprep.mubr.f32.mxu0 %v742
      %1511 = vmatmul.mubr.f32.gmra.mrb[0].mxu0 %v741
      %v1512 = vpop.f32.mrb[0].mxu0
      %v1513 = vadd.f32 %v1368, %v1512
      %v1514 = vpop.f32.mrb[0].mxu0
      %1515 = vmatprep.mubr.f32.mxu0 %v751
      %1516 = vmatmul.mubr.f32.gmra.mrb[0].mxu0 %v750
      %v1517 = vpop.f32.mrb[0].mxu0
      %v1518 = vadd.f32 %v1373, %v1517
      %v1519 = vpop.f32.mrb[0].mxu0
      %1520 = vmatprep.mubr.f32.mxu0 %v760
      %1521 = vmatmul.mubr.f32.gmra.mrb[0].mxu0 %v759
      %v1522 = vpop.f32.mrb[0].mxu0
      %v1523 = vadd.f32 %v1378, %v1522
      %v1524 = vpop.f32.mrb[0].mxu0
      %1525 = vmatprep.mubr.f32.mxu0 %v769
      %1526 = vmatmul.mubr.f32.gmra.mrb[0].mxu0 %v768
      %v1527 = vpop.f32.mrb[0].mxu0
      %v1528 = vadd.f32 %v1383, %v1527
      %v1529 = vpop.f32.mrb[0].mxu0
      %1530 = vmatprep.mubr.f32.mxu0 %v778
      %1531 = vmatmul.mubr.f32.gmra.mrb[0].mxu0 %v777
      %v1532 = vpop.f32.mrb[0].mxu0
      %v1533 = vadd.f32 %v1388, %v1532
      %v1534 = vpop.f32.mrb[0].mxu0
      %1535 = vmatprep.mubr.f32.mxu0 %v787
      %1536 = vmatmul.mubr.f32.gmra.mrb[0].mxu0 %v786
      %v1537 = vpop.f32.mrb[0].mxu0
      %v1538 = vadd.f32 %v1393, %v1537
      %v1539 = vpop.f32.mrb[0].mxu0
      %1540 = vmatprep.mubr.f32.mxu0 %v796
      %1541 = vmatmul.mubr.f32.gmra.mrb[0].mxu0 %v795
      %v1542 = vpop.f32.mrb[0].mxu0
      %v1543 = vadd.f32 %v1398, %v1542
      %v1544 = vpop.f32.mrb[0].mxu0
      %1545 = vmatprep.mubr.f32.mxu0 %v805
      %1546 = vmatmul.mubr.f32.gmra.mrb[0].mxu0 %v804
      %v1547 = vpop.f32.mrb[0].mxu0
      %v1548 = vadd.f32 %v1403, %v1547
      %v1549 = vpop.f32.mrb[0].mxu0
      %1550 = vmatprep.mubr.f32.mxu0 %v814
      %1551 = vmatmul.mubr.f32.gmra.mrb[0].mxu0 %v813
      %v1552 = vpop.f32.mrb[0].mxu0
      %v1553 = vadd.f32 %v1408, %v1552
      %v1554 = vpop.f32.mrb[0].mxu0
      %1555 = vmatprep.mubr.f32.mxu0 %v823
      %1556 = vmatmul.mubr.f32.gmra.mrb[0].mxu0 %v822
      %v1557 = vpop.f32.mrb[0].mxu0
      %v1558 = vadd.f32 %v1413, %v1557
      %v1559 = vpop.f32.mrb[0].mxu0
      %1560 = vmatprep.mubr.f32.mxu0 %v832
      %1561 = vmatmul.mubr.f32.gmra.mrb[0].mxu0 %v831
      %v1562 = vpop.f32.mrb[0].mxu0
      %v1563 = vadd.f32 %v1418, %v1562
      %v1564 = vpop.f32.mrb[0].mxu0
      %1565 = vmatprep.mubr.f32.mxu0 %v841
      %1566 = vmatmul.mubr.f32.gmra.mrb[0].mxu0 %v840
      %v1567 = vpop.f32.mrb[0].mxu0
      %v1568 = vadd.f32 %v1423, %v1567
      %v1569 = vpop.f32.mrb[0].mxu0
      %1570 = vmatprep.mubr.f32.mxu0 %v850
      %1571 = vmatmul.mubr.f32.gmra.mrb[0].mxu0 %v849
      %v1572 = vpop.f32.mrb[0].mxu0
      %v1573 = vadd.f32 %v1428, %v1572
      %v1574 = vpop.f32.mrb[0].mxu0
      %1575 = vdwg.mxu0
      %1576 = vmatprep.subr.mxu0 0.0
      %1577 = vmatpush1.msra.mxu0 %v980
      %1578 = vmatprep.subr.mxu0 0.0
      %1579 = vmatpush1.msra.mxu0 %v981
      %1580 = vmatprep.subr.mxu0 0.0
      %1581 = vmatpush1.msra.mxu0 %v982
      %1582 = vmatprep.subr.mxu0 0.0
      %1583 = vmatpush1.msra.mxu0 %v983
      %1584 = vmatprep.subr.mxu0 0.0
      %1585 = vmatpush1.msra.mxu0 %v984
      %1586 = vmatprep.subr.mxu0 0.0
      %1587 = vmatpush1.msra.mxu0 %v985
      %1588 = vmatprep.subr.mxu0 0.0
      %1589 = vmatpush1.msra.mxu0 %v986
      %1590 = vmatprep.subr.mxu0 0.0
      %1591 = vmatpush1.msra.mxu0 %v987
      %1592 = vmatprep.subr.mxu0 0.0
      %1593 = vmatpush1.msra.mxu0 %v988
      %1594 = vmatprep.subr.mxu0 0.0
      %1595 = vmatpush1.msra.mxu0 %v989
      %1596 = vmatprep.subr.mxu0 0.0
      %1597 = vmatpush1.msra.mxu0 %v990
      %1598 = vmatprep.subr.mxu0 0.0
      %1599 = vmatpush1.msra.mxu0 %v991
      %1600 = vmatprep.subr.mxu0 0.0
      %1601 = vmatpush1.msra.mxu0 %v992
      %1602 = vmatprep.subr.mxu0 0.0
      %1603 = vmatpush1.msra.mxu0 %v993
      %1604 = vmatprep.subr.mxu0 0.0
      %1605 = vmatpush1.msra.mxu0 %v994
      %1606 = vmatprep.subr.mxu0 0.0
      %1607 = vmatpush1.msra.mxu0 %v995
      %1608 = vmatprep.subr.mxu0 0.0
      %1609 = vmatpush1.msra.mxu0 0.0
      %1610 = vmatprep.subr.mxu0 0.0
      %1611 = vmatpush1.msra.mxu0 0.0
      %1612 = vmatprep.subr.mxu0 0.0
      %1613 = vmatpush1.msra.mxu0 0.0
      %1614 = vmatprep.subr.mxu0 0.0
      %1615 = vmatpush1.msra.mxu0 0.0
      %1616 = vmatprep.subr.mxu0 0.0
      %1617 = vmatpush1.msra.mxu0 0.0
      %1618 = vmatprep.subr.mxu0 0.0
      %1619 = vmatpush1.msra.mxu0 0.0
      %1620 = vmatprep.subr.mxu0 0.0
      %1621 = vmatpush1.msra.mxu0 0.0
      %1622 = vmatprep.subr.mxu0 0.0
      %1623 = vmatpush1.msra.mxu0 0.0
      %1624 = vmatprep.subr.mxu0 0.0
      %1625 = vmatpush1.msra.mxu0 0.0
      %1626 = vmatprep.subr.mxu0 0.0
      %1627 = vmatpush1.msra.mxu0 0.0
      %1628 = vmatprep.subr.mxu0 0.0
      %1629 = vmatpush1.msra.mxu0 0.0
      %1630 = vmatprep.subr.mxu0 0.0
      %1631 = vmatpush1.msra.mxu0 0.0
      %1632 = vmatprep.subr.mxu0 0.0
      %1633 = vmatpush1.msra.mxu0 0.0
      %1634 = vmatprep.subr.mxu0 0.0
      %1635 = vmatpush1.msra.mxu0 0.0
      %1636 = vmatprep.subr.mxu0 0.0
      %1637 = vmatpush1.msra.mxu0 0.0
      %1638 = vmatprep.subr.mxu0 0.0
      %1639 = vmatpush1.msra.mxu0 0.0
      %1640 = vmatprep.mubr.f32.mxu0 0.0
      %1641 = vmatmul.mubr.f32.gmra.mrb[0].mxu0 %v716
      %v1642 = vpop.f32.mrb[0].mxu0
      %v1643 = vadd.f32 %v1498, %v1642
      %v1644 = vpop.f32.mrb[0].mxu0
      %1645 = vmatprep.mubr.f32.mxu0 0.0
      %1646 = vmatmul.mubr.f32.gmra.mrb[0].mxu0 %v725
      %v1647 = vpop.f32.mrb[0].mxu0
      %v1648 = vadd.f32 %v1503, %v1647
      %v1649 = vpop.f32.mrb[0].mxu0
      %1650 = vmatprep.mubr.f32.mxu0 0.0
      %1651 = vmatmul.mubr.f32.gmra.mrb[0].mxu0 %v734
      %v1652 = vpop.f32.mrb[0].mxu0
      %v1653 = vadd.f32 %v1508, %v1652
      %v1654 = vpop.f32.mrb[0].mxu0
      %1655 = vmatprep.mubr.f32.mxu0 0.0
      %1656 = vmatmul.mubr.f32.gmra.mrb[0].mxu0 %v743
      %v1657 = vpop.f32.mrb[0].mxu0
      %v1658 = vadd.f32 %v1513, %v1657
      %v1659 = vpop.f32.mrb[0].mxu0
      %1660 = vmatprep.mubr.f32.mxu0 0.0
      %1661 = vmatmul.mubr.f32.gmra.mrb[0].mxu0 %v752
      %v1662 = vpop.f32.mrb[0].mxu0
      %v1663 = vadd.f32 %v1518, %v1662
      %v1664 = vpop.f32.mrb[0].mxu0
      %1665 = vmatprep.mubr.f32.mxu0 0.0
      %1666 = vmatmul.mubr.f32.gmra.mrb[0].mxu0 %v761
      %v1667 = vpop.f32.mrb[0].mxu0
      %v1668 = vadd.f32 %v1523, %v1667
      %v1669 = vpop.f32.mrb[0].mxu0
      %1670 = vmatprep.mubr.f32.mxu0 0.0
      %1671 = vmatmul.mubr.f32.gmra.mrb[0].mxu0 %v770
      %v1672 = vpop.f32.mrb[0].mxu0
      %v1673 = vadd.f32 %v1528, %v1672
      %v1674 = vpop.f32.mrb[0].mxu0
      %1675 = vmatprep.mubr.f32.mxu0 0.0
      %1676 = vmatmul.mubr.f32.gmra.mrb[0].mxu0 %v779
      %v1677 = vpop.f32.mrb[0].mxu0
      %v1678 = vadd.f32 %v1533, %v1677
      %v1679 = vpop.f32.mrb[0].mxu0
      %1680 = vmatprep.mubr.f32.mxu0 0.0
      %1681 = vmatmul.mubr.f32.gmra.mrb[0].mxu0 %v788
      %v1682 = vpop.f32.mrb[0].mxu0
      %v1683 = vadd.f32 %v1538, %v1682
      %v1684 = vpop.f32.mrb[0].mxu0
      %1685 = vmatprep.mubr.f32.mxu0 0.0
      %1686 = vmatmul.mubr.f32.gmra.mrb[0].mxu0 %v797
      %v1687 = vpop.f32.mrb[0].mxu0
      %v1688 = vadd.f32 %v1543, %v1687
      %v1689 = vpop.f32.mrb[0].mxu0
      %1690 = vmatprep.mubr.f32.mxu0 0.0
      %1691 = vmatmul.mubr.f32.gmra.mrb[0].mxu0 %v806
      %v1692 = vpop.f32.mrb[0].mxu0
      %v1693 = vadd.f32 %v1548, %v1692
      %v1694 = vpop.f32.mrb[0].mxu0
      %1695 = vmatprep.mubr.f32.mxu0 0.0
      %1696 = vmatmul.mubr.f32.gmra.mrb[0].mxu0 %v815
      %v1697 = vpop.f32.mrb[0].mxu0
      %v1698 = vadd.f32 %v1553, %v1697
      %v1699 = vpop.f32.mrb[0].mxu0
      %1700 = vmatprep.mubr.f32.mxu0 0.0
      %1701 = vmatmul.mubr.f32.gmra.mrb[0].mxu0 %v824
      %v1702 = vpop.f32.mrb[0].mxu0
      %v1703 = vadd.f32 %v1558, %v1702
      %v1704 = vpop.f32.mrb[0].mxu0
      %1705 = vmatprep.mubr.f32.mxu0 0.0
      %1706 = vmatmul.mubr.f32.gmra.mrb[0].mxu0 %v833
      %v1707 = vpop.f32.mrb[0].mxu0
      %v1708 = vadd.f32 %v1563, %v1707
      %v1709 = vpop.f32.mrb[0].mxu0
      %1710 = vmatprep.mubr.f32.mxu0 0.0
      %1711 = vmatmul.mubr.f32.gmra.mrb[0].mxu0 %v842
      %v1712 = vpop.f32.mrb[0].mxu0
      %v1713 = vadd.f32 %v1568, %v1712
      %v1714 = vpop.f32.mrb[0].mxu0
      %1715 = vmatprep.mubr.f32.mxu0 0.0
      %1716 = vmatmul.mubr.f32.gmra.mrb[0].mxu0 %v851
      %v1717 = vpop.f32.mrb[0].mxu0
      %v1718 = vadd.f32 %v1573, %v1717
      %v1719 = vpop.f32.mrb[0].mxu0
      %1720 = vdwg.mxu0
      %1721 = vst [vmem:[%s408] sm:$0xff] %v1643
      %1722 = vst [vmem:[%s408 + $0x8] sm:$0xff] %v1648
      %1723 = vst [vmem:[%s408 + $0x10] sm:$0xff] %v1653
      %1724 = vst [vmem:[%s408 + $0x18] sm:$0xff] %v1658
      %1725 = vst [vmem:[%s408 + $0x20] sm:$0xff] %v1663
      %1726 = vst [vmem:[%s408 + $0x28] sm:$0xff] %v1668
      %1727 = vst [vmem:[%s408 + $0x30] sm:$0xff] %v1673
      %1728 = vst [vmem:[%s408 + $0x38] sm:$0xff] %v1678
      %1729 = vst [vmem:[%s408 + $0x40] sm:$0xff] %v1683
      %1730 = vst [vmem:[%s408 + $0x48] sm:$0xff] %v1688
      %1731 = vst [vmem:[%s408 + $0x50] sm:$0xff] %v1693
      %1732 = vst [vmem:[%s408 + $0x58] sm:$0xff] %v1698
      %1733 = vst [vmem:[%s408 + $0x60] sm:$0xff] %v1703
      %1734 = vst [vmem:[%s408 + $0x68] sm:$0xff] %v1708
      %1735 = vst [vmem:[%s408 + $0x70] sm:$0xff] %v1713
      %1736 = vst [vmem:[%s408 + $0x78] sm:$0xff] %v1718
      %v1737 = vadd.f32 %v1643, %v1648
      %v1738 = vadd.f32 %v1737, %v1653
      %v1739 = vadd.f32 %v1738, %v1658
      %v1740 = vadd.f32 %v1739, %v1663
      %v1741 = vadd.f32 %v1740, %v1668
      %v1742 = vadd.f32 %v1741, %v1673
      %v1743 = vadd.f32 %v1742, %v1678
      %v1744 = vadd.f32 %v1743, %v1683
      %v1745 = vadd.f32 %v1744, %v1688
      %v1746 = vadd.f32 %v1745, %v1693
      %v1747 = vadd.f32 %v1746, %v1698
      %v1748 = vadd.f32 %v1747, %v1703
      %v1749 = vadd.f32 %v1748, %v1708
      %v1750 = vadd.f32 %v1749, %v1713
      %v1751 = vadd.f32 %v1750, %v1718
      %v1752 = vrot.slane %v1751, 4
      %v1753 = vadd.f32 %v1751, %v1752
      %v1754 = vrot.slane %v1753, 2
      %v1755 = vadd.f32 %v1753, %v1754
      %v1756 = vrot.slane %v1755, 1
      %v1757 = vadd.f32 %v1755, %v1756
      %v1758 = vmul.f32 %v1643, %v1643
      %v1759 = vmul.f32 %v1648, %v1648
      %v1760 = vmul.f32 %v1653, %v1653
      %v1761 = vmul.f32 %v1658, %v1658
      %v1762 = vmul.f32 %v1663, %v1663
      %v1763 = vmul.f32 %v1668, %v1668
      %v1764 = vmul.f32 %v1673, %v1673
      %v1765 = vmul.f32 %v1678, %v1678
      %v1766 = vmul.f32 %v1683, %v1683
      %v1767 = vmul.f32 %v1688, %v1688
      %v1768 = vmul.f32 %v1693, %v1693
      %v1769 = vmul.f32 %v1698, %v1698
      %v1770 = vmul.f32 %v1703, %v1703
      %v1771 = vmul.f32 %v1708, %v1708
      %v1772 = vmul.f32 %v1713, %v1713
      %v1773 = vmul.f32 %v1718, %v1718
      %v1774 = vadd.f32 %v1758, %v1759
      %v1775 = vadd.f32 %v1774, %v1760
      %v1776 = vadd.f32 %v1775, %v1761
      %v1777 = vadd.f32 %v1776, %v1762
      %v1778 = vadd.f32 %v1777, %v1763
      %v1779 = vadd.f32 %v1778, %v1764
      %v1780 = vadd.f32 %v1779, %v1765
      %v1781 = vadd.f32 %v1780, %v1766
      %v1782 = vadd.f32 %v1781, %v1767
      %v1783 = vadd.f32 %v1782, %v1768
      %v1784 = vadd.f32 %v1783, %v1769
      %v1785 = vadd.f32 %v1784, %v1770
      %v1786 = vadd.f32 %v1785, %v1771
      %v1787 = vadd.f32 %v1786, %v1772
      %v1788 = vadd.f32 %v1787, %v1773
      %v1789 = vrot.slane %v1788, 4
      %v1790 = vadd.f32 %v1788, %v1789
      %v1791 = vrot.slane %v1790, 2
      %v1792 = vadd.f32 %v1790, %v1791
      %v1793 = vrot.slane %v1792, 1
      %v1794 = vadd.f32 %v1792, %v1793
      %vm1795 = vcmask 1040384
      %v1796 = vsel %vm1795, %v1757, %v1794
      %1797 = vst [vmem:[%s417] sm:$0x3] %v1796
      %s1798 = smul.u32 8, %s22
      %p1799 = scmp.lt.s32.totalorder %s21, 1
      %s1800 = scalar_select %p1799, %s21, 1
      %p1801 = scmp.lt.s32.totalorder %s1798, 15
      %s1802 = scalar_select %p1801, %s1798, 15
      %s1803 = smul.addr %s1802, 2
      %s1804 = smul.addr %s1800, 32
      %s1805 = sadd.s32 %s1803, %s1804
      %s1806 = smul.addr %s1805, 8
      %s1807 = scalar_lea.vmem %s4, %s1806
      %p1808 = scmp.lt.s32.totalorder %s21, 1
      %s1809 = scalar_select %p1808, %s21, 1
      %p1810 = scmp.lt.s32.totalorder %s22, 1
      %s1811 = scalar_select %p1810, %s22, 1
      %s1812 = smul.addr %s1809, 2
      %s1813 = sadd.s32 %s1811, %s1812
      %s1814 = smul.addr %s1813, 2
      %s1815 = scalar_lea.vmem %s5, %s1814
      // Predicated region
      $region37: #{basic_block_e.3} parent=35 // pred_check
        %p1816 = pneg %p164
      $region38: #{basic_block_e.3} parent=35 // pred_check_branch
        %1818 = sbr.rel (%p1816) target = $region40
      $region39: #{basic_block_e.3} parent=35 // pred_region
        %s1819 = smul.u32 8, %s22
      $region40: #{basic_block_e.3} parent=35 // pred_fallthru
        _
      // Predicated region
      $region41: #{basic_block_e.3} parent=35 // pred_check
        %p1820 = pneg %p192
      $region42: #{basic_block_e.3} parent=35 // pred_check_branch
        %1822 = sbr.rel (%p1820) target = $region44
      $region43: #{basic_block_e.3} parent=35 // pred_region
        _
      $region44: #{basic_block_e.3} parent=35 // pred_fallthru
        _
    $region36: #{basic_block_e.3} parent=5 // pred_fallthru
      _
    %p1823 = scmp.le.s32.totalorder 2, %s12
    // Predicated region
    $region45: #{basic_block_e.3} parent=5 // pred_check
      %p1824 = pneg %p1823
    $region46: #{basic_block_e.3} parent=5 // pred_check_branch
      %1826 = sbr.rel (%p1824) target = $region48
    $region47: #{basic_block_e.3} parent=5 // pred_region
      %s1827 = ssub.s32 %s12, 2
      // Predicated region
      $region49: #{basic_block_e.3} parent=47 // pred_check
        %p1828 = pneg %p170
      $region50: #{basic_block_e.3} parent=47 // pred_check_branch
        %1830 = sbr.rel (%p1828) target = $region52
      $region51: #{basic_block_e.3} parent=47 // pred_region
        %s1831 = smul.u32 8, %s24
        %p1832 = scmp.lt.s32.totalorder %s23, 1
        %s1833 = scalar_select %p1832, %s23, 1
        %p1834 = scmp.lt.s32.totalorder %s1831, 15
        %s1835 = scalar_select %p1834, %s1831, 15
        %s1836 = smul.addr %s1835, 2
        %s1837 = smul.addr %s1833, 32
        %s1838 = sadd.s32 %s1836, %s1837
        %s1839 = smul.addr %s1838, 8
        %s1840 = scalar_lea.vmem %s4, %s1839
      $region52: #{basic_block_e.3} parent=47 // pred_fallthru
        _
      // Predicated region
      $region53: #{basic_block_e.3} parent=47 // pred_check
        %p1841 = pneg %p198
      $region54: #{basic_block_e.3} parent=47 // pred_check_branch
        %1843 = sbr.rel (%p1841) target = $region56
      $region55: #{basic_block_e.3} parent=47 // pred_region
        %p1844 = scmp.lt.s32.totalorder %s23, 1
        %s1845 = scalar_select %p1844, %s23, 1
        %p1846 = scmp.lt.s32.totalorder %s24, 1
        %s1847 = scalar_select %p1846, %s24, 1
        %s1848 = smul.addr %s1845, 2
        %s1849 = sadd.s32 %s1847, %s1848
        %s1850 = smul.addr %s1849, 2
        %s1851 = scalar_lea.vmem %s5, %s1850
      $region56: #{basic_block_e.3} parent=47 // pred_fallthru
        _
    $region48: #{basic_block_e.3} parent=5 // pred_fallthru
      _
  $region6: #{basic_block_e.3} parent=0 // loop_footer
    %s16 = sadd.s32 1, %s12
  $region7: #{basic_block_e.3} parent=0 // loop_footer_branch
    %11 = sbr.rel target = $region3
  $region8: #{basic_block_e.3} parent=0 // loop_exit
    _

// kernel: basic_block_e.4
$region0: #{basic_block_e.4}
  #allocation0 [shape = 'u32[]', space=smem, size = 0x4, offset = 0x4, fixed_abs, tag = 'smem constant byte address 0x4 - core index']
  #allocation1 [shape = 'u32[144,128]{1,0:T(1,128)}', space=vmem, size = 0x12000, scoped, tag = 'internal scratch']
  #allocation2 [shape = 'f32[10,18,128]{2,1,0:T(8,128)}', space=vmem, size = 0x1e000, scoped, tag = 'scratch operand']
  #allocation3 [shape = 'f32[128,1152]{1,0:T(8,128)}', space=vmem, size = 0x90000, scoped, tag = 'scratch operand']
  %s0 = inlined_call_operand.vmem [shape: f32[2,16,16,128], index: 0, kind: input, shape index: {}, may-alias: {0,1,2}]
  %s1 = inlined_call_operand.vmem [shape: f32[2,16,16,128], index: 1, kind: input, shape index: {}, may-alias: {0,1,2}]
  %s2 = inlined_call_operand.vmem [shape: f32[2,16,16,128], index: 2, kind: input, shape index: {}, may-alias: {0,1,2}]
  %s3 = inlined_call_operand.vmem [shape: f32[1,128], index: 3, kind: input, shape index: {}]
  %s4 = inlined_call_operand.vmem [shape: f32[1,128], index: 4, kind: input, shape index: {}]
  %s5 = inlined_call_operand.vmem [shape: f32[1152,128], index: 5, kind: input, shape index: {}]
  %s6 = inlined_call_operand.vmem [shape: f32[2,16,16,128], index: 6, kind: output, shape index: {0}]
  %s7 = inlined_call_operand.vmem [shape: f32[2,2,2,128], index: 7, kind: output, shape index: {1}]
  %8 = xla_tuple %s6, %s7
  %s9 = sld [smem:[#allocation0]]
  $region65: #{basic_block_e.4} parent=0
    _
  %s11 = ssub.s32 1, %s9
  %s12 = scalar_select 0, %s11, %s9
  loop: start=0, step=1, limit=6
  $region2: #{basic_block_e.4} parent=0 // loop_pre_header
    _
  $region3: #{basic_block_e.4} parent=0 // loop_header
    %s14 = sphi 0, %s18
    %p15 = scmp.ge.s32.totalorder %s14, 6
    %s21 = sphi 0, %s33
    %s22 = sphi 0, %s29
    %s23 = sphi 0, %s21
    %s24 = sphi 0, %s22
    %s25 = sphi 0, %s23
    %s26 = sphi 0, %s24
    %s38 = sphi 0, %s40
    %s41 = sphi 0, %s38
    %s42 = sphi 0, %s41
    %s58 = sphi 0, %s42
    %s74 = sphi 0, %s76
    %s77 = sphi 0, %s74
    %s78 = sphi 0, %s77
    %s94 = sphi 0, %s78
    %s110 = sphi 0, %s112
    %s113 = sphi 0, %s110
    %s114 = sphi 0, %s113
    %s130 = sphi 0, %s114
    %s134 = sphi 0, %s134
    %s136 = sphi 0, %s134
    %s137 = sphi 0, %s136
    %s151 = sphi 0, %s137
    %s155 = sphi 0, %s155
    %s157 = sphi 0, %s155
    %s158 = sphi 0, %s157
    %s172 = sphi 0, %s158
    %s176 = sphi 0, %s176
    %s178 = sphi 0, %s176
    %s179 = sphi 0, %s178
    %s193 = sphi 0, %s179
    %s201 = sphi 0, %s203
    %s204 = sphi 0, %s201
    %s205 = sphi 0, %s204
    %s221 = sphi 0, %s205
    %s229 = sphi 0, %s231
    %s232 = sphi 0, %s229
    %s233 = sphi 0, %s232
    %s249 = sphi 0, %s233
  $region4: #{basic_block_e.4} parent=0 // loop_header_branch
    %17 = sbr.rel (%p15) target = $region8
  $region5: #{basic_block_e.4} parent=0 // loop_body
    %s19 = ssub.s32 %s14, 1
    %s20 = ssub.s32 %s14, 2
    %s27 = sadd.s32 1, %s22
    %p28 = scmp.ge.s32.totalorder %s27, 2
    %s29 = scalar_select %p28, 0, %s27
    %s30 = sadd.s32 1, %s21
    %s31 = scalar_select %p28, %s30, %s21
    %p32 = scmp.ge.s32.totalorder %s31, 2
    %s33 = scalar_select %p32, 0, %s31
    %s34 = ssub.s32 %s21, %s33
    %s35 = ssub.s32 %s22, %s29
    %s36 = sor.u32 %s34, %s35
    %p37 = scmp.eq.s32.totalorder %s36, 0
    %s39 = sadd.s32 %s38, 1
    %s40 = scalar_select %p37, %s38, %s39
    %p43 = pneg %p37
    %p44 = scmp.eq.s32.totalorder %s14, 3
    %p45 = por %p43, %p44
    %p46 = scmp.ne.s32.totalorder %s38, %s41
    %p47 = scmp.eq.s32.totalorder %s14, 0
    %p48 = por %p46, %p47
    %p49 = scmp.ne.s32.totalorder %s38, %s41
    %p50 = scmp.eq.s32.totalorder %s19, 3
    %p51 = por %p49, %p50
    %p52 = scmp.ne.s32.totalorder %s41, %s42
    %p53 = scmp.eq.s32.totalorder %s19, 0
    %p54 = por %p52, %p53
    %p55 = scmp.ne.s32.totalorder %s41, %s42
    %p56 = scmp.eq.s32.totalorder %s20, 3
    %p57 = por %p55, %p56
    %p59 = scmp.ne.s32.totalorder %s42, %s58
    %p60 = scmp.eq.s32.totalorder %s20, 0
    %p61 = por %p59, %p60
    %s62 = smul.u32 %s22, 8
    %s63 = ssub.s32 %s62, 1
    %p64 = scmp.gt.s32.totalorder %s63, 0
    %s65 = scalar_select %p64, %s63, 0
    %s66 = smul.u32 %s29, 8
    %s67 = ssub.s32 %s66, 1
    %p68 = scmp.gt.s32.totalorder %s67, 0
    %s69 = scalar_select %p68, %s67, 0
    %s70 = ssub.s32 %s21, %s33
    %s71 = ssub.s32 %s65, %s69
    %s72 = sor.u32 %s70, %s71
    %p73 = scmp.eq.s32.totalorder %s72, 0
    %s75 = sadd.s32 %s74, 1
    %s76 = scalar_select %p73, %s74, %s75
    %p79 = pneg %p73
    %p80 = scmp.eq.s32.totalorder %s14, 3
    %p81 = por %p79, %p80
    %p82 = scmp.ne.s32.totalorder %s74, %s77
    %p83 = scmp.eq.s32.totalorder %s14, 0
    %p84 = por %p82, %p83
    %p85 = scmp.ne.s32.totalorder %s74, %s77
    %p86 = scmp.eq.s32.totalorder %s19, 3
    %p87 = por %p85, %p86
    %p88 = scmp.ne.s32.totalorder %s77, %s78
    %p89 = scmp.eq.s32.totalorder %s19, 0
    %p90 = por %p88, %p89
    %p91 = scmp.ne.s32.totalorder %s77, %s78
    %p92 = scmp.eq.s32.totalorder %s20, 3
    %p93 = por %p91, %p92
    %p95 = scmp.ne.s32.totalorder %s78, %s94
    %p96 = scmp.eq.s32.totalorder %s20, 0
    %p97 = por %p95, %p96
    %s98 = sadd.s32 %s22, 1
    %s99 = smul.u32 %s98, 8
    %p100 = scmp.lt.s32.totalorder %s99, 15
    %s101 = scalar_select %p100, %s99, 15
    %s102 = sadd.s32 %s29, 1
    %s103 = smul.u32 %s102, 8
    %p104 = scmp.lt.s32.totalorder %s103, 15
    %s105 = scalar_select %p104, %s103, 15
    %s106 = ssub.s32 %s21, %s33
    %s107 = ssub.s32 %s101, %s105
    %s108 = sor.u32 %s106, %s107
    %p109 = scmp.eq.s32.totalorder %s108, 0
    %s111 = sadd.s32 %s110, 1
    %s112 = scalar_select %p109, %s110, %s111
    %p115 = pneg %p109
    %p116 = scmp.eq.s32.totalorder %s14, 3
    %p117 = por %p115, %p116
    %p118 = scmp.ne.s32.totalorder %s110, %s113
    %p119 = scmp.eq.s32.totalorder %s14, 0
    %p120 = por %p118, %p119
    %p121 = scmp.ne.s32.totalorder %s110, %s113
    %p122 = scmp.eq.s32.totalorder %s19, 3
    %p123 = por %p121, %p122
    %p124 = scmp.ne.s32.totalorder %s113, %s114
    %p125 = scmp.eq.s32.totalorder %s19, 0
    %p126 = por %p124, %p125
    %p127 = scmp.ne.s32.totalorder %s113, %s114
    %p128 = scmp.eq.s32.totalorder %s20, 3
    %p129 = por %p127, %p128
    %p131 = scmp.ne.s32.totalorder %s114, %s130
    %p132 = scmp.eq.s32.totalorder %s20, 0
    %p133 = por %p131, %p132
    %s135 = sadd.s32 %s134, 1
    %p138 = scmp.eq.s32.totalorder %s14, 3
    %p139 = scmp.ne.s32.totalorder %s134, %s136
    %p140 = scmp.eq.s32.totalorder %s14, 0
    %p141 = por %p139, %p140
    %p142 = scmp.ne.s32.totalorder %s134, %s136
    %p143 = scmp.eq.s32.totalorder %s19, 3
    %p144 = por %p142, %p143
    %p145 = scmp.ne.s32.totalorder %s136, %s137
    %p146 = scmp.eq.s32.totalorder %s19, 0
    %p147 = por %p145, %p146
    %p148 = scmp.ne.s32.totalorder %s136, %s137
    %p149 = scmp.eq.s32.totalorder %s20, 3
    %p150 = por %p148, %p149
    %p152 = scmp.ne.s32.totalorder %s137, %s151
    %p153 = scmp.eq.s32.totalorder %s20, 0
    %p154 = por %p152, %p153
    %s156 = sadd.s32 %s155, 1
    %p159 = scmp.eq.s32.totalorder %s14, 3
    %p160 = scmp.ne.s32.totalorder %s155, %s157
    %p161 = scmp.eq.s32.totalorder %s14, 0
    %p162 = por %p160, %p161
    %p163 = scmp.ne.s32.totalorder %s155, %s157
    %p164 = scmp.eq.s32.totalorder %s19, 3
    %p165 = por %p163, %p164
    %p166 = scmp.ne.s32.totalorder %s157, %s158
    %p167 = scmp.eq.s32.totalorder %s19, 0
    %p168 = por %p166, %p167
    %p169 = scmp.ne.s32.totalorder %s157, %s158
    %p170 = scmp.eq.s32.totalorder %s20, 3
    %p171 = por %p169, %p170
    %p173 = scmp.ne.s32.totalorder %s158, %s172
    %p174 = scmp.eq.s32.totalorder %s20, 0
    %p175 = por %p173, %p174
    %s177 = sadd.s32 %s176, 1
    %p180 = scmp.eq.s32.totalorder %s14, 3
    %p181 = scmp.ne.s32.totalorder %s176, %s178
    %p182 = scmp.eq.s32.totalorder %s14, 0
    %p183 = por %p181, %p182
    %p184 = scmp.ne.s32.totalorder %s176, %s178
    %p185 = scmp.eq.s32.totalorder %s19, 3
    %p186 = por %p184, %p185
    %p187 = scmp.ne.s32.totalorder %s178, %s179
    %p188 = scmp.eq.s32.totalorder %s19, 0
    %p189 = por %p187, %p188
    %p190 = scmp.ne.s32.totalorder %s178, %s179
    %p191 = scmp.eq.s32.totalorder %s20, 3
    %p192 = por %p190, %p191
    %p194 = scmp.ne.s32.totalorder %s179, %s193
    %p195 = scmp.eq.s32.totalorder %s20, 0
    %p196 = por %p194, %p195
    %s197 = ssub.s32 %s21, %s33
    %s198 = ssub.s32 %s22, %s29
    %s199 = sor.u32 %s197, %s198
    %p200 = scmp.eq.s32.totalorder %s199, 0
    %s202 = sadd.s32 %s201, 1
    %s203 = scalar_select %p200, %s201, %s202
    %p206 = pneg %p200
    %p207 = scmp.eq.s32.totalorder %s14, 3
    %p208 = por %p206, %p207
    %p209 = scmp.ne.s32.totalorder %s201, %s204
    %p210 = scmp.eq.s32.totalorder %s14, 0
    %p211 = por %p209, %p210
    %p212 = scmp.ne.s32.totalorder %s201, %s204
    %p213 = scmp.eq.s32.totalorder %s19, 3
    %p214 = por %p212, %p213
    %p215 = scmp.ne.s32.totalorder %s204, %s205
    %p216 = scmp.eq.s32.totalorder %s19, 0
    %p217 = por %p215, %p216
    %p218 = scmp.ne.s32.totalorder %s204, %s205
    %p219 = scmp.eq.s32.totalorder %s20, 3
    %p220 = por %p218, %p219
    %p222 = scmp.ne.s32.totalorder %s205, %s221
    %p223 = scmp.eq.s32.totalorder %s20, 0
    %p224 = por %p222, %p223
    %s225 = ssub.s32 %s21, %s33
    %s226 = ssub.s32 %s22, %s29
    %s227 = sor.u32 %s225, %s226
    %p228 = scmp.eq.s32.totalorder %s227, 0
    %s230 = sadd.s32 %s229, 1
    %s231 = scalar_select %p228, %s229, %s230
    %p234 = pneg %p228
    %p235 = scmp.eq.s32.totalorder %s14, 3
    %p236 = por %p234, %p235
    %p237 = scmp.ne.s32.totalorder %s229, %s232
    %p238 = scmp.eq.s32.totalorder %s14, 0
    %p239 = por %p237, %p238
    %p240 = scmp.ne.s32.totalorder %s229, %s232
    %p241 = scmp.eq.s32.totalorder %s19, 3
    %p242 = por %p240, %p241
    %p243 = scmp.ne.s32.totalorder %s232, %s233
    %p244 = scmp.eq.s32.totalorder %s19, 0
    %p245 = por %p243, %p244
    %p246 = scmp.ne.s32.totalorder %s232, %s233
    %p247 = scmp.eq.s32.totalorder %s20, 3
    %p248 = por %p246, %p247
    %p250 = scmp.ne.s32.totalorder %s233, %s249
    %p251 = scmp.eq.s32.totalorder %s20, 0
    %p252 = por %p250, %p251
    %p253 = scmp.le.s32.totalorder 1, %s14
    %p254 = scmp.lt.s32.totalorder %s14, 5
    %p255 = pnand %p253, %p254
    %p256 = pneg %p255
    // Predicated region
    $region9: #{basic_block_e.4} parent=5 // pred_check
      _
    $region10: #{basic_block_e.4} parent=5 // pred_check_branch
      %258 = sbr.rel (%p255) target = $region12
    $region11: #{basic_block_e.4} parent=5 // pred_region
      %s259 = ssub.s32 %s14, 1
      // Predicated region
      $region13: #{basic_block_e.4} parent=11 // pred_check
        %p260 = pneg %p147
      $region14: #{basic_block_e.4} parent=11 // pred_check_branch
        %262 = sbr.rel (%p260) target = $region16
      $region15: #{basic_block_e.4} parent=11 // pred_region
        _
      $region16: #{basic_block_e.4} parent=11 // pred_fallthru
        _
      // Predicated region
      $region17: #{basic_block_e.4} parent=11 // pred_check
        %p263 = pneg %p168
      $region18: #{basic_block_e.4} parent=11 // pred_check_branch
        %265 = sbr.rel (%p263) target = $region20
      $region19: #{basic_block_e.4} parent=11 // pred_region
        _
      $region20: #{basic_block_e.4} parent=11 // pred_fallthru
        _
      // Predicated region
      $region21: #{basic_block_e.4} parent=11 // pred_check
        %p266 = pneg %p189
      $region22: #{basic_block_e.4} parent=11 // pred_check_branch
        %268 = sbr.rel (%p266) target = $region24
      $region23: #{basic_block_e.4} parent=11 // pred_region
        _
      $region24: #{basic_block_e.4} parent=11 // pred_fallthru
        _
    $region12: #{basic_block_e.4} parent=5 // pred_fallthru
      _
    %p269 = scmp.lt.s32.totalorder %s14, 4
    // Predicated region
    $region25: #{basic_block_e.4} parent=5 // pred_check
      %p270 = pneg %p269
    $region26: #{basic_block_e.4} parent=5 // pred_check_branch
      %272 = sbr.rel (%p270) target = $region28
    $region27: #{basic_block_e.4} parent=5 // pred_region
      // Predicated region
      $region29: #{basic_block_e.4} parent=27 // pred_check
        %p273 = pneg %p48
      $region30: #{basic_block_e.4} parent=27 // pred_check_branch
        %275 = sbr.rel (%p273) target = $region32
      $region31: #{basic_block_e.4} parent=27 // pred_region
        %s276 = smul.u32 8, %s22
        %p277 = scmp.lt.s32.totalorder %s21, 1
        %s278 = scalar_select %p277, %s21, 1
        %p279 = scmp.lt.s32.totalorder %s276, 15
        %s280 = scalar_select %p279, %s276, 15
        %s281 = smul.addr %s280, 2
        %s282 = smul.addr %s278, 32
        %s283 = sadd.s32 %s281, %s282
        %s284 = smul.addr %s283, 8
        %s285 = scalar_lea.vmem %s0, %s284
        %s286 = smul.u32 8, %s22
      $region32: #{basic_block_e.4} parent=27 // pred_fallthru
        _
      // Predicated region
      $region33: #{basic_block_e.4} parent=27 // pred_check
        %p287 = pneg %p84
      $region34: #{basic_block_e.4} parent=27 // pred_check_branch
        %289 = sbr.rel (%p287) target = $region36
      $region35: #{basic_block_e.4} parent=27 // pred_region
        %s290 = smul.u32 %s22, 8
        %s291 = ssub.s32 %s290, 1
        %p292 = scmp.gt.s32.totalorder %s291, 0
        %s293 = scalar_select %p292, %s291, 0
        %p294 = scmp.lt.s32.totalorder %s21, 1
        %s295 = scalar_select %p294, %s21, 1
        %p296 = scmp.lt.s32.totalorder %s293, 15
        %s297 = scalar_select %p296, %s293, 15
        %s298 = smul.addr %s297, 2
        %s299 = smul.addr %s295, 32
        %s300 = sadd.s32 %s298, %s299
        %s301 = smul.addr %s300, 8
        %s302 = scalar_lea.vmem %s1, %s301
        %s303 = smul.u32 %s22, 8
        %s304 = ssub.s32 %s303, 1
        %p305 = scmp.gt.s32.totalorder %s304, 0
        %s306 = scalar_select %p305, %s304, 0
      $region36: #{basic_block_e.4} parent=27 // pred_fallthru
        _
      // Predicated region
      $region37: #{basic_block_e.4} parent=27 // pred_check
        %p307 = pneg %p120
      $region38: #{basic_block_e.4} parent=27 // pred_check_branch
        %309 = sbr.rel (%p307) target = $region40
      $region39: #{basic_block_e.4} parent=27 // pred_region
        %s310 = sadd.s32 %s22, 1
        %s311 = smul.u32 %s310, 8
        %p312 = scmp.lt.s32.totalorder %s311, 15
        %s313 = scalar_select %p312, %s311, 15
        %p314 = scmp.lt.s32.totalorder %s21, 1
        %s315 = scalar_select %p314, %s21, 1
        %p316 = scmp.lt.s32.totalorder %s313, 15
        %s317 = scalar_select %p316, %s313, 15
        %s318 = smul.addr %s317, 2
        %s319 = smul.addr %s315, 32
        %s320 = sadd.s32 %s318, %s319
        %s321 = smul.addr %s320, 8
        %s322 = scalar_lea.vmem %s2, %s321
        %s323 = sadd.s32 %s22, 1
        %s324 = smul.u32 %s323, 8
        %p325 = scmp.lt.s32.totalorder %s324, 15
        %s326 = scalar_select %p325, %s324, 15
      $region40: #{basic_block_e.4} parent=27 // pred_fallthru
        _
    $region28: #{basic_block_e.4} parent=5 // pred_fallthru
      _
    %p327 = scmp.le.s32.totalorder 1, %s14
    %p328 = scmp.lt.s32.totalorder %s14, 5
    %p329 = pnand %p327, %p328
    %p330 = pneg %p329
    // Predicated region
    $region41: #{basic_block_e.4} parent=5 // pred_check
      _
    $region42: #{basic_block_e.4} parent=5 // pred_check_branch
      %332 = sbr.rel (%p329) target = $region44
    $region43: #{basic_block_e.4} parent=5 // pred_region
      %s333 = ssub.s32 %s14, 1
      %s334 = smul.u32 8, %s24
      %p335 = scmp.lt.s32.totalorder %s23, 1
      %s336 = scalar_select %p335, %s23, 1
      %p337 = scmp.lt.s32.totalorder %s334, 15
      %s338 = scalar_select %p337, %s334, 15
      %s339 = smul.addr %s338, 2
      %s340 = smul.addr %s336, 32
      %s341 = sadd.s32 %s339, %s340
      %s342 = smul.addr %s341, 8
      %s343 = scalar_lea.vmem %s0, %s342
      %p344 = pneg %p54
      %p345 = pneg %p51
      %s346 = smul.u32 %s24, 8
      %s347 = ssub.s32 %s346, 1
      %p348 = scmp.gt.s32.totalorder %s347, 0
      %s349 = scalar_select %p348, %s347, 0
      %p350 = scmp.lt.s32.totalorder %s23, 1
      %s351 = scalar_select %p350, %s23, 1
      %p352 = scmp.lt.s32.totalorder %s349, 15
      %s353 = scalar_select %p352, %s349, 15
      %s354 = smul.addr %s353, 2
      %s355 = smul.addr %s351, 32
      %s356 = sadd.s32 %s354, %s355
      %s357 = smul.addr %s356, 8
      %s358 = scalar_lea.vmem %s1, %s357
      %p359 = pneg %p90
      %p360 = pneg %p87
      %s361 = sadd.s32 %s24, 1
      %s362 = smul.u32 %s361, 8
      %p363 = scmp.lt.s32.totalorder %s362, 15
      %s364 = scalar_select %p363, %s362, 15
      %p365 = scmp.lt.s32.totalorder %s23, 1
      %s366 = scalar_select %p365, %s23, 1
      %p367 = scmp.lt.s32.totalorder %s364, 15
      %s368 = scalar_select %p367, %s364, 15
      %s369 = smul.addr %s368, 2
      %s370 = smul.addr %s366, 32
      %s371 = sadd.s32 %s369, %s370
      %s372 = smul.addr %s371, 8
      %s373 = scalar_lea.vmem %s2, %s372
      %p374 = pneg %p126
      %p375 = pneg %p123
      %p376 = pneg %p147
      %p377 = pneg %p144
      %p378 = pneg %p168
      %p379 = pneg %p165
      %p380 = pneg %p189
      %p381 = pneg %p186
      %p382 = pneg %p217
      %p383 = pneg %p214
      %s384 = smul.u32 8, %s24
      %p385 = scmp.lt.s32.totalorder %s23, 1
      %s386 = scalar_select %p385, %s23, 1
      %p387 = scmp.lt.s32.totalorder %s384, 15
      %s388 = scalar_select %p387, %s384, 15
      %s389 = smul.addr %s388, 2
      %s390 = smul.addr %s386, 32
      %s391 = sadd.s32 %s389, %s390
      %s392 = smul.addr %s391, 8
      %s393 = scalar_lea.vmem %s6, %s392
      %p394 = pneg %p245
      %p395 = pneg %p242
      %p396 = scmp.lt.s32.totalorder %s23, 1
      %s397 = scalar_select %p396, %s23, 1
      %p398 = scmp.lt.s32.totalorder %s24, 1
      %s399 = scalar_select %p398, %s24, 1
      %s400 = smul.addr %s397, 2
      %s401 = sadd.s32 %s399, %s400
      %s402 = smul.addr %s401, 2
      %s403 = scalar_lea.vmem %s7, %s402
      %s404 = smul.u32 8, %s24
      %p405 = scmp.lt.s32.totalorder %s23, 1
      %s406 = scalar_select %p405, %s23, 1
      %p407 = scmp.lt.s32.totalorder %s404, 15
      %s408 = scalar_select %p407, %s404, 15
      %s409 = smul.addr %s408, 2
      %s410 = smul.addr %s406, 32
      %s411 = sadd.s32 %s409, %s410
      %s412 = smul.addr %s411, 8
      %s413 = scalar_lea.vmem %s0, %s412
      %s414 = smul.u32 8, %s24
      %s415 = smul.u32 %s24, 8
      %s416 = ssub.s32 %s415, 1
      %p417 = scmp.gt.s32.totalorder %s416, 0
      %s418 = scalar_select %p417, %s416, 0
      %p419 = scmp.lt.s32.totalorder %s23, 1
      %s420 = scalar_select %p419, %s23, 1
      %p421 = scmp.lt.s32.totalorder %s418, 15
      %s422 = scalar_select %p421, %s418, 15
      %s423 = smul.addr %s422, 2
      %s424 = smul.addr %s420, 32
      %s425 = sadd.s32 %s423, %s424
      %s426 = smul.addr %s425, 8
      %s427 = scalar_lea.vmem %s1, %s426
      %s428 = smul.u32 %s24, 8
      %s429 = ssub.s32 %s428, 1
      %p430 = scmp.gt.s32.totalorder %s429, 0
      %s431 = scalar_select %p430, %s429, 0
      %s432 = sadd.s32 %s24, 1
      %s433 = smul.u32 %s432, 8
      %p434 = scmp.lt.s32.totalorder %s433, 15
      %s435 = scalar_select %p434, %s433, 15
      %p436 = scmp.lt.s32.totalorder %s23, 1
      %s437 = scalar_select %p436, %s23, 1
      %p438 = scmp.lt.s32.totalorder %s435, 15
      %s439 = scalar_select %p438, %s435, 15
      %s440 = smul.addr %s439, 2
      %s441 = smul.addr %s437, 32
      %s442 = sadd.s32 %s440, %s441
      %s443 = smul.addr %s442, 8
      %s444 = scalar_lea.vmem %s2, %s443
      %s445 = sadd.s32 %s24, 1
      %s446 = smul.u32 %s445, 8
      %p447 = scmp.lt.s32.totalorder %s446, 15
      %s448 = scalar_select %p447, %s446, 15
      %s449 = smul.u32 8, %s24
      %p450 = scmp.lt.s32.totalorder %s23, 1
      %s451 = scalar_select %p450, %s23, 1
      %p452 = scmp.lt.s32.totalorder %s449, 15
      %s453 = scalar_select %p452, %s449, 15
      %s454 = smul.addr %s453, 2
      %s455 = smul.addr %s451, 32
      %s456 = sadd.s32 %s454, %s455
      %s457 = smul.addr %s456, 8
      %s458 = scalar_lea.vmem %s6, %s457
      %s459 = smul.u32 8, %s24
      %p460 = scmp.lt.s32.totalorder %s23, 1
      %s461 = scalar_select %p460, %s23, 1
      %p462 = scmp.lt.s32.totalorder %s24, 1
      %s463 = scalar_select %p462, %s24, 1
      %s464 = smul.addr %s461, 2
      %s465 = sadd.s32 %s463, %s464
      %s466 = smul.addr %s465, 2
      %s467 = scalar_lea.vmem %s7, %s466
      %v468 = vld [vmem:[%s3] sm:$0x1]
      %v469 = vld [vmem:[%s4] sm:$0x1]
      %470 = vst [vmem:[#allocation2] sm:$0x1] 0.0
      %471 = vst [vmem:[#allocation2 + $0x18] sm:$0x1] 0.0
      %472 = vst [vmem:[#allocation2 + $0x30] sm:$0x1] 0.0
      %473 = vst [vmem:[#allocation2 + $0x48] sm:$0x1] 0.0
      %474 = vst [vmem:[#allocation2 + $0x60] sm:$0x1] 0.0
      %475 = vst [vmem:[#allocation2 + $0x78] sm:$0x1] 0.0
      %476 = vst [vmem:[#allocation2 + $0x90] sm:$0x1] 0.0
      %477 = vst [vmem:[#allocation2 + $0xa8] sm:$0x1] 0.0
      %478 = vst [vmem:[#allocation2 + $0xc0] sm:$0x1] 0.0
      %479 = vst [vmem:[#allocation2 + $0xd8] sm:$0x1] 0.0
      %480 = vst [vmem:[#allocation2 + $0x11] sm:$0x1] 0.0
      %481 = vst [vmem:[#allocation2 + $0x29] sm:$0x1] 0.0
      %482 = vst [vmem:[#allocation2 + $0x41] sm:$0x1] 0.0
      %483 = vst [vmem:[#allocation2 + $0x59] sm:$0x1] 0.0
      %484 = vst [vmem:[#allocation2 + $0x71] sm:$0x1] 0.0
      %485 = vst [vmem:[#allocation2 + $0x89] sm:$0x1] 0.0
      %486 = vst [vmem:[#allocation2 + $0xa1] sm:$0x1] 0.0
      %487 = vst [vmem:[#allocation2 + $0xb9] sm:$0x1] 0.0
      %488 = vst [vmem:[#allocation2 + $0xd1] sm:$0x1] 0.0
      %489 = vst [vmem:[#allocation2 + $0xe9] sm:$0x1] 0.0
      %v490 = vld [vmem:[%s413] sm:$0xff]
      %v491 = vld [vmem:[%s413 + $0x8] sm:$0xff]
      %v492 = vld [vmem:[%s413 + $0x10] sm:$0xff]
      %v493 = vld [vmem:[%s413 + $0x18] sm:$0xff]
      %v494 = vld [vmem:[%s413 + $0x20] sm:$0xff]
      %v495 = vld [vmem:[%s413 + $0x28] sm:$0xff]
      %v496 = vld [vmem:[%s413 + $0x30] sm:$0xff]
      %v497 = vld [vmem:[%s413 + $0x38] sm:$0xff]
      %v498 = vld [vmem:[%s413 + $0x40] sm:$0xff]
      %v499 = vld [vmem:[%s413 + $0x48] sm:$0xff]
      %v500 = vld [vmem:[%s413 + $0x50] sm:$0xff]
      %v501 = vld [vmem:[%s413 + $0x58] sm:$0xff]
      %v502 = vld [vmem:[%s413 + $0x60] sm:$0xff]
      %v503 = vld [vmem:[%s413 + $0x68] sm:$0xff]
      %v504 = vld [vmem:[%s413 + $0x70] sm:$0xff]
      %v505 = vld [vmem:[%s413 + $0x78] sm:$0xff]
      %v507 = vlaneseq
      %v508 = vshrl.u32 %v507, 7
      %v509 = vsub.s32 0, %v508
      %v510 = vrot.slane %v468, %v509
      %v512 = vmul.f32 %v490, %v510
      %v513 = vmul.f32 %v491, %v510
      %v514 = vmul.f32 %v492, %v510
      %v515 = vmul.f32 %v493, %v510
      %v516 = vmul.f32 %v494, %v510
      %v517 = vmul.f32 %v495, %v510
      %v518 = vmul.f32 %v496, %v510
      %v519 = vmul.f32 %v497, %v510
      %v520 = vmul.f32 %v498, %v510
      %v521 = vmul.f32 %v499, %v510
      %v522 = vmul.f32 %v500, %v510
      %v523 = vmul.f32 %v501, %v510
      %v524 = vmul.f32 %v502, %v510
      %v525 = vmul.f32 %v503, %v510
      %v526 = vmul.f32 %v504, %v510
      %v527 = vmul.f32 %v505, %v510
      %v529 = vlaneseq
      %v530 = vshrl.u32 %v529, 7
      %v531 = vsub.s32 0, %v530
      %v532 = vrot.slane %v469, %v531
      %v534 = vadd.f32 %v512, %v532
      %v535 = vadd.f32 %v513, %v532
      %v536 = vadd.f32 %v514, %v532
      %v537 = vadd.f32 %v515, %v532
      %v538 = vadd.f32 %v516, %v532
      %v539 = vadd.f32 %v517, %v532
      %v540 = vadd.f32 %v518, %v532
      %v541 = vadd.f32 %v519, %v532
      %v542 = vadd.f32 %v520, %v532
      %v543 = vadd.f32 %v521, %v532
      %v544 = vadd.f32 %v522, %v532
      %v545 = vadd.f32 %v523, %v532
      %v546 = vadd.f32 %v524, %v532
      %v547 = vadd.f32 %v525, %v532
      %v548 = vadd.f32 %v526, %v532
      %v549 = vadd.f32 %v527, %v532
      %v550 = vmax.f32 %v534, 0.0
      %v551 = vmax.f32 %v535, 0.0
      %v552 = vmax.f32 %v536, 0.0
      %v553 = vmax.f32 %v537, 0.0
      %v554 = vmax.f32 %v538, 0.0
      %v555 = vmax.f32 %v539, 0.0
      %v556 = vmax.f32 %v540, 0.0
      %v557 = vmax.f32 %v541, 0.0
      %v558 = vmax.f32 %v542, 0.0
      %v559 = vmax.f32 %v543, 0.0
      %v560 = vmax.f32 %v544, 0.0
      %v561 = vmax.f32 %v545, 0.0
      %v562 = vmax.f32 %v546, 0.0
      %v563 = vmax.f32 %v547, 0.0
      %v564 = vmax.f32 %v548, 0.0
      %v565 = vmax.f32 %v549, 0.0
      %s566 = scalar_lea.vmem [#allocation2], 24
      %567 = vst [vmem:[%s566 + $0x1] sm:$0xff] %v550
      %568 = vst [vmem:[%s566 + $0x9] sm:$0xff] %v551
      %569 = vst [vmem:[%s566 + $0x19] sm:$0xff] %v552
      %570 = vst [vmem:[%s566 + $0x21] sm:$0xff] %v553
      %571 = vst [vmem:[%s566 + $0x31] sm:$0xff] %v554
      %572 = vst [vmem:[%s566 + $0x39] sm:$0xff] %v555
      %573 = vst [vmem:[%s566 + $0x49] sm:$0xff] %v556
      %574 = vst [vmem:[%s566 + $0x51] sm:$0xff] %v557
      %575 = vst [vmem:[%s566 + $0x61] sm:$0xff] %v558
      %576 = vst [vmem:[%s566 + $0x69] sm:$0xff] %v559
      %577 = vst [vmem:[%s566 + $0x79] sm:$0xff] %v560
      %578 = vst [vmem:[%s566 + $0x81] sm:$0xff] %v561
      %579 = vst [vmem:[%s566 + $0x91] sm:$0xff] %v562
      %580 = vst [vmem:[%s566 + $0x99] sm:$0xff] %v563
      %581 = vst [vmem:[%s566 + $0xa9] sm:$0xff] %v564
      %582 = vst [vmem:[%s566 + $0xb1] sm:$0xff] %v565
      %v583 = vld [vmem:[%s427] sm:$0xff]
      %v584 = vld [vmem:[%s427 + $0x8] sm:$0xff]
      %v585 = vmul.f32 %v583, %v510
      %v586 = vmul.f32 %v584, %v510
      %v587 = vadd.f32 %v585, %v532
      %v588 = vadd.f32 %v586, %v532
      %v589 = vmax.f32 %v587, 0.0
      %v590 = vmax.f32 %v588, 0.0
      %v591 = vld [vmem:[%s444] sm:$0xff]
      %v592 = vld [vmem:[%s444 + $0x8] sm:$0xff]
      %v593 = vmul.f32 %v591, %v510
      %v594 = vmul.f32 %v592, %v510
      %v595 = vadd.f32 %v593, %v532
      %v596 = vadd.f32 %v594, %v532
      %v597 = vmax.f32 %v595, 0.0
      %v598 = vmax.f32 %v596, 0.0
      %p599 = scmp.eq.s32.totalorder %s24, 0
      %s600 = scalar_select %p599, 1, 0
      %v601 = vstv %s600
      %vm602 = vcmp.eq.s32.totalorder %v601, 1
      %v603 = vsel %vm602, 0.0, %v589
      %v604 = vsel %vm602, 0.0, %v590
      %p605 = scmp.eq.s32.totalorder %s24, 1
      %s606 = scalar_select %p605, 1, 0
      %v607 = vstv %s606
      %vm608 = vcmp.eq.s32.totalorder %v607, 1
      %v609 = vsel %vm608, 0.0, %v597
      %v610 = vsel %vm608, 0.0, %v598
      %611 = vst [vmem:[#allocation2 + $0x1] sm:$0xff] %v603
      %612 = vst [vmem:[#allocation2 + $0x9] sm:$0xff] %v604
      %s613 = scalar_lea.vmem [#allocation2], 216
      %614 = vst [vmem:[%s613 + $0x1] sm:$0xff] %v609
      %615 = vst [vmem:[%s613 + $0x9] sm:$0xff] %v610
      %v616 = vld [vmem:[#allocation2] sm:$0xff]
      %v617 = vld [vmem:[#allocation2 + $0x8] sm:$0xff]
      %v618 = vld [vmem:[#allocation2 + $0x18] sm:$0xff]
      %v619 = vld [vmem:[#allocation2 + $0x20] sm:$0xff]
      %v620 = vld [vmem:[#allocation2 + $0x30] sm:$0xff]
      %v621 = vld [vmem:[#allocation2 + $0x38] sm:$0xff]
      %v622 = vld [vmem:[#allocation2 + $0x48] sm:$0xff]
      %v623 = vld [vmem:[#allocation2 + $0x50] sm:$0xff]
      %v624 = vld [vmem:[#allocation2 + $0x60] sm:$0xff]
      %v625 = vld [vmem:[#allocation2 + $0x68] sm:$0xff]
      %v626 = vld [vmem:[#allocation2 + $0x78] sm:$0xff]
      %v627 = vld [vmem:[#allocation2 + $0x80] sm:$0xff]
      %v628 = vld [vmem:[#allocation2 + $0x90] sm:$0xff]
      %v629 = vld [vmem:[#allocation2 + $0x98] sm:$0xff]
      %v630 = vld [vmem:[#allocation2 + $0xa8] sm:$0xff]
      %v631 = vld [vmem:[#allocation2 + $0xb0] sm:$0xff]
      %632 = vst [vmem:[#allocation3] sm:$0xff] %v616
      %633 = vst [vmem:[#allocation3 + $0x48] sm:$0xff] %v617
      %634 = vst [vmem:[#allocation3 + $0x90] sm:$0xff] %v618
      %635 = vst [vmem:[#allocation3 + $0xd8] sm:$0xff] %v619
      %636 = vst [vmem:[#allocation3 + $0x120] sm:$0xff] %v620
      %637 = vst [vmem:[#allocation3 + $0x168] sm:$0xff] %v621
      %638 = vst [vmem:[#allocation3 + $0x1b0] sm:$0xff] %v622
      %639 = vst [vmem:[#allocation3 + $0x1f8] sm:$0xff] %v623
      %640 = vst [vmem:[#allocation3 + $0x240] sm:$0xff] %v624
      %641 = vst [vmem:[#allocation3 + $0x288] sm:$0xff] %v625
      %642 = vst [vmem:[#allocation3 + $0x2d0] sm:$0xff] %v626
      %643 = vst [vmem:[#allocation3 + $0x318] sm:$0xff] %v627
      %644 = vst [vmem:[#allocation3 + $0x360] sm:$0xff] %v628
      %645 = vst [vmem:[#allocation3 + $0x3a8] sm:$0xff] %v629
      %646 = vst [vmem:[#allocation3 + $0x3f0] sm:$0xff] %v630
      %647 = vst [vmem:[#allocation3 + $0x438] sm:$0xff] %v631
      %v648 = vld [vmem:[#allocation2 + $0x1] sm:$0xff]
      %v649 = vld [vmem:[#allocation2 + $0x9] sm:$0xff]
      %v650 = vld [vmem:[#allocation2 + $0x19] sm:$0xff]
      %v651 = vld [vmem:[#allocation2 + $0x21] sm:$0xff]
      %v652 = vld [vmem:[#allocation2 + $0x31] sm:$0xff]
      %v653 = vld [vmem:[#allocation2 + $0x39] sm:$0xff]
      %v654 = vld [vmem:[#allocation2 + $0x49] sm:$0xff]
      %v655 = vld [vmem:[#allocation2 + $0x51] sm:$0xff]
      %v656 = vld [vmem:[#allocation2 + $0x61] sm:$0xff]
      %v657 = vld [vmem:[#allocation2 + $0x69] sm:$0xff]
      %v658 = vld [vmem:[#allocation2 + $0x79] sm:$0xff]
      %v659 = vld [vmem:[#allocation2 + $0x81] sm:$0xff]
      %v660 = vld [vmem:[#allocation2 + $0x91] sm:$0xff]
      %v661 = vld [vmem:[#allocation2 + $0x99] sm:$0xff]
      %v662 = vld [vmem:[#allocation2 + $0xa9] sm:$0xff]
      %v663 = vld [vmem:[#allocation2 + $0xb1] sm:$0xff]
      %664 = vst [vmem:[#allocation3 + $0x8] sm:$0xff] %v648
      %665 = vst [vmem:[#allocation3 + $0x50] sm:$0xff] %v649
      %666 = vst [vmem:[#allocation3 + $0x98] sm:$0xff] %v650
      %667 = vst [vmem:[#allocation3 + $0xe0] sm:$0xff] %v651
      %668 = vst [vmem:[#allocation3 + $0x128] sm:$0xff] %v652
      %669 = vst [vmem:[#allocation3 + $0x170] sm:$0xff] %v653
      %670 = vst [vmem:[#allocation3 + $0x1b8] sm:$0xff] %v654
      %671 = vst [vmem:[#allocation3 + $0x200] sm:$0xff] %v655
      %672 = vst [vmem:[#allocation3 + $0x248] sm:$0xff] %v656
      %673 = vst [vmem:[#allocation3 + $0x290] sm:$0xff] %v657
      %674 = vst [vmem:[#allocation3 + $0x2d8] sm:$0xff] %v658
      %675 = vst [vmem:[#allocation3 + $0x320] sm:$0xff] %v659
      %676 = vst [vmem:[#allocation3 + $0x368] sm:$0xff] %v660
      %677 = vst [vmem:[#allocation3 + $0x3b0] sm:$0xff] %v661
      %678 = vst [vmem:[#allocation3 + $0x3f8] sm:$0xff] %v662
      %679 = vst [vmem:[#allocation3 + $0x440] sm:$0xff] %v663
      %v680 = vld [vmem:[#allocation2 + $0x2] sm:$0xff]
      %v681 = vld [vmem:[#allocation2 + $0xa] sm:$0xff]
      %v682 = vld [vmem:[#allocation2 + $0x1a] sm:$0xff]
      %v683 = vld [vmem:[#allocation2 + $0x22] sm:$0xff]
      %v684 = vld [vmem:[#allocation2 + $0x32] sm:$0xff]
      %v685 = vld [vmem:[#allocation2 + $0x3a] sm:$0xff]
      %v686 = vld [vmem:[#allocation2 + $0x4a] sm:$0xff]
      %v687 = vld [vmem:[#allocation2 + $0x52] sm:$0xff]
      %v688 = vld [vmem:[#allocation2 + $0x62] sm:$0xff]
      %v689 = vld [vmem:[#allocation2 + $0x6a] sm:$0xff]
      %v690 = vld [vmem:[#allocation2 + $0x7a] sm:$0xff]
      %v691 = vld [vmem:[#allocation2 + $0x82] sm:$0xff]
      %v692 = vld [vmem:[#allocation2 + $0x92] sm:$0xff]
      %v693 = vld [vmem:[#allocation2 + $0x9a] sm:$0xff]
      %v694 = vld [vmem:[#allocation2 + $0xaa] sm:$0xff]
      %v695 = vld [vmem:[#allocation2 + $0xb2] sm:$0xff]
      %696 = vst [vmem:[#allocation3 + $0x10] sm:$0xff] %v680
      %697 = vst [vmem:[#allocation3 + $0x58] sm:$0xff] %v681
      %698 = vst [vmem:[#allocation3 + $0xa0] sm:$0xff] %v682
      %699 = vst [vmem:[#allocation3 + $0xe8] sm:$0xff] %v683
      %700 = vst [vmem:[#allocation3 + $0x130] sm:$0xff] %v684
      %701 = vst [vmem:[#allocation3 + $0x178] sm:$0xff] %v685
      %702 = vst [vmem:[#allocation3 + $0x1c0] sm:$0xff] %v686
      %703 = vst [vmem:[#allocation3 + $0x208] sm:$0xff] %v687
      %704 = vst [vmem:[#allocation3 + $0x250] sm:$0xff] %v688
      %705 = vst [vmem:[#allocation3 + $0x298] sm:$0xff] %v689
      %706 = vst [vmem:[#allocation3 + $0x2e0] sm:$0xff] %v690
      %707 = vst [vmem:[#allocation3 + $0x328] sm:$0xff] %v691
      %708 = vst [vmem:[#allocation3 + $0x370] sm:$0xff] %v692
      %709 = vst [vmem:[#allocation3 + $0x3b8] sm:$0xff] %v693
      %710 = vst [vmem:[#allocation3 + $0x400] sm:$0xff] %v694
      %711 = vst [vmem:[#allocation3 + $0x448] sm:$0xff] %v695
      %v712 = vld [vmem:[%s566] sm:$0xff]
      %v713 = vld [vmem:[%s566 + $0x8] sm:$0xff]
      %v714 = vld [vmem:[%s566 + $0x18] sm:$0xff]
      %v715 = vld [vmem:[%s566 + $0x20] sm:$0xff]
      %v716 = vld [vmem:[%s566 + $0x30] sm:$0xff]
      %v717 = vld [vmem:[%s566 + $0x38] sm:$0xff]
      %v718 = vld [vmem:[%s566 + $0x48] sm:$0xff]
      %v719 = vld [vmem:[%s566 + $0x50] sm:$0xff]
      %v720 = vld [vmem:[%s566 + $0x60] sm:$0xff]
      %v721 = vld [vmem:[%s566 + $0x68] sm:$0xff]
      %v722 = vld [vmem:[%s566 + $0x78] sm:$0xff]
      %v723 = vld [vmem:[%s566 + $0x80] sm:$0xff]
      %v724 = vld [vmem:[%s566 + $0x90] sm:$0xff]
      %v725 = vld [vmem:[%s566 + $0x98] sm:$0xff]
      %v726 = vld [vmem:[%s566 + $0xa8] sm:$0xff]
      %v727 = vld [vmem:[%s566 + $0xb0] sm:$0xff]
      %728 = vst [vmem:[#allocation3 + $0x18] sm:$0xff] %v712
      %729 = vst [vmem:[#allocation3 + $0x60] sm:$0xff] %v713
      %730 = vst [vmem:[#allocation3 + $0xa8] sm:$0xff] %v714
      %731 = vst [vmem:[#allocation3 + $0xf0] sm:$0xff] %v715
      %732 = vst [vmem:[#allocation3 + $0x138] sm:$0xff] %v716
      %733 = vst [vmem:[#allocation3 + $0x180] sm:$0xff] %v717
      %734 = vst [vmem:[#allocation3 + $0x1c8] sm:$0xff] %v718
      %735 = vst [vmem:[#allocation3 + $0x210] sm:$0xff] %v719
      %736 = vst [vmem:[#allocation3 + $0x258] sm:$0xff] %v720
      %737 = vst [vmem:[#allocation3 + $0x2a0] sm:$0xff] %v721
      %738 = vst [vmem:[#allocation3 + $0x2e8] sm:$0xff] %v722
      %739 = vst [vmem:[#allocation3 + $0x330] sm:$0xff] %v723
      %740 = vst [vmem:[#allocation3 + $0x378] sm:$0xff] %v724
      %741 = vst [vmem:[#allocation3 + $0x3c0] sm:$0xff] %v725
      %742 = vst [vmem:[#allocation3 + $0x408] sm:$0xff] %v726
      %743 = vst [vmem:[#allocation3 + $0x450] sm:$0xff] %v727
      %v744 = vld [vmem:[%s566 + $0x1] sm:$0xff]
      %v745 = vld [vmem:[%s566 + $0x9] sm:$0xff]
      %v746 = vld [vmem:[%s566 + $0x19] sm:$0xff]
      %v747 = vld [vmem:[%s566 + $0x21] sm:$0xff]
      %v748 = vld [vmem:[%s566 + $0x31] sm:$0xff]
      %v749 = vld [vmem:[%s566 + $0x39] sm:$0xff]
      %v750 = vld [vmem:[%s566 + $0x49] sm:$0xff]
      %v751 = vld [vmem:[%s566 + $0x51] sm:$0xff]
      %v752 = vld [vmem:[%s566 + $0x61] sm:$0xff]
      %v753 = vld [vmem:[%s566 + $0x69] sm:$0xff]
      %v754 = vld [vmem:[%s566 + $0x79] sm:$0xff]
      %v755 = vld [vmem:[%s566 + $0x81] sm:$0xff]
      %v756 = vld [vmem:[%s566 + $0x91] sm:$0xff]
      %v757 = vld [vmem:[%s566 + $0x99] sm:$0xff]
      %v758 = vld [vmem:[%s566 + $0xa9] sm:$0xff]
      %v759 = vld [vmem:[%s566 + $0xb1] sm:$0xff]
      %760 = vst [vmem:[#allocation3 + $0x20] sm:$0xff] %v744
      %761 = vst [vmem:[#allocation3 + $0x68] sm:$0xff] %v745
      %762 = vst [vmem:[#allocation3 + $0xb0] sm:$0xff] %v746
      %763 = vst [vmem:[#allocation3 + $0xf8] sm:$0xff] %v747
      %764 = vst [vmem:[#allocation3 + $0x140] sm:$0xff] %v748
      %765 = vst [vmem:[#allocation3 + $0x188] sm:$0xff] %v749
      %766 = vst [vmem:[#allocation3 + $0x1d0] sm:$0xff] %v750
      %767 = vst [vmem:[#allocation3 + $0x218] sm:$0xff] %v751
      %768 = vst [vmem:[#allocation3 + $0x260] sm:$0xff] %v752
      %769 = vst [vmem:[#allocation3 + $0x2a8] sm:$0xff] %v753
      %770 = vst [vmem:[#allocation3 + $0x2f0] sm:$0xff] %v754
      %771 = vst [vmem:[#allocation3 + $0x338] sm:$0xff] %v755
      %772 = vst [vmem:[#allocation3 + $0x380] sm:$0xff] %v756
      %773 = vst [vmem:[#allocation3 + $0x3c8] sm:$0xff] %v757
      %774 = vst [vmem:[#allocation3 + $0x410] sm:$0xff] %v758
      %775 = vst [vmem:[#allocation3 + $0x458] sm:$0xff] %v759
      %v776 = vld [vmem:[%s566 + $0x2] sm:$0xff]
      %v777 = vld [vmem:[%s566 + $0xa] sm:$0xff]
      %v778 = vld [vmem:[%s566 + $0x1a] sm:$0xff]
      %v779 = vld [vmem:[%s566 + $0x22] sm:$0xff]
      %v780 = vld [vmem:[%s566 + $0x32] sm:$0xff]
      %v781 = vld [vmem:[%s566 + $0x3a] sm:$0xff]
      %v782 = vld [vmem:[%s566 + $0x4a] sm:$0xff]
      %v783 = vld [vmem:[%s566 + $0x52] sm:$0xff]
      %v784 = vld [vmem:[%s566 + $0x62] sm:$0xff]
      %v785 = vld [vmem:[%s566 + $0x6a] sm:$0xff]
      %v786 = vld [vmem:[%s566 + $0x7a] sm:$0xff]
      %v787 = vld [vmem:[%s566 + $0x82] sm:$0xff]
      %v788 = vld [vmem:[%s566 + $0x92] sm:$0xff]
      %v789 = vld [vmem:[%s566 + $0x9a] sm:$0xff]
      %v790 = vld [vmem:[%s566 + $0xaa] sm:$0xff]
      %v791 = vld [vmem:[%s566 + $0xb2] sm:$0xff]
      %792 = vst [vmem:[#allocation3 + $0x28] sm:$0xff] %v776
      %793 = vst [vmem:[#allocation3 + $0x70] sm:$0xff] %v777
      %794 = vst [vmem:[#allocation3 + $0xb8] sm:$0xff] %v778
      %795 = vst [vmem:[#allocation3 + $0x100] sm:$0xff] %v779
      %796 = vst [vmem:[#allocation3 + $0x148] sm:$0xff] %v780
      %797 = vst [vmem:[#allocation3 + $0x190] sm:$0xff] %v781
      %798 = vst [vmem:[#allocation3 + $0x1d8] sm:$0xff] %v782
      %799 = vst [vmem:[#allocation3 + $0x220] sm:$0xff] %v783
      %800 = vst [vmem:[#allocation3 + $0x268] sm:$0xff] %v784
      %801 = vst [vmem:[#allocation3 + $0x2b0] sm:$0xff] %v785
      %802 = vst [vmem:[#allocation3 + $0x2f8] sm:$0xff] %v786
      %803 = vst [vmem:[#allocation3 + $0x340] sm:$0xff] %v787
      %804 = vst [vmem:[#allocation3 + $0x388] sm:$0xff] %v788
      %805 = vst [vmem:[#allocation3 + $0x3d0] sm:$0xff] %v789
      %806 = vst [vmem:[#allocation3 + $0x418] sm:$0xff] %v790
      %807 = vst [vmem:[#allocation3 + $0x460] sm:$0xff] %v791
      %s808 = scalar_lea.vmem [#allocation2], 48
      %v809 = vld [vmem:[%s808] sm:$0xff]
      %v810 = vld [vmem:[%s808 + $0x8] sm:$0xff]
      %v811 = vld [vmem:[%s808 + $0x18] sm:$0xff]
      %v812 = vld [vmem:[%s808 + $0x20] sm:$0xff]
      %v813 = vld [vmem:[%s808 + $0x30] sm:$0xff]
      %v814 = vld [vmem:[%s808 + $0x38] sm:$0xff]
      %v815 = vld [vmem:[%s808 + $0x48] sm:$0xff]
      %v816 = vld [vmem:[%s808 + $0x50] sm:$0xff]
      %v817 = vld [vmem:[%s808 + $0x60] sm:$0xff]
      %v818 = vld [vmem:[%s808 + $0x68] sm:$0xff]
      %v819 = vld [vmem:[%s808 + $0x78] sm:$0xff]
      %v820 = vld [vmem:[%s808 + $0x80] sm:$0xff]
      %v821 = vld [vmem:[%s808 + $0x90] sm:$0xff]
      %v822 = vld [vmem:[%s808 + $0x98] sm:$0xff]
      %v823 = vld [vmem:[%s808 + $0xa8] sm:$0xff]
      %v824 = vld [vmem:[%s808 + $0xb0] sm:$0xff]
      %825 = vst [vmem:[#allocation3 + $0x30] sm:$0xff] %v809
      %826 = vst [vmem:[#allocation3 + $0x78] sm:$0xff] %v810
      %827 = vst [vmem:[#allocation3 + $0xc0] sm:$0xff] %v811
      %828 = vst [vmem:[#allocation3 + $0x108] sm:$0xff] %v812
      %829 = vst [vmem:[#allocation3 + $0x150] sm:$0xff] %v813
      %830 = vst [vmem:[#allocation3 + $0x198] sm:$0xff] %v814
      %831 = vst [vmem:[#allocation3 + $0x1e0] sm:$0xff] %v815
      %832 = vst [vmem:[#allocation3 + $0x228] sm:$0xff] %v816
      %833 = vst [vmem:[#allocation3 + $0x270] sm:$0xff] %v817
      %834 = vst [vmem:[#allocation3 + $0x2b8] sm:$0xff] %v818
      %835 = vst [vmem:[#allocation3 + $0x300] sm:$0xff] %v819
      %836 = vst [vmem:[#allocation3 + $0x348] sm:$0xff] %v820
      %837 = vst [vmem:[#allocation3 + $0x390] sm:$0xff] %v821
      %838 = vst [vmem:[#allocation3 + $0x3d8] sm:$0xff] %v822
      %839 = vst [vmem:[#allocation3 + $0x420] sm:$0xff] %v823
      %840 = vst [vmem:[#allocation3 + $0x468] sm:$0xff] %v824
      %v841 = vld [vmem:[%s808 + $0x1] sm:$0xff]
      %v842 = vld [vmem:[%s808 + $0x9] sm:$0xff]
      %v843 = vld [vmem:[%s808 + $0x19] sm:$0xff]
      %v844 = vld [vmem:[%s808 + $0x21] sm:$0xff]
      %v845 = vld [vmem:[%s808 + $0x31] sm:$0xff]
      %v846 = vld [vmem:[%s808 + $0x39] sm:$0xff]
      %v847 = vld [vmem:[%s808 + $0x49] sm:$0xff]
      %v848 = vld [vmem:[%s808 + $0x51] sm:$0xff]
      %v849 = vld [vmem:[%s808 + $0x61] sm:$0xff]
      %v850 = vld [vmem:[%s808 + $0x69] sm:$0xff]
      %v851 = vld [vmem:[%s808 + $0x79] sm:$0xff]
      %v852 = vld [vmem:[%s808 + $0x81] sm:$0xff]
      %v853 = vld [vmem:[%s808 + $0x91] sm:$0xff]
      %v854 = vld [vmem:[%s808 + $0x99] sm:$0xff]
      %v855 = vld [vmem:[%s808 + $0xa9] sm:$0xff]
      %v856 = vld [vmem:[%s808 + $0xb1] sm:$0xff]
      %857 = vst [vmem:[#allocation3 + $0x38] sm:$0xff] %v841
      %858 = vst [vmem:[#allocation3 + $0x80] sm:$0xff] %v842
      %859 = vst [vmem:[#allocation3 + $0xc8] sm:$0xff] %v843
      %860 = vst [vmem:[#allocation3 + $0x110] sm:$0xff] %v844
      %861 = vst [vmem:[#allocation3 + $0x158] sm:$0xff] %v845
      %862 = vst [vmem:[#allocation3 + $0x1a0] sm:$0xff] %v846
      %863 = vst [vmem:[#allocation3 + $0x1e8] sm:$0xff] %v847
      %864 = vst [vmem:[#allocation3 + $0x230] sm:$0xff] %v848
      %865 = vst [vmem:[#allocation3 + $0x278] sm:$0xff] %v849
      %866 = vst [vmem:[#allocation3 + $0x2c0] sm:$0xff] %v850
      %867 = vst [vmem:[#allocation3 + $0x308] sm:$0xff] %v851
      %868 = vst [vmem:[#allocation3 + $0x350] sm:$0xff] %v852
      %869 = vst [vmem:[#allocation3 + $0x398] sm:$0xff] %v853
      %870 = vst [vmem:[#allocation3 + $0x3e0] sm:$0xff] %v854
      %871 = vst [vmem:[#allocation3 + $0x428] sm:$0xff] %v855
      %872 = vst [vmem:[#allocation3 + $0x470] sm:$0xff] %v856
      %v873 = vld [vmem:[%s808 + $0x2] sm:$0xff]
      %v874 = vld [vmem:[%s808 + $0xa] sm:$0xff]
      %v875 = vld [vmem:[%s808 + $0x1a] sm:$0xff]
      %v876 = vld [vmem:[%s808 + $0x22] sm:$0xff]
      %v877 = vld [vmem:[%s808 + $0x32] sm:$0xff]
      %v878 = vld [vmem:[%s808 + $0x3a] sm:$0xff]
      %v879 = vld [vmem:[%s808 + $0x4a] sm:$0xff]
      %v880 = vld [vmem:[%s808 + $0x52] sm:$0xff]
      %v881 = vld [vmem:[%s808 + $0x62] sm:$0xff]
      %v882 = vld [vmem:[%s808 + $0x6a] sm:$0xff]
      %v883 = vld [vmem:[%s808 + $0x7a] sm:$0xff]
      %v884 = vld [vmem:[%s808 + $0x82] sm:$0xff]
      %v885 = vld [vmem:[%s808 + $0x92] sm:$0xff]
      %v886 = vld [vmem:[%s808 + $0x9a] sm:$0xff]
      %v887 = vld [vmem:[%s808 + $0xaa] sm:$0xff]
      %v888 = vld [vmem:[%s808 + $0xb2] sm:$0xff]
      %889 = vst [vmem:[#allocation3 + $0x40] sm:$0xff] %v873
      %890 = vst [vmem:[#allocation3 + $0x88] sm:$0xff] %v874
      %891 = vst [vmem:[#allocation3 + $0xd0] sm:$0xff] %v875
      %892 = vst [vmem:[#allocation3 + $0x118] sm:$0xff] %v876
      %893 = vst [vmem:[#allocation3 + $0x160] sm:$0xff] %v877
      %894 = vst [vmem:[#allocation3 + $0x1a8] sm:$0xff] %v878
      %895 = vst [vmem:[#allocation3 + $0x1f0] sm:$0xff] %v879
      %896 = vst [vmem:[#allocation3 + $0x238] sm:$0xff] %v880
      %897 = vst [vmem:[#allocation3 + $0x280] sm:$0xff] %v881
      %898 = vst [vmem:[#allocation3 + $0x2c8] sm:$0xff] %v882
      %899 = vst [vmem:[#allocation3 + $0x310] sm:$0xff] %v883
      %900 = vst [vmem:[#allocation3 + $0x358] sm:$0xff] %v884
      %901 = vst [vmem:[#allocation3 + $0x3a0] sm:$0xff] %v885
      %902 = vst [vmem:[#allocation3 + $0x3e8] sm:$0xff] %v886
      %903 = vst [vmem:[#allocation3 + $0x430] sm:$0xff] %v887
      %904 = vst [vmem:[#allocation3 + $0x478] sm:$0xff] %v888
      %v905 = vld [vmem:[#allocation3] sm:$0xff]
      %v906 = vld [vmem:[#allocation3 + $0x8] sm:$0xff]
      %v907 = vld [vmem:[#allocation3 + $0x10] sm:$0xff]
      %v908 = vld [vmem:[#allocation3 + $0x18] sm:$0xff]
      %v909 = vld [vmem:[#allocation3 + $0x20] sm:$0xff]
      %v910 = vld [vmem:[#allocation3 + $0x28] sm:$0xff]
      %v911 = vld [vmem:[#allocation3 + $0x30] sm:$0xff]
      %v912 = vld [vmem:[#allocation3 + $0x38] sm:$0xff]
      %v913 = vld [vmem:[#allocation3 + $0x40] sm:$0xff]
      %v914 = vld [vmem:[#allocation3 + $0x48] sm:$0xff]
      %v915 = vld [vmem:[#allocation3 + $0x50] sm:$0xff]
      %v916 = vld [vmem:[#allocation3 + $0x58] sm:$0xff]
      %v917 = vld [vmem:[#allocation3 + $0x60] sm:$0xff]
      %v918 = vld [vmem:[#allocation3 + $0x68] sm:$0xff]
      %v919 = vld [vmem:[#allocation3 + $0x70] sm:$0xff]
      %v920 = vld [vmem:[#allocation3 + $0x78] sm:$0xff]
      %v921 = vld [vmem:[#allocation3 + $0x80] sm:$0xff]
      %v922 = vld [vmem:[#allocation3 + $0x88] sm:$0xff]
      %v923 = vld [vmem:[#allocation3 + $0x90] sm:$0xff]
      %v924 = vld [vmem:[#allocation3 + $0x98] sm:$0xff]
      %v925 = vld [vmem:[#allocation3 + $0xa0] sm:$0xff]
      %v926 = vld [vmem:[#allocation3 + $0xa8] sm:$0xff]
      %v927 = vld [vmem:[#allocation3 + $0xb0] sm:$0xff]
      %v928 = vld [vmem:[#allocation3 + $0xb8] sm:$0xff]
      %v929 = vld [vmem:[#allocation3 + $0xc0] sm:$0xff]
      %v930 = vld [vmem:[#allocation3 + $0xc8] sm:$0xff]
      %v931 = vld [vmem:[#allocation3 + $0xd0] sm:$0xff]
      %v932 = vld [vmem:[#allocation3 + $0xd8] sm:$0xff]
      %v933 = vld [vmem:[#allocation3 + $0xe0] sm:$0xff]
      %v934 = vld [vmem:[#allocation3 + $0xe8] sm:$0xff]
      %v935 = vld [vmem:[#allocation3 + $0xf0] sm:$0xff]
      %v936 = vld [vmem:[#allocation3 + $0xf8] sm:$0xff]
      %v937 = vld [vmem:[#allocation3 + $0x100] sm:$0xff]
      %v938 = vld [vmem:[#allocation3 + $0x108] sm:$0xff]
      %v939 = vld [vmem:[#allocation3 + $0x110] sm:$0xff]
      %v940 = vld [vmem:[#allocation3 + $0x118] sm:$0xff]
      %v941 = vld [vmem:[#allocation3 + $0x120] sm:$0xff]
      %v942 = vld [vmem:[#allocation3 + $0x128] sm:$0xff]
      %v943 = vld [vmem:[#allocation3 + $0x130] sm:$0xff]
      %v944 = vld [vmem:[#allocation3 + $0x138] sm:$0xff]
      %v945 = vld [vmem:[#allocation3 + $0x140] sm:$0xff]
      %v946 = vld [vmem:[#allocation3 + $0x148] sm:$0xff]
      %v947 = vld [vmem:[#allocation3 + $0x150] sm:$0xff]
      %v948 = vld [vmem:[#allocation3 + $0x158] sm:$0xff]
      %v949 = vld [vmem:[#allocation3 + $0x160] sm:$0xff]
      %v950 = vld [vmem:[#allocation3 + $0x168] sm:$0xff]
      %v951 = vld [vmem:[#allocation3 + $0x170] sm:$0xff]
      %v952 = vld [vmem:[#allocation3 + $0x178] sm:$0xff]
      %v953 = vld [vmem:[#allocation3 + $0x180] sm:$0xff]
      %v954 = vld [vmem:[#allocation3 + $0x188] sm:$0xff]
      %v955 = vld [vmem:[#allocation3 + $0x190] sm:$0xff]
      %v956 = vld [vmem:[#allocation3 + $0x198] sm:$0xff]
      %v957 = vld [vmem:[#allocation3 + $0x1a0] sm:$0xff]
      %v958 = vld [vmem:[#allocation3 + $0x1a8] sm:$0xff]
      %v959 = vld [vmem:[#allocation3 + $0x1b0] sm:$0xff]
      %v960 = vld [vmem:[#allocation3 + $0x1b8] sm:$0xff]
      %v961 = vld [vmem:[#allocation3 + $0x1c0] sm:$0xff]
      %v962 = vld [vmem:[#allocation3 + $0x1c8] sm:$0xff]
      %v963 = vld [vmem:[#allocation3 + $0x1d0] sm:$0xff]
      %v964 = vld [vmem:[#allocation3 + $0x1d8] sm:$0xff]
      %v965 = vld [vmem:[#allocation3 + $0x1e0] sm:$0xff]
      %v966 = vld [vmem:[#allocation3 + $0x1e8] sm:$0xff]
      %v967 = vld [vmem:[#allocation3 + $0x1f0] sm:$0xff]
      %v968 = vld [vmem:[#allocation3 + $0x1f8] sm:$0xff]
      %v969 = vld [vmem:[#allocation3 + $0x200] sm:$0xff]
      %v970 = vld [vmem:[#allocation3 + $0x208] sm:$0xff]
      %v971 = vld [vmem:[#allocation3 + $0x210] sm:$0xff]
      %v972 = vld [vmem:[#allocation3 + $0x218] sm:$0xff]
      %v973 = vld [vmem:[#allocation3 + $0x220] sm:$0xff]
      %v974 = vld [vmem:[#allocation3 + $0x228] sm:$0xff]
      %v975 = vld [vmem:[#allocation3 + $0x230] sm:$0xff]
      %v976 = vld [vmem:[#allocation3 + $0x238] sm:$0xff]
      %v977 = vld [vmem:[#allocation3 + $0x240] sm:$0xff]
      %v978 = vld [vmem:[#allocation3 + $0x248] sm:$0xff]
      %v979 = vld [vmem:[#allocation3 + $0x250] sm:$0xff]
      %v980 = vld [vmem:[#allocation3 + $0x258] sm:$0xff]
      %v981 = vld [vmem:[#allocation3 + $0x260] sm:$0xff]
      %v982 = vld [vmem:[#allocation3 + $0x268] sm:$0xff]
      %v983 = vld [vmem:[#allocation3 + $0x270] sm:$0xff]
      %v984 = vld [vmem:[#allocation3 + $0x278] sm:$0xff]
      %v985 = vld [vmem:[#allocation3 + $0x280] sm:$0xff]
      %v986 = vld [vmem:[#allocation3 + $0x288] sm:$0xff]
      %v987 = vld [vmem:[#allocation3 + $0x290] sm:$0xff]
      %v988 = vld [vmem:[#allocation3 + $0x298] sm:$0xff]
      %v989 = vld [vmem:[#allocation3 + $0x2a0] sm:$0xff]
      %v990 = vld [vmem:[#allocation3 + $0x2a8] sm:$0xff]
      %v991 = vld [vmem:[#allocation3 + $0x2b0] sm:$0xff]
      %v992 = vld [vmem:[#allocation3 + $0x2b8] sm:$0xff]
      %v993 = vld [vmem:[#allocation3 + $0x2c0] sm:$0xff]
      %v994 = vld [vmem:[#allocation3 + $0x2c8] sm:$0xff]
      %v995 = vld [vmem:[#allocation3 + $0x2d0] sm:$0xff]
      %v996 = vld [vmem:[#allocation3 + $0x2d8] sm:$0xff]
      %v997 = vld [vmem:[#allocation3 + $0x2e0] sm:$0xff]
      %v998 = vld [vmem:[#allocation3 + $0x2e8] sm:$0xff]
      %v999 = vld [vmem:[#allocation3 + $0x2f0] sm:$0xff]
      %v1000 = vld [vmem:[#allocation3 + $0x2f8] sm:$0xff]
      %v1001 = vld [vmem:[#allocation3 + $0x300] sm:$0xff]
      %v1002 = vld [vmem:[#allocation3 + $0x308] sm:$0xff]
      %v1003 = vld [vmem:[#allocation3 + $0x310] sm:$0xff]
      %v1004 = vld [vmem:[#allocation3 + $0x318] sm:$0xff]
      %v1005 = vld [vmem:[#allocation3 + $0x320] sm:$0xff]
      %v1006 = vld [vmem:[#allocation3 + $0x328] sm:$0xff]
      %v1007 = vld [vmem:[#allocation3 + $0x330] sm:$0xff]
      %v1008 = vld [vmem:[#allocation3 + $0x338] sm:$0xff]
      %v1009 = vld [vmem:[#allocation3 + $0x340] sm:$0xff]
      %v1010 = vld [vmem:[#allocation3 + $0x348] sm:$0xff]
      %v1011 = vld [vmem:[#allocation3 + $0x350] sm:$0xff]
      %v1012 = vld [vmem:[#allocation3 + $0x358] sm:$0xff]
      %v1013 = vld [vmem:[#allocation3 + $0x360] sm:$0xff]
      %v1014 = vld [vmem:[#allocation3 + $0x368] sm:$0xff]
      %v1015 = vld [vmem:[#allocation3 + $0x370] sm:$0xff]
      %v1016 = vld [vmem:[#allocation3 + $0x378] sm:$0xff]
      %v1017 = vld [vmem:[#allocation3 + $0x380] sm:$0xff]
      %v1018 = vld [vmem:[#allocation3 + $0x388] sm:$0xff]
      %v1019 = vld [vmem:[#allocation3 + $0x390] sm:$0xff]
      %v1020 = vld [vmem:[#allocation3 + $0x398] sm:$0xff]
      %v1021 = vld [vmem:[#allocation3 + $0x3a0] sm:$0xff]
      %v1022 = vld [vmem:[#allocation3 + $0x3a8] sm:$0xff]
      %v1023 = vld [vmem:[#allocation3 + $0x3b0] sm:$0xff]
      %v1024 = vld [vmem:[#allocation3 + $0x3b8] sm:$0xff]
      %v1025 = vld [vmem:[#allocation3 + $0x3c0] sm:$0xff]
      %v1026 = vld [vmem:[#allocation3 + $0x3c8] sm:$0xff]
      %v1027 = vld [vmem:[#allocation3 + $0x3d0] sm:$0xff]
      %v1028 = vld [vmem:[#allocation3 + $0x3d8] sm:$0xff]
      %v1029 = vld [vmem:[#allocation3 + $0x3e0] sm:$0xff]
      %v1030 = vld [vmem:[#allocation3 + $0x3e8] sm:$0xff]
      %v1031 = vld [vmem:[#allocation3 + $0x3f0] sm:$0xff]
      %v1032 = vld [vmem:[#allocation3 + $0x3f8] sm:$0xff]
      %v1033 = vld [vmem:[#allocation3 + $0x400] sm:$0xff]
      %v1034 = vld [vmem:[#allocation3 + $0x408] sm:$0xff]
      %v1035 = vld [vmem:[#allocation3 + $0x410] sm:$0xff]
      %v1036 = vld [vmem:[#allocation3 + $0x418] sm:$0xff]
      %v1037 = vld [vmem:[#allocation3 + $0x420] sm:$0xff]
      %v1038 = vld [vmem:[#allocation3 + $0x428] sm:$0xff]
      %v1039 = vld [vmem:[#allocation3 + $0x430] sm:$0xff]
      %v1040 = vld [vmem:[#allocation3 + $0x438] sm:$0xff]
      %v1041 = vld [vmem:[#allocation3 + $0x440] sm:$0xff]
      %v1042 = vld [vmem:[#allocation3 + $0x448] sm:$0xff]
      %v1043 = vld [vmem:[#allocation3 + $0x450] sm:$0xff]
      %v1044 = vld [vmem:[#allocation3 + $0x458] sm:$0xff]
      %v1045 = vld [vmem:[#allocation3 + $0x460] sm:$0xff]
      %v1046 = vld [vmem:[#allocation3 + $0x468] sm:$0xff]
      %v1047 = vld [vmem:[#allocation3 + $0x470] sm:$0xff]
      %v1048 = vld [vmem:[#allocation3 + $0x478] sm:$0xff]
      %v1049 = vld [vmem:[%s5] sm:$0xff]
      %v1050 = vld [vmem:[%s5 + $0x8] sm:$0xff]
      %v1051 = vld [vmem:[%s5 + $0x10] sm:$0xff]
      %v1052 = vld [vmem:[%s5 + $0x18] sm:$0xff]
      %v1053 = vld [vmem:[%s5 + $0x20] sm:$0xff]
      %v1054 = vld [vmem:[%s5 + $0x28] sm:$0xff]
      %v1055 = vld [vmem:[%s5 + $0x30] sm:$0xff]
      %v1056 = vld [vmem:[%s5 + $0x38] sm:$0xff]
      %v1057 = vld [vmem:[%s5 + $0x40] sm:$0xff]
      %v1058 = vld [vmem:[%s5 + $0x48] sm:$0xff]
      %v1059 = vld [vmem:[%s5 + $0x50] sm:$0xff]
      %v1060 = vld [vmem:[%s5 + $0x58] sm:$0xff]
      %v1061 = vld [vmem:[%s5 + $0x60] sm:$0xff]
      %v1062 = vld [vmem:[%s5 + $0x68] sm:$0xff]
      %v1063 = vld [vmem:[%s5 + $0x70] sm:$0xff]
      %v1064 = vld [vmem:[%s5 + $0x78] sm:$0xff]
      %v1065 = vld [vmem:[%s5 + $0x80] sm:$0xff]
      %v1066 = vld [vmem:[%s5 + $0x88] sm:$0xff]
      %v1067 = vld [vmem:[%s5 + $0x90] sm:$0xff]
      %v1068 = vld [vmem:[%s5 + $0x98] sm:$0xff]
      %v1069 = vld [vmem:[%s5 + $0xa0] sm:$0xff]
      %v1070 = vld [vmem:[%s5 + $0xa8] sm:$0xff]
      %v1071 = vld [vmem:[%s5 + $0xb0] sm:$0xff]
      %v1072 = vld [vmem:[%s5 + $0xb8] sm:$0xff]
      %v1073 = vld [vmem:[%s5 + $0xc0] sm:$0xff]
      %v1074 = vld [vmem:[%s5 + $0xc8] sm:$0xff]
      %v1075 = vld [vmem:[%s5 + $0xd0] sm:$0xff]
      %v1076 = vld [vmem:[%s5 + $0xd8] sm:$0xff]
      %v1077 = vld [vmem:[%s5 + $0xe0] sm:$0xff]
      %v1078 = vld [vmem:[%s5 + $0xe8] sm:$0xff]
      %v1079 = vld [vmem:[%s5 + $0xf0] sm:$0xff]
      %v1080 = vld [vmem:[%s5 + $0xf8] sm:$0xff]
      %v1081 = vld [vmem:[%s5 + $0x100] sm:$0xff]
      %v1082 = vld [vmem:[%s5 + $0x108] sm:$0xff]
      %v1083 = vld [vmem:[%s5 + $0x110] sm:$0xff]
      %v1084 = vld [vmem:[%s5 + $0x118] sm:$0xff]
      %v1085 = vld [vmem:[%s5 + $0x120] sm:$0xff]
      %v1086 = vld [vmem:[%s5 + $0x128] sm:$0xff]
      %v1087 = vld [vmem:[%s5 + $0x130] sm:$0xff]
      %v1088 = vld [vmem:[%s5 + $0x138] sm:$0xff]
      %v1089 = vld [vmem:[%s5 + $0x140] sm:$0xff]
      %v1090 = vld [vmem:[%s5 + $0x148] sm:$0xff]
      %v1091 = vld [vmem:[%s5 + $0x150] sm:$0xff]
      %v1092 = vld [vmem:[%s5 + $0x158] sm:$0xff]
      %v1093 = vld [vmem:[%s5 + $0x160] sm:$0xff]
      %v1094 = vld [vmem:[%s5 + $0x168] sm:$0xff]
      %v1095 = vld [vmem:[%s5 + $0x170] sm:$0xff]
      %v1096 = vld [vmem:[%s5 + $0x178] sm:$0xff]
      %v1097 = vld [vmem:[%s5 + $0x180] sm:$0xff]
      %v1098 = vld [vmem:[%s5 + $0x188] sm:$0xff]
      %v1099 = vld [vmem:[%s5 + $0x190] sm:$0xff]
      %v1100 = vld [vmem:[%s5 + $0x198] sm:$0xff]
      %v1101 = vld [vmem:[%s5 + $0x1a0] sm:$0xff]
      %v1102 = vld [vmem:[%s5 + $0x1a8] sm:$0xff]
      %v1103 = vld [vmem:[%s5 + $0x1b0] sm:$0xff]
      %v1104 = vld [vmem:[%s5 + $0x1b8] sm:$0xff]
      %v1105 = vld [vmem:[%s5 + $0x1c0] sm:$0xff]
      %v1106 = vld [vmem:[%s5 + $0x1c8] sm:$0xff]
      %v1107 = vld [vmem:[%s5 + $0x1d0] sm:$0xff]
      %v1108 = vld [vmem:[%s5 + $0x1d8] sm:$0xff]
      %v1109 = vld [vmem:[%s5 + $0x1e0] sm:$0xff]
      %v1110 = vld [vmem:[%s5 + $0x1e8] sm:$0xff]
      %v1111 = vld [vmem:[%s5 + $0x1f0] sm:$0xff]
      %v1112 = vld [vmem:[%s5 + $0x1f8] sm:$0xff]
      %v1113 = vld [vmem:[%s5 + $0x200] sm:$0xff]
      %v1114 = vld [vmem:[%s5 + $0x208] sm:$0xff]
      %v1115 = vld [vmem:[%s5 + $0x210] sm:$0xff]
      %v1116 = vld [vmem:[%s5 + $0x218] sm:$0xff]
      %v1117 = vld [vmem:[%s5 + $0x220] sm:$0xff]
      %v1118 = vld [vmem:[%s5 + $0x228] sm:$0xff]
      %v1119 = vld [vmem:[%s5 + $0x230] sm:$0xff]
      %v1120 = vld [vmem:[%s5 + $0x238] sm:$0xff]
      %v1121 = vld [vmem:[%s5 + $0x240] sm:$0xff]
      %v1122 = vld [vmem:[%s5 + $0x248] sm:$0xff]
      %v1123 = vld [vmem:[%s5 + $0x250] sm:$0xff]
      %v1124 = vld [vmem:[%s5 + $0x258] sm:$0xff]
      %v1125 = vld [vmem:[%s5 + $0x260] sm:$0xff]
      %v1126 = vld [vmem:[%s5 + $0x268] sm:$0xff]
      %v1127 = vld [vmem:[%s5 + $0x270] sm:$0xff]
      %v1128 = vld [vmem:[%s5 + $0x278] sm:$0xff]
      %v1129 = vld [vmem:[%s5 + $0x280] sm:$0xff]
      %v1130 = vld [vmem:[%s5 + $0x288] sm:$0xff]
      %v1131 = vld [vmem:[%s5 + $0x290] sm:$0xff]
      %v1132 = vld [vmem:[%s5 + $0x298] sm:$0xff]
      %v1133 = vld [vmem:[%s5 + $0x2a0] sm:$0xff]
      %v1134 = vld [vmem:[%s5 + $0x2a8] sm:$0xff]
      %v1135 = vld [vmem:[%s5 + $0x2b0] sm:$0xff]
      %v1136 = vld [vmem:[%s5 + $0x2b8] sm:$0xff]
      %v1137 = vld [vmem:[%s5 + $0x2c0] sm:$0xff]
      %v1138 = vld [vmem:[%s5 + $0x2c8] sm:$0xff]
      %v1139 = vld [vmem:[%s5 + $0x2d0] sm:$0xff]
      %v1140 = vld [vmem:[%s5 + $0x2d8] sm:$0xff]
      %v1141 = vld [vmem:[%s5 + $0x2e0] sm:$0xff]
      %v1142 = vld [vmem:[%s5 + $0x2e8] sm:$0xff]
      %v1143 = vld [vmem:[%s5 + $0x2f0] sm:$0xff]
      %v1144 = vld [vmem:[%s5 + $0x2f8] sm:$0xff]
      %v1145 = vld [vmem:[%s5 + $0x300] sm:$0xff]
      %v1146 = vld [vmem:[%s5 + $0x308] sm:$0xff]
      %v1147 = vld [vmem:[%s5 + $0x310] sm:$0xff]
      %v1148 = vld [vmem:[%s5 + $0x318] sm:$0xff]
      %v1149 = vld [vmem:[%s5 + $0x320] sm:$0xff]
      %v1150 = vld [vmem:[%s5 + $0x328] sm:$0xff]
      %v1151 = vld [vmem:[%s5 + $0x330] sm:$0xff]
      %v1152 = vld [vmem:[%s5 + $0x338] sm:$0xff]
      %v1153 = vld [vmem:[%s5 + $0x340] sm:$0xff]
      %v1154 = vld [vmem:[%s5 + $0x348] sm:$0xff]
      %v1155 = vld [vmem:[%s5 + $0x350] sm:$0xff]
      %v1156 = vld [vmem:[%s5 + $0x358] sm:$0xff]
      %v1157 = vld [vmem:[%s5 + $0x360] sm:$0xff]
      %v1158 = vld [vmem:[%s5 + $0x368] sm:$0xff]
      %v1159 = vld [vmem:[%s5 + $0x370] sm:$0xff]
      %v1160 = vld [vmem:[%s5 + $0x378] sm:$0xff]
      %v1161 = vld [vmem:[%s5 + $0x380] sm:$0xff]
      %v1162 = vld [vmem:[%s5 + $0x388] sm:$0xff]
      %v1163 = vld [vmem:[%s5 + $0x390] sm:$0xff]
      %v1164 = vld [vmem:[%s5 + $0x398] sm:$0xff]
      %v1165 = vld [vmem:[%s5 + $0x3a0] sm:$0xff]
      %v1166 = vld [vmem:[%s5 + $0x3a8] sm:$0xff]
      %v1167 = vld [vmem:[%s5 + $0x3b0] sm:$0xff]
      %v1168 = vld [vmem:[%s5 + $0x3b8] sm:$0xff]
      %v1169 = vld [vmem:[%s5 + $0x3c0] sm:$0xff]
      %v1170 = vld [vmem:[%s5 + $0x3c8] sm:$0xff]
      %v1171 = vld [vmem:[%s5 + $0x3d0] sm:$0xff]
      %v1172 = vld [vmem:[%s5 + $0x3d8] sm:$0xff]
      %v1173 = vld [vmem:[%s5 + $0x3e0] sm:$0xff]
      %v1174 = vld [vmem:[%s5 + $0x3e8] sm:$0xff]
      %v1175 = vld [vmem:[%s5 + $0x3f0] sm:$0xff]
      %v1176 = vld [vmem:[%s5 + $0x3f8] sm:$0xff]
      %v1177 = vld [vmem:[%s5 + $0x400] sm:$0xff]
      %v1178 = vld [vmem:[%s5 + $0x408] sm:$0xff]
      %v1179 = vld [vmem:[%s5 + $0x410] sm:$0xff]
      %v1180 = vld [vmem:[%s5 + $0x418] sm:$0xff]
      %v1181 = vld [vmem:[%s5 + $0x420] sm:$0xff]
      %v1182 = vld [vmem:[%s5 + $0x428] sm:$0xff]
      %v1183 = vld [vmem:[%s5 + $0x430] sm:$0xff]
      %v1184 = vld [vmem:[%s5 + $0x438] sm:$0xff]
      %v1185 = vld [vmem:[%s5 + $0x440] sm:$0xff]
      %v1186 = vld [vmem:[%s5 + $0x448] sm:$0xff]
      %v1187 = vld [vmem:[%s5 + $0x450] sm:$0xff]
      %v1188 = vld [vmem:[%s5 + $0x458] sm:$0xff]
      %v1189 = vld [vmem:[%s5 + $0x460] sm:$0xff]
      %v1190 = vld [vmem:[%s5 + $0x468] sm:$0xff]
      %v1191 = vld [vmem:[%s5 + $0x470] sm:$0xff]
      %v1192 = vld [vmem:[%s5 + $0x478] sm:$0xff]
      %1193 = vmatprep.subr.mxu0 0.0
      %1194 = vmatpush1.msra.mxu0 %v1049
      %1195 = vmatprep.subr.mxu0 0.0
      %1196 = vmatpush1.msra.mxu0 %v1050
      %1197 = vmatprep.subr.mxu0 0.0
      %1198 = vmatpush1.msra.mxu0 %v1051
      %1199 = vmatprep.subr.mxu0 0.0
      %1200 = vmatpush1.msra.mxu0 %v1052
      %1201 = vmatprep.subr.mxu0 0.0
      %1202 = vmatpush1.msra.mxu0 %v1053
      %1203 = vmatprep.subr.mxu0 0.0
      %1204 = vmatpush1.msra.mxu0 %v1054
      %1205 = vmatprep.subr.mxu0 0.0
      %1206 = vmatpush1.msra.mxu0 %v1055
      %1207 = vmatprep.subr.mxu0 0.0
      %1208 = vmatpush1.msra.mxu0 %v1056
      %1209 = vmatprep.subr.mxu0 0.0
      %1210 = vmatpush1.msra.mxu0 %v1057
      %1211 = vmatprep.subr.mxu0 0.0
      %1212 = vmatpush1.msra.mxu0 %v1058
      %1213 = vmatprep.subr.mxu0 0.0
      %1214 = vmatpush1.msra.mxu0 %v1059
      %1215 = vmatprep.subr.mxu0 0.0
      %1216 = vmatpush1.msra.mxu0 %v1060
      %1217 = vmatprep.subr.mxu0 0.0
      %1218 = vmatpush1.msra.mxu0 %v1061
      %1219 = vmatprep.subr.mxu0 0.0
      %1220 = vmatpush1.msra.mxu0 %v1062
      %1221 = vmatprep.subr.mxu0 0.0
      %1222 = vmatpush1.msra.mxu0 %v1063
      %1223 = vmatprep.subr.mxu0 0.0
      %1224 = vmatpush1.msra.mxu0 %v1064
      %1225 = vmatprep.subr.mxu0 0.0
      %1226 = vmatpush1.msra.mxu0 %v1065
      %1227 = vmatprep.subr.mxu0 0.0
      %1228 = vmatpush1.msra.mxu0 %v1066
      %1229 = vmatprep.subr.mxu0 0.0
      %1230 = vmatpush1.msra.mxu0 %v1067
      %1231 = vmatprep.subr.mxu0 0.0
      %1232 = vmatpush1.msra.mxu0 %v1068
      %1233 = vmatprep.subr.mxu0 0.0
      %1234 = vmatpush1.msra.mxu0 %v1069
      %1235 = vmatprep.subr.mxu0 0.0
      %1236 = vmatpush1.msra.mxu0 %v1070
      %1237 = vmatprep.subr.mxu0 0.0
      %1238 = vmatpush1.msra.mxu0 %v1071
      %1239 = vmatprep.subr.mxu0 0.0
      %1240 = vmatpush1.msra.mxu0 %v1072
      %1241 = vmatprep.subr.mxu0 0.0
      %1242 = vmatpush1.msra.mxu0 %v1073
      %1243 = vmatprep.subr.mxu0 0.0
      %1244 = vmatpush1.msra.mxu0 %v1074
      %1245 = vmatprep.subr.mxu0 0.0
      %1246 = vmatpush1.msra.mxu0 %v1075
      %1247 = vmatprep.subr.mxu0 0.0
      %1248 = vmatpush1.msra.mxu0 %v1076
      %1249 = vmatprep.subr.mxu0 0.0
      %1250 = vmatpush1.msra.mxu0 %v1077
      %1251 = vmatprep.subr.mxu0 0.0
      %1252 = vmatpush1.msra.mxu0 %v1078
      %1253 = vmatprep.subr.mxu0 0.0
      %1254 = vmatpush1.msra.mxu0 %v1079
      %1255 = vmatprep.subr.mxu0 0.0
      %1256 = vmatpush1.msra.mxu0 %v1080
      %1257 = vmatprep.mubr.f32.mxu0 %v906
      %1258 = vmatmul.mubr.f32.gmra.mrb[0].mxu0 %v905
      %v1259 = vpop.f32.mrb[0].mxu0
      %v1260 = vadd.f32 0.0, %v1259
      %v1261 = vpop.f32.mrb[0].mxu0
      %1262 = vmatprep.mubr.f32.mxu0 %v915
      %1263 = vmatmul.mubr.f32.gmra.mrb[0].mxu0 %v914
      %v1264 = vpop.f32.mrb[0].mxu0
      %v1265 = vadd.f32 0.0, %v1264
      %v1266 = vpop.f32.mrb[0].mxu0
      %1267 = vmatprep.mubr.f32.mxu0 %v924
      %1268 = vmatmul.mubr.f32.gmra.mrb[0].mxu0 %v923
      %v1269 = vpop.f32.mrb[0].mxu0
      %v1270 = vadd.f32 0.0, %v1269
      %v1271 = vpop.f32.mrb[0].mxu0
      %1272 = vmatprep.mubr.f32.mxu0 %v933
      %1273 = vmatmul.mubr.f32.gmra.mrb[0].mxu0 %v932
      %v1274 = vpop.f32.mrb[0].mxu0
      %v1275 = vadd.f32 0.0, %v1274
      %v1276 = vpop.f32.mrb[0].mxu0
      %1277 = vmatprep.mubr.f32.mxu0 %v942
      %1278 = vmatmul.mubr.f32.gmra.mrb[0].mxu0 %v941
      %v1279 = vpop.f32.mrb[0].mxu0
      %v1280 = vadd.f32 0.0, %v1279
      %v1281 = vpop.f32.mrb[0].mxu0
      %1282 = vmatprep.mubr.f32.mxu0 %v951
      %1283 = vmatmul.mubr.f32.gmra.mrb[0].mxu0 %v950
      %v1284 = vpop.f32.mrb[0].mxu0
      %v1285 = vadd.f32 0.0, %v1284
      %v1286 = vpop.f32.mrb[0].mxu0
      %1287 = vmatprep.mubr.f32.mxu0 %v960
      %1288 = vmatmul.mubr.f32.gmra.mrb[0].mxu0 %v959
      %v1289 = vpop.f32.mrb[0].mxu0
      %v1290 = vadd.f32 0.0, %v1289
      %v1291 = vpop.f32.mrb[0].mxu0
      %1292 = vmatprep.mubr.f32.mxu0 %v969
      %1293 = vmatmul.mubr.f32.gmra.mrb[0].mxu0 %v968
      %v1294 = vpop.f32.mrb[0].mxu0
      %v1295 = vadd.f32 0.0, %v1294
      %v1296 = vpop.f32.mrb[0].mxu0
      %1297 = vmatprep.mubr.f32.mxu0 %v978
      %1298 = vmatmul.mubr.f32.gmra.mrb[0].mxu0 %v977
      %v1299 = vpop.f32.mrb[0].mxu0
      %v1300 = vadd.f32 0.0, %v1299
      %v1301 = vpop.f32.mrb[0].mxu0
      %1302 = vmatprep.mubr.f32.mxu0 %v987
      %1303 = vmatmul.mubr.f32.gmra.mrb[0].mxu0 %v986
      %v1304 = vpop.f32.mrb[0].mxu0
      %v1305 = vadd.f32 0.0, %v1304
      %v1306 = vpop.f32.mrb[0].mxu0
      %1307 = vmatprep.mubr.f32.mxu0 %v996
      %1308 = vmatmul.mubr.f32.gmra.mrb[0].mxu0 %v995
      %v1309 = vpop.f32.mrb[0].mxu0
      %v1310 = vadd.f32 0.0, %v1309
      %v1311 = vpop.f32.mrb[0].mxu0
      %1312 = vmatprep.mubr.f32.mxu0 %v1005
      %1313 = vmatmul.mubr.f32.gmra.mrb[0].mxu0 %v1004
      %v1314 = vpop.f32.mrb[0].mxu0
      %v1315 = vadd.f32 0.0, %v1314
      %v1316 = vpop.f32.mrb[0].mxu0
      %1317 = vmatprep.mubr.f32.mxu0 %v1014
      %1318 = vmatmul.mubr.f32.gmra.mrb[0].mxu0 %v1013
      %v1319 = vpop.f32.mrb[0].mxu0
      %v1320 = vadd.f32 0.0, %v1319
      %v1321 = vpop.f32.mrb[0].mxu0
      %1322 = vmatprep.mubr.f32.mxu0 %v1023
      %1323 = vmatmul.mubr.f32.gmra.mrb[0].mxu0 %v1022
      %v1324 = vpop.f32.mrb[0].mxu0
      %v1325 = vadd.f32 0.0, %v1324
      %v1326 = vpop.f32.mrb[0].mxu0
      %1327 = vmatprep.mubr.f32.mxu0 %v1032
      %1328 = vmatmul.mubr.f32.gmra.mrb[0].mxu0 %v1031
      %v1329 = vpop.f32.mrb[0].mxu0
      %v1330 = vadd.f32 0.0, %v1329
      %v1331 = vpop.f32.mrb[0].mxu0
      %1332 = vmatprep.mubr.f32.mxu0 %v1041
      %1333 = vmatmul.mubr.f32.gmra.mrb[0].mxu0 %v1040
      %v1334 = vpop.f32.mrb[0].mxu0
      %v1335 = vadd.f32 0.0, %v1334
      %v1336 = vpop.f32.mrb[0].mxu0
      %1337 = vdwg.mxu0
      %1338 = vmatprep.subr.mxu0 0.0
      %1339 = vmatpush1.msra.mxu0 %v1081
      %1340 = vmatprep.subr.mxu0 0.0
      %1341 = vmatpush1.msra.mxu0 %v1082
      %1342 = vmatprep.subr.mxu0 0.0
      %1343 = vmatpush1.msra.mxu0 %v1083
      %1344 = vmatprep.subr.mxu0 0.0
      %1345 = vmatpush1.msra.mxu0 %v1084
      %1346 = vmatprep.subr.mxu0 0.0
      %1347 = vmatpush1.msra.mxu0 %v1085
      %1348 = vmatprep.subr.mxu0 0.0
      %1349 = vmatpush1.msra.mxu0 %v1086
      %1350 = vmatprep.subr.mxu0 0.0
      %1351 = vmatpush1.msra.mxu0 %v1087
      %1352 = vmatprep.subr.mxu0 0.0
      %1353 = vmatpush1.msra.mxu0 %v1088
      %1354 = vmatprep.subr.mxu0 0.0
      %1355 = vmatpush1.msra.mxu0 %v1089
      %1356 = vmatprep.subr.mxu0 0.0
      %1357 = vmatpush1.msra.mxu0 %v1090
      %1358 = vmatprep.subr.mxu0 0.0
      %1359 = vmatpush1.msra.mxu0 %v1091
      %1360 = vmatprep.subr.mxu0 0.0
      %1361 = vmatpush1.msra.mxu0 %v1092
      %1362 = vmatprep.subr.mxu0 0.0
      %1363 = vmatpush1.msra.mxu0 %v1093
      %1364 = vmatprep.subr.mxu0 0.0
      %1365 = vmatpush1.msra.mxu0 %v1094
      %1366 = vmatprep.subr.mxu0 0.0
      %1367 = vmatpush1.msra.mxu0 %v1095
      %1368 = vmatprep.subr.mxu0 0.0
      %1369 = vmatpush1.msra.mxu0 %v1096
      %1370 = vmatprep.subr.mxu0 0.0
      %1371 = vmatpush1.msra.mxu0 %v1097
      %1372 = vmatprep.subr.mxu0 0.0
      %1373 = vmatpush1.msra.mxu0 %v1098
      %1374 = vmatprep.subr.mxu0 0.0
      %1375 = vmatpush1.msra.mxu0 %v1099
      %1376 = vmatprep.subr.mxu0 0.0
      %1377 = vmatpush1.msra.mxu0 %v1100
      %1378 = vmatprep.subr.mxu0 0.0
      %1379 = vmatpush1.msra.mxu0 %v1101
      %1380 = vmatprep.subr.mxu0 0.0
      %1381 = vmatpush1.msra.mxu0 %v1102
      %1382 = vmatprep.subr.mxu0 0.0
      %1383 = vmatpush1.msra.mxu0 %v1103
      %1384 = vmatprep.subr.mxu0 0.0
      %1385 = vmatpush1.msra.mxu0 %v1104
      %1386 = vmatprep.subr.mxu0 0.0
      %1387 = vmatpush1.msra.mxu0 %v1105
      %1388 = vmatprep.subr.mxu0 0.0
      %1389 = vmatpush1.msra.mxu0 %v1106
      %1390 = vmatprep.subr.mxu0 0.0
      %1391 = vmatpush1.msra.mxu0 %v1107
      %1392 = vmatprep.subr.mxu0 0.0
      %1393 = vmatpush1.msra.mxu0 %v1108
      %1394 = vmatprep.subr.mxu0 0.0
      %1395 = vmatpush1.msra.mxu0 %v1109
      %1396 = vmatprep.subr.mxu0 0.0
      %1397 = vmatpush1.msra.mxu0 %v1110
      %1398 = vmatprep.subr.mxu0 0.0
      %1399 = vmatpush1.msra.mxu0 %v1111
      %1400 = vmatprep.subr.mxu0 0.0
      %1401 = vmatpush1.msra.mxu0 %v1112
      %1402 = vmatprep.mubr.f32.mxu0 %v908
      %1403 = vmatmul.mubr.f32.gmra.mrb[0].mxu0 %v907
      %v1404 = vpop.f32.mrb[0].mxu0
      %v1405 = vadd.f32 %v1260, %v1404
      %v1406 = vpop.f32.mrb[0].mxu0
      %1407 = vmatprep.mubr.f32.mxu0 %v917
      %1408 = vmatmul.mubr.f32.gmra.mrb[0].mxu0 %v916
      %v1409 = vpop.f32.mrb[0].mxu0
      %v1410 = vadd.f32 %v1265, %v1409
      %v1411 = vpop.f32.mrb[0].mxu0
      %1412 = vmatprep.mubr.f32.mxu0 %v926
      %1413 = vmatmul.mubr.f32.gmra.mrb[0].mxu0 %v925
      %v1414 = vpop.f32.mrb[0].mxu0
      %v1415 = vadd.f32 %v1270, %v1414
      %v1416 = vpop.f32.mrb[0].mxu0
      %1417 = vmatprep.mubr.f32.mxu0 %v935
      %1418 = vmatmul.mubr.f32.gmra.mrb[0].mxu0 %v934
      %v1419 = vpop.f32.mrb[0].mxu0
      %v1420 = vadd.f32 %v1275, %v1419
      %v1421 = vpop.f32.mrb[0].mxu0
      %1422 = vmatprep.mubr.f32.mxu0 %v944
      %1423 = vmatmul.mubr.f32.gmra.mrb[0].mxu0 %v943
      %v1424 = vpop.f32.mrb[0].mxu0
      %v1425 = vadd.f32 %v1280, %v1424
      %v1426 = vpop.f32.mrb[0].mxu0
      %1427 = vmatprep.mubr.f32.mxu0 %v953
      %1428 = vmatmul.mubr.f32.gmra.mrb[0].mxu0 %v952
      %v1429 = vpop.f32.mrb[0].mxu0
      %v1430 = vadd.f32 %v1285, %v1429
      %v1431 = vpop.f32.mrb[0].mxu0
      %1432 = vmatprep.mubr.f32.mxu0 %v962
      %1433 = vmatmul.mubr.f32.gmra.mrb[0].mxu0 %v961
      %v1434 = vpop.f32.mrb[0].mxu0
      %v1435 = vadd.f32 %v1290, %v1434
      %v1436 = vpop.f32.mrb[0].mxu0
      %1437 = vmatprep.mubr.f32.mxu0 %v971
      %1438 = vmatmul.mubr.f32.gmra.mrb[0].mxu0 %v970
      %v1439 = vpop.f32.mrb[0].mxu0
      %v1440 = vadd.f32 %v1295, %v1439
      %v1441 = vpop.f32.mrb[0].mxu0
      %1442 = vmatprep.mubr.f32.mxu0 %v980
      %1443 = vmatmul.mubr.f32.gmra.mrb[0].mxu0 %v979
      %v1444 = vpop.f32.mrb[0].mxu0
      %v1445 = vadd.f32 %v1300, %v1444
      %v1446 = vpop.f32.mrb[0].mxu0
      %1447 = vmatprep.mubr.f32.mxu0 %v989
      %1448 = vmatmul.mubr.f32.gmra.mrb[0].mxu0 %v988
      %v1449 = vpop.f32.mrb[0].mxu0
      %v1450 = vadd.f32 %v1305, %v1449
      %v1451 = vpop.f32.mrb[0].mxu0
      %1452 = vmatprep.mubr.f32.mxu0 %v998
      %1453 = vmatmul.mubr.f32.gmra.mrb[0].mxu0 %v997
      %v1454 = vpop.f32.mrb[0].mxu0
      %v1455 = vadd.f32 %v1310, %v1454
      %v1456 = vpop.f32.mrb[0].mxu0
      %1457 = vmatprep.mubr.f32.mxu0 %v1007
      %1458 = vmatmul.mubr.f32.gmra.mrb[0].mxu0 %v1006
      %v1459 = vpop.f32.mrb[0].mxu0
      %v1460 = vadd.f32 %v1315, %v1459
      %v1461 = vpop.f32.mrb[0].mxu0
      %1462 = vmatprep.mubr.f32.mxu0 %v1016
      %1463 = vmatmul.mubr.f32.gmra.mrb[0].mxu0 %v1015
      %v1464 = vpop.f32.mrb[0].mxu0
      %v1465 = vadd.f32 %v1320, %v1464
      %v1466 = vpop.f32.mrb[0].mxu0
      %1467 = vmatprep.mubr.f32.mxu0 %v1025
      %1468 = vmatmul.mubr.f32.gmra.mrb[0].mxu0 %v1024
      %v1469 = vpop.f32.mrb[0].mxu0
      %v1470 = vadd.f32 %v1325, %v1469
      %v1471 = vpop.f32.mrb[0].mxu0
      %1472 = vmatprep.mubr.f32.mxu0 %v1034
      %1473 = vmatmul.mubr.f32.gmra.mrb[0].mxu0 %v1033
      %v1474 = vpop.f32.mrb[0].mxu0
      %v1475 = vadd.f32 %v1330, %v1474
      %v1476 = vpop.f32.mrb[0].mxu0
      %1477 = vmatprep.mubr.f32.mxu0 %v1043
      %1478 = vmatmul.mubr.f32.gmra.mrb[0].mxu0 %v1042
      %v1479 = vpop.f32.mrb[0].mxu0
      %v1480 = vadd.f32 %v1335, %v1479
      %v1481 = vpop.f32.mrb[0].mxu0
      %1482 = vdwg.mxu0
      %1483 = vmatprep.subr.mxu0 0.0
      %1484 = vmatpush1.msra.mxu0 %v1113
      %1485 = vmatprep.subr.mxu0 0.0
      %1486 = vmatpush1.msra.mxu0 %v1114
      %1487 = vmatprep.subr.mxu0 0.0
      %1488 = vmatpush1.msra.mxu0 %v1115
      %1489 = vmatprep.subr.mxu0 0.0
      %1490 = vmatpush1.msra.mxu0 %v1116
      %1491 = vmatprep.subr.mxu0 0.0
      %1492 = vmatpush1.msra.mxu0 %v1117
      %1493 = vmatprep.subr.mxu0 0.0
      %1494 = vmatpush1.msra.mxu0 %v1118
      %1495 = vmatprep.subr.mxu0 0.0
      %1496 = vmatpush1.msra.mxu0 %v1119
      %1497 = vmatprep.subr.mxu0 0.0
      %1498 = vmatpush1.msra.mxu0 %v1120
      %1499 = vmatprep.subr.mxu0 0.0
      %1500 = vmatpush1.msra.mxu0 %v1121
      %1501 = vmatprep.subr.mxu0 0.0
      %1502 = vmatpush1.msra.mxu0 %v1122
      %1503 = vmatprep.subr.mxu0 0.0
      %1504 = vmatpush1.msra.mxu0 %v1123
      %1505 = vmatprep.subr.mxu0 0.0
      %1506 = vmatpush1.msra.mxu0 %v1124
      %1507 = vmatprep.subr.mxu0 0.0
      %1508 = vmatpush1.msra.mxu0 %v1125
      %1509 = vmatprep.subr.mxu0 0.0
      %1510 = vmatpush1.msra.mxu0 %v1126
      %1511 = vmatprep.subr.mxu0 0.0
      %1512 = vmatpush1.msra.mxu0 %v1127
      %1513 = vmatprep.subr.mxu0 0.0
      %1514 = vmatpush1.msra.mxu0 %v1128
      %1515 = vmatprep.subr.mxu0 0.0
      %1516 = vmatpush1.msra.mxu0 %v1129
      %1517 = vmatprep.subr.mxu0 0.0
      %1518 = vmatpush1.msra.mxu0 %v1130
      %1519 = vmatprep.subr.mxu0 0.0
      %1520 = vmatpush1.msra.mxu0 %v1131
      %1521 = vmatprep.subr.mxu0 0.0
      %1522 = vmatpush1.msra.mxu0 %v1132
      %1523 = vmatprep.subr.mxu0 0.0
      %1524 = vmatpush1.msra.mxu0 %v1133
      %1525 = vmatprep.subr.mxu0 0.0
      %1526 = vmatpush1.msra.mxu0 %v1134
      %1527 = vmatprep.subr.mxu0 0.0
      %1528 = vmatpush1.msra.mxu0 %v1135
      %1529 = vmatprep.subr.mxu0 0.0
      %1530 = vmatpush1.msra.mxu0 %v1136
      %1531 = vmatprep.subr.mxu0 0.0
      %1532 = vmatpush1.msra.mxu0 %v1137
      %1533 = vmatprep.subr.mxu0 0.0
      %1534 = vmatpush1.msra.mxu0 %v1138
      %1535 = vmatprep.subr.mxu0 0.0
      %1536 = vmatpush1.msra.mxu0 %v1139
      %1537 = vmatprep.subr.mxu0 0.0
      %1538 = vmatpush1.msra.mxu0 %v1140
      %1539 = vmatprep.subr.mxu0 0.0
      %1540 = vmatpush1.msra.mxu0 %v1141
      %1541 = vmatprep.subr.mxu0 0.0
      %1542 = vmatpush1.msra.mxu0 %v1142
      %1543 = vmatprep.subr.mxu0 0.0
      %1544 = vmatpush1.msra.mxu0 %v1143
      %1545 = vmatprep.subr.mxu0 0.0
      %1546 = vmatpush1.msra.mxu0 %v1144
      %1547 = vmatprep.mubr.f32.mxu0 %v910
      %1548 = vmatmul.mubr.f32.gmra.mrb[0].mxu0 %v909
      %v1549 = vpop.f32.mrb[0].mxu0
      %v1550 = vadd.f32 %v1405, %v1549
      %v1551 = vpop.f32.mrb[0].mxu0
      %1552 = vmatprep.mubr.f32.mxu0 %v919
      %1553 = vmatmul.mubr.f32.gmra.mrb[0].mxu0 %v918
      %v1554 = vpop.f32.mrb[0].mxu0
      %v1555 = vadd.f32 %v1410, %v1554
      %v1556 = vpop.f32.mrb[0].mxu0
      %1557 = vmatprep.mubr.f32.mxu0 %v928
      %1558 = vmatmul.mubr.f32.gmra.mrb[0].mxu0 %v927
      %v1559 = vpop.f32.mrb[0].mxu0
      %v1560 = vadd.f32 %v1415, %v1559
      %v1561 = vpop.f32.mrb[0].mxu0
      %1562 = vmatprep.mubr.f32.mxu0 %v937
      %1563 = vmatmul.mubr.f32.gmra.mrb[0].mxu0 %v936
      %v1564 = vpop.f32.mrb[0].mxu0
      %v1565 = vadd.f32 %v1420, %v1564
      %v1566 = vpop.f32.mrb[0].mxu0
      %1567 = vmatprep.mubr.f32.mxu0 %v946
      %1568 = vmatmul.mubr.f32.gmra.mrb[0].mxu0 %v945
      %v1569 = vpop.f32.mrb[0].mxu0
      %v1570 = vadd.f32 %v1425, %v1569
      %v1571 = vpop.f32.mrb[0].mxu0
      %1572 = vmatprep.mubr.f32.mxu0 %v955
      %1573 = vmatmul.mubr.f32.gmra.mrb[0].mxu0 %v954
      %v1574 = vpop.f32.mrb[0].mxu0
      %v1575 = vadd.f32 %v1430, %v1574
      %v1576 = vpop.f32.mrb[0].mxu0
      %1577 = vmatprep.mubr.f32.mxu0 %v964
      %1578 = vmatmul.mubr.f32.gmra.mrb[0].mxu0 %v963
      %v1579 = vpop.f32.mrb[0].mxu0
      %v1580 = vadd.f32 %v1435, %v1579
      %v1581 = vpop.f32.mrb[0].mxu0
      %1582 = vmatprep.mubr.f32.mxu0 %v973
      %1583 = vmatmul.mubr.f32.gmra.mrb[0].mxu0 %v972
      %v1584 = vpop.f32.mrb[0].mxu0
      %v1585 = vadd.f32 %v1440, %v1584
      %v1586 = vpop.f32.mrb[0].mxu0
      %1587 = vmatprep.mubr.f32.mxu0 %v982
      %1588 = vmatmul.mubr.f32.gmra.mrb[0].mxu0 %v981
      %v1589 = vpop.f32.mrb[0].mxu0
      %v1590 = vadd.f32 %v1445, %v1589
      %v1591 = vpop.f32.mrb[0].mxu0
      %1592 = vmatprep.mubr.f32.mxu0 %v991
      %1593 = vmatmul.mubr.f32.gmra.mrb[0].mxu0 %v990
      %v1594 = vpop.f32.mrb[0].mxu0
      %v1595 = vadd.f32 %v1450, %v1594
      %v1596 = vpop.f32.mrb[0].mxu0
      %1597 = vmatprep.mubr.f32.mxu0 %v1000
      %1598 = vmatmul.mubr.f32.gmra.mrb[0].mxu0 %v999
      %v1599 = vpop.f32.mrb[0].mxu0
      %v1600 = vadd.f32 %v1455, %v1599
      %v1601 = vpop.f32.mrb[0].mxu0
      %1602 = vmatprep.mubr.f32.mxu0 %v1009
      %1603 = vmatmul.mubr.f32.gmra.mrb[0].mxu0 %v1008
      %v1604 = vpop.f32.mrb[0].mxu0
      %v1605 = vadd.f32 %v1460, %v1604
      %v1606 = vpop.f32.mrb[0].mxu0
      %1607 = vmatprep.mubr.f32.mxu0 %v1018
      %1608 = vmatmul.mubr.f32.gmra.mrb[0].mxu0 %v1017
      %v1609 = vpop.f32.mrb[0].mxu0
      %v1610 = vadd.f32 %v1465, %v1609
      %v1611 = vpop.f32.mrb[0].mxu0
      %1612 = vmatprep.mubr.f32.mxu0 %v1027
      %1613 = vmatmul.mubr.f32.gmra.mrb[0].mxu0 %v1026
      %v1614 = vpop.f32.mrb[0].mxu0
      %v1615 = vadd.f32 %v1470, %v1614
      %v1616 = vpop.f32.mrb[0].mxu0
      %1617 = vmatprep.mubr.f32.mxu0 %v1036
      %1618 = vmatmul.mubr.f32.gmra.mrb[0].mxu0 %v1035
      %v1619 = vpop.f32.mrb[0].mxu0
      %v1620 = vadd.f32 %v1475, %v1619
      %v1621 = vpop.f32.mrb[0].mxu0
      %1622 = vmatprep.mubr.f32.mxu0 %v1045
      %1623 = vmatmul.mubr.f32.gmra.mrb[0].mxu0 %v1044
      %v1624 = vpop.f32.mrb[0].mxu0
      %v1625 = vadd.f32 %v1480, %v1624
      %v1626 = vpop.f32.mrb[0].mxu0
      %1627 = vdwg.mxu0
      %1628 = vmatprep.subr.mxu0 0.0
      %1629 = vmatpush1.msra.mxu0 %v1145
      %1630 = vmatprep.subr.mxu0 0.0
      %1631 = vmatpush1.msra.mxu0 %v1146
      %1632 = vmatprep.subr.mxu0 0.0
      %1633 = vmatpush1.msra.mxu0 %v1147
      %1634 = vmatprep.subr.mxu0 0.0
      %1635 = vmatpush1.msra.mxu0 %v1148
      %1636 = vmatprep.subr.mxu0 0.0
      %1637 = vmatpush1.msra.mxu0 %v1149
      %1638 = vmatprep.subr.mxu0 0.0
      %1639 = vmatpush1.msra.mxu0 %v1150
      %1640 = vmatprep.subr.mxu0 0.0
      %1641 = vmatpush1.msra.mxu0 %v1151
      %1642 = vmatprep.subr.mxu0 0.0
      %1643 = vmatpush1.msra.mxu0 %v1152
      %1644 = vmatprep.subr.mxu0 0.0
      %1645 = vmatpush1.msra.mxu0 %v1153
      %1646 = vmatprep.subr.mxu0 0.0
      %1647 = vmatpush1.msra.mxu0 %v1154
      %1648 = vmatprep.subr.mxu0 0.0
      %1649 = vmatpush1.msra.mxu0 %v1155
      %1650 = vmatprep.subr.mxu0 0.0
      %1651 = vmatpush1.msra.mxu0 %v1156
      %1652 = vmatprep.subr.mxu0 0.0
      %1653 = vmatpush1.msra.mxu0 %v1157
      %1654 = vmatprep.subr.mxu0 0.0
      %1655 = vmatpush1.msra.mxu0 %v1158
      %1656 = vmatprep.subr.mxu0 0.0
      %1657 = vmatpush1.msra.mxu0 %v1159
      %1658 = vmatprep.subr.mxu0 0.0
      %1659 = vmatpush1.msra.mxu0 %v1160
      %1660 = vmatprep.subr.mxu0 0.0
      %1661 = vmatpush1.msra.mxu0 %v1161
      %1662 = vmatprep.subr.mxu0 0.0
      %1663 = vmatpush1.msra.mxu0 %v1162
      %1664 = vmatprep.subr.mxu0 0.0
      %1665 = vmatpush1.msra.mxu0 %v1163
      %1666 = vmatprep.subr.mxu0 0.0
      %1667 = vmatpush1.msra.mxu0 %v1164
      %1668 = vmatprep.subr.mxu0 0.0
      %1669 = vmatpush1.msra.mxu0 %v1165
      %1670 = vmatprep.subr.mxu0 0.0
      %1671 = vmatpush1.msra.mxu0 %v1166
      %1672 = vmatprep.subr.mxu0 0.0
      %1673 = vmatpush1.msra.mxu0 %v1167
      %1674 = vmatprep.subr.mxu0 0.0
      %1675 = vmatpush1.msra.mxu0 %v1168
      %1676 = vmatprep.subr.mxu0 0.0
      %1677 = vmatpush1.msra.mxu0 %v1169
      %1678 = vmatprep.subr.mxu0 0.0
      %1679 = vmatpush1.msra.mxu0 %v1170
      %1680 = vmatprep.subr.mxu0 0.0
      %1681 = vmatpush1.msra.mxu0 %v1171
      %1682 = vmatprep.subr.mxu0 0.0
      %1683 = vmatpush1.msra.mxu0 %v1172
      %1684 = vmatprep.subr.mxu0 0.0
      %1685 = vmatpush1.msra.mxu0 %v1173
      %1686 = vmatprep.subr.mxu0 0.0
      %1687 = vmatpush1.msra.mxu0 %v1174
      %1688 = vmatprep.subr.mxu0 0.0
      %1689 = vmatpush1.msra.mxu0 %v1175
      %1690 = vmatprep.subr.mxu0 0.0
      %1691 = vmatpush1.msra.mxu0 %v1176
      %1692 = vmatprep.mubr.f32.mxu0 %v912
      %1693 = vmatmul.mubr.f32.gmra.mrb[0].mxu0 %v911
      %v1694 = vpop.f32.mrb[0].mxu0
      %v1695 = vadd.f32 %v1550, %v1694
      %v1696 = vpop.f32.mrb[0].mxu0
      %1697 = vmatprep.mubr.f32.mxu0 %v921
      %1698 = vmatmul.mubr.f32.gmra.mrb[0].mxu0 %v920
      %v1699 = vpop.f32.mrb[0].mxu0
      %v1700 = vadd.f32 %v1555, %v1699
      %v1701 = vpop.f32.mrb[0].mxu0
      %1702 = vmatprep.mubr.f32.mxu0 %v930
      %1703 = vmatmul.mubr.f32.gmra.mrb[0].mxu0 %v929
      %v1704 = vpop.f32.mrb[0].mxu0
      %v1705 = vadd.f32 %v1560, %v1704
      %v1706 = vpop.f32.mrb[0].mxu0
      %1707 = vmatprep.mubr.f32.mxu0 %v939
      %1708 = vmatmul.mubr.f32.gmra.mrb[0].mxu0 %v938
      %v1709 = vpop.f32.mrb[0].mxu0
      %v1710 = vadd.f32 %v1565, %v1709
      %v1711 = vpop.f32.mrb[0].mxu0
      %1712 = vmatprep.mubr.f32.mxu0 %v948
      %1713 = vmatmul.mubr.f32.gmra.mrb[0].mxu0 %v947
      %v1714 = vpop.f32.mrb[0].mxu0
      %v1715 = vadd.f32 %v1570, %v1714
      %v1716 = vpop.f32.mrb[0].mxu0
      %1717 = vmatprep.mubr.f32.mxu0 %v957
      %1718 = vmatmul.mubr.f32.gmra.mrb[0].mxu0 %v956
      %v1719 = vpop.f32.mrb[0].mxu0
      %v1720 = vadd.f32 %v1575, %v1719
      %v1721 = vpop.f32.mrb[0].mxu0
      %1722 = vmatprep.mubr.f32.mxu0 %v966
      %1723 = vmatmul.mubr.f32.gmra.mrb[0].mxu0 %v965
      %v1724 = vpop.f32.mrb[0].mxu0
      %v1725 = vadd.f32 %v1580, %v1724
      %v1726 = vpop.f32.mrb[0].mxu0
      %1727 = vmatprep.mubr.f32.mxu0 %v975
      %1728 = vmatmul.mubr.f32.gmra.mrb[0].mxu0 %v974
      %v1729 = vpop.f32.mrb[0].mxu0
      %v1730 = vadd.f32 %v1585, %v1729
      %v1731 = vpop.f32.mrb[0].mxu0
      %1732 = vmatprep.mubr.f32.mxu0 %v984
      %1733 = vmatmul.mubr.f32.gmra.mrb[0].mxu0 %v983
      %v1734 = vpop.f32.mrb[0].mxu0
      %v1735 = vadd.f32 %v1590, %v1734
      %v1736 = vpop.f32.mrb[0].mxu0
      %1737 = vmatprep.mubr.f32.mxu0 %v993
      %1738 = vmatmul.mubr.f32.gmra.mrb[0].mxu0 %v992
      %v1739 = vpop.f32.mrb[0].mxu0
      %v1740 = vadd.f32 %v1595, %v1739
      %v1741 = vpop.f32.mrb[0].mxu0
      %1742 = vmatprep.mubr.f32.mxu0 %v1002
      %1743 = vmatmul.mubr.f32.gmra.mrb[0].mxu0 %v1001
      %v1744 = vpop.f32.mrb[0].mxu0
      %v1745 = vadd.f32 %v1600, %v1744
      %v1746 = vpop.f32.mrb[0].mxu0
      %1747 = vmatprep.mubr.f32.mxu0 %v1011
      %1748 = vmatmul.mubr.f32.gmra.mrb[0].mxu0 %v1010
      %v1749 = vpop.f32.mrb[0].mxu0
      %v1750 = vadd.f32 %v1605, %v1749
      %v1751 = vpop.f32.mrb[0].mxu0
      %1752 = vmatprep.mubr.f32.mxu0 %v1020
      %1753 = vmatmul.mubr.f32.gmra.mrb[0].mxu0 %v1019
      %v1754 = vpop.f32.mrb[0].mxu0
      %v1755 = vadd.f32 %v1610, %v1754
      %v1756 = vpop.f32.mrb[0].mxu0
      %1757 = vmatprep.mubr.f32.mxu0 %v1029
      %1758 = vmatmul.mubr.f32.gmra.mrb[0].mxu0 %v1028
      %v1759 = vpop.f32.mrb[0].mxu0
      %v1760 = vadd.f32 %v1615, %v1759
      %v1761 = vpop.f32.mrb[0].mxu0
      %1762 = vmatprep.mubr.f32.mxu0 %v1038
      %1763 = vmatmul.mubr.f32.gmra.mrb[0].mxu0 %v1037
      %v1764 = vpop.f32.mrb[0].mxu0
      %v1765 = vadd.f32 %v1620, %v1764
      %v1766 = vpop.f32.mrb[0].mxu0
      %1767 = vmatprep.mubr.f32.mxu0 %v1047
      %1768 = vmatmul.mubr.f32.gmra.mrb[0].mxu0 %v1046
      %v1769 = vpop.f32.mrb[0].mxu0
      %v1770 = vadd.f32 %v1625, %v1769
      %v1771 = vpop.f32.mrb[0].mxu0
      %1772 = vdwg.mxu0
      %1773 = vmatprep.subr.mxu0 0.0
      %1774 = vmatpush1.msra.mxu0 %v1177
      %1775 = vmatprep.subr.mxu0 0.0
      %1776 = vmatpush1.msra.mxu0 %v1178
      %1777 = vmatprep.subr.mxu0 0.0
      %1778 = vmatpush1.msra.mxu0 %v1179
      %1779 = vmatprep.subr.mxu0 0.0
      %1780 = vmatpush1.msra.mxu0 %v1180
      %1781 = vmatprep.subr.mxu0 0.0
      %1782 = vmatpush1.msra.mxu0 %v1181
      %1783 = vmatprep.subr.mxu0 0.0
      %1784 = vmatpush1.msra.mxu0 %v1182
      %1785 = vmatprep.subr.mxu0 0.0
      %1786 = vmatpush1.msra.mxu0 %v1183
      %1787 = vmatprep.subr.mxu0 0.0
      %1788 = vmatpush1.msra.mxu0 %v1184
      %1789 = vmatprep.subr.mxu0 0.0
      %1790 = vmatpush1.msra.mxu0 %v1185
      %1791 = vmatprep.subr.mxu0 0.0
      %1792 = vmatpush1.msra.mxu0 %v1186
      %1793 = vmatprep.subr.mxu0 0.0
      %1794 = vmatpush1.msra.mxu0 %v1187
      %1795 = vmatprep.subr.mxu0 0.0
      %1796 = vmatpush1.msra.mxu0 %v1188
      %1797 = vmatprep.subr.mxu0 0.0
      %1798 = vmatpush1.msra.mxu0 %v1189
      %1799 = vmatprep.subr.mxu0 0.0
      %1800 = vmatpush1.msra.mxu0 %v1190
      %1801 = vmatprep.subr.mxu0 0.0
      %1802 = vmatpush1.msra.mxu0 %v1191
      %1803 = vmatprep.subr.mxu0 0.0
      %1804 = vmatpush1.msra.mxu0 %v1192
      %1805 = vmatprep.subr.mxu0 0.0
      %1806 = vmatpush1.msra.mxu0 0.0
      %1807 = vmatprep.subr.mxu0 0.0
      %1808 = vmatpush1.msra.mxu0 0.0
      %1809 = vmatprep.subr.mxu0 0.0
      %1810 = vmatpush1.msra.mxu0 0.0
      %1811 = vmatprep.subr.mxu0 0.0
      %1812 = vmatpush1.msra.mxu0 0.0
      %1813 = vmatprep.subr.mxu0 0.0
      %1814 = vmatpush1.msra.mxu0 0.0
      %1815 = vmatprep.subr.mxu0 0.0
      %1816 = vmatpush1.msra.mxu0 0.0
      %1817 = vmatprep.subr.mxu0 0.0
      %1818 = vmatpush1.msra.mxu0 0.0
      %1819 = vmatprep.subr.mxu0 0.0
      %1820 = vmatpush1.msra.mxu0 0.0
      %1821 = vmatprep.subr.mxu0 0.0
      %1822 = vmatpush1.msra.mxu0 0.0
      %1823 = vmatprep.subr.mxu0 0.0
      %1824 = vmatpush1.msra.mxu0 0.0
      %1825 = vmatprep.subr.mxu0 0.0
      %1826 = vmatpush1.msra.mxu0 0.0
      %1827 = vmatprep.subr.mxu0 0.0
      %1828 = vmatpush1.msra.mxu0 0.0
      %1829 = vmatprep.subr.mxu0 0.0
      %1830 = vmatpush1.msra.mxu0 0.0
      %1831 = vmatprep.subr.mxu0 0.0
      %1832 = vmatpush1.msra.mxu0 0.0
      %1833 = vmatprep.subr.mxu0 0.0
      %1834 = vmatpush1.msra.mxu0 0.0
      %1835 = vmatprep.subr.mxu0 0.0
      %1836 = vmatpush1.msra.mxu0 0.0
      %1837 = vmatprep.mubr.f32.mxu0 0.0
      %1838 = vmatmul.mubr.f32.gmra.mrb[0].mxu0 %v913
      %v1839 = vpop.f32.mrb[0].mxu0
      %v1840 = vadd.f32 %v1695, %v1839
      %v1841 = vpop.f32.mrb[0].mxu0
      %1842 = vmatprep.mubr.f32.mxu0 0.0
      %1843 = vmatmul.mubr.f32.gmra.mrb[0].mxu0 %v922
      %v1844 = vpop.f32.mrb[0].mxu0
      %v1845 = vadd.f32 %v1700, %v1844
      %v1846 = vpop.f32.mrb[0].mxu0
      %1847 = vmatprep.mubr.f32.mxu0 0.0
      %1848 = vmatmul.mubr.f32.gmra.mrb[0].mxu0 %v931
      %v1849 = vpop.f32.mrb[0].mxu0
      %v1850 = vadd.f32 %v1705, %v1849
      %v1851 = vpop.f32.mrb[0].mxu0
      %1852 = vmatprep.mubr.f32.mxu0 0.0
      %1853 = vmatmul.mubr.f32.gmra.mrb[0].mxu0 %v940
      %v1854 = vpop.f32.mrb[0].mxu0
      %v1855 = vadd.f32 %v1710, %v1854
      %v1856 = vpop.f32.mrb[0].mxu0
      %1857 = vmatprep.mubr.f32.mxu0 0.0
      %1858 = vmatmul.mubr.f32.gmra.mrb[0].mxu0 %v949
      %v1859 = vpop.f32.mrb[0].mxu0
      %v1860 = vadd.f32 %v1715, %v1859
      %v1861 = vpop.f32.mrb[0].mxu0
      %1862 = vmatprep.mubr.f32.mxu0 0.0
      %1863 = vmatmul.mubr.f32.gmra.mrb[0].mxu0 %v958
      %v1864 = vpop.f32.mrb[0].mxu0
      %v1865 = vadd.f32 %v1720, %v1864
      %v1866 = vpop.f32.mrb[0].mxu0
      %1867 = vmatprep.mubr.f32.mxu0 0.0
      %1868 = vmatmul.mubr.f32.gmra.mrb[0].mxu0 %v967
      %v1869 = vpop.f32.mrb[0].mxu0
      %v1870 = vadd.f32 %v1725, %v1869
      %v1871 = vpop.f32.mrb[0].mxu0
      %1872 = vmatprep.mubr.f32.mxu0 0.0
      %1873 = vmatmul.mubr.f32.gmra.mrb[0].mxu0 %v976
      %v1874 = vpop.f32.mrb[0].mxu0
      %v1875 = vadd.f32 %v1730, %v1874
      %v1876 = vpop.f32.mrb[0].mxu0
      %1877 = vmatprep.mubr.f32.mxu0 0.0
      %1878 = vmatmul.mubr.f32.gmra.mrb[0].mxu0 %v985
      %v1879 = vpop.f32.mrb[0].mxu0
      %v1880 = vadd.f32 %v1735, %v1879
      %v1881 = vpop.f32.mrb[0].mxu0
      %1882 = vmatprep.mubr.f32.mxu0 0.0
      %1883 = vmatmul.mubr.f32.gmra.mrb[0].mxu0 %v994
      %v1884 = vpop.f32.mrb[0].mxu0
      %v1885 = vadd.f32 %v1740, %v1884
      %v1886 = vpop.f32.mrb[0].mxu0
      %1887 = vmatprep.mubr.f32.mxu0 0.0
      %1888 = vmatmul.mubr.f32.gmra.mrb[0].mxu0 %v1003
      %v1889 = vpop.f32.mrb[0].mxu0
      %v1890 = vadd.f32 %v1745, %v1889
      %v1891 = vpop.f32.mrb[0].mxu0
      %1892 = vmatprep.mubr.f32.mxu0 0.0
      %1893 = vmatmul.mubr.f32.gmra.mrb[0].mxu0 %v1012
      %v1894 = vpop.f32.mrb[0].mxu0
      %v1895 = vadd.f32 %v1750, %v1894
      %v1896 = vpop.f32.mrb[0].mxu0
      %1897 = vmatprep.mubr.f32.mxu0 0.0
      %1898 = vmatmul.mubr.f32.gmra.mrb[0].mxu0 %v1021
      %v1899 = vpop.f32.mrb[0].mxu0
      %v1900 = vadd.f32 %v1755, %v1899
      %v1901 = vpop.f32.mrb[0].mxu0
      %1902 = vmatprep.mubr.f32.mxu0 0.0
      %1903 = vmatmul.mubr.f32.gmra.mrb[0].mxu0 %v1030
      %v1904 = vpop.f32.mrb[0].mxu0
      %v1905 = vadd.f32 %v1760, %v1904
      %v1906 = vpop.f32.mrb[0].mxu0
      %1907 = vmatprep.mubr.f32.mxu0 0.0
      %1908 = vmatmul.mubr.f32.gmra.mrb[0].mxu0 %v1039
      %v1909 = vpop.f32.mrb[0].mxu0
      %v1910 = vadd.f32 %v1765, %v1909
      %v1911 = vpop.f32.mrb[0].mxu0
      %1912 = vmatprep.mubr.f32.mxu0 0.0
      %1913 = vmatmul.mubr.f32.gmra.mrb[0].mxu0 %v1048
      %v1914 = vpop.f32.mrb[0].mxu0
      %v1915 = vadd.f32 %v1770, %v1914
      %v1916 = vpop.f32.mrb[0].mxu0
      %1917 = vdwg.mxu0
      %1918 = vst [vmem:[%s458] sm:$0xff] %v1840
      %1919 = vst [vmem:[%s458 + $0x8] sm:$0xff] %v1845
      %1920 = vst [vmem:[%s458 + $0x10] sm:$0xff] %v1850
      %1921 = vst [vmem:[%s458 + $0x18] sm:$0xff] %v1855
      %1922 = vst [vmem:[%s458 + $0x20] sm:$0xff] %v1860
      %1923 = vst [vmem:[%s458 + $0x28] sm:$0xff] %v1865
      %1924 = vst [vmem:[%s458 + $0x30] sm:$0xff] %v1870
      %1925 = vst [vmem:[%s458 + $0x38] sm:$0xff] %v1875
      %1926 = vst [vmem:[%s458 + $0x40] sm:$0xff] %v1880
      %1927 = vst [vmem:[%s458 + $0x48] sm:$0xff] %v1885
      %1928 = vst [vmem:[%s458 + $0x50] sm:$0xff] %v1890
      %1929 = vst [vmem:[%s458 + $0x58] sm:$0xff] %v1895
      %1930 = vst [vmem:[%s458 + $0x60] sm:$0xff] %v1900
      %1931 = vst [vmem:[%s458 + $0x68] sm:$0xff] %v1905
      %1932 = vst [vmem:[%s458 + $0x70] sm:$0xff] %v1910
      %1933 = vst [vmem:[%s458 + $0x78] sm:$0xff] %v1915
      %v1934 = vadd.f32 %v1840, %v1845
      %v1935 = vadd.f32 %v1934, %v1850
      %v1936 = vadd.f32 %v1935, %v1855
      %v1937 = vadd.f32 %v1936, %v1860
      %v1938 = vadd.f32 %v1937, %v1865
      %v1939 = vadd.f32 %v1938, %v1870
      %v1940 = vadd.f32 %v1939, %v1875
      %v1941 = vadd.f32 %v1940, %v1880
      %v1942 = vadd.f32 %v1941, %v1885
      %v1943 = vadd.f32 %v1942, %v1890
      %v1944 = vadd.f32 %v1943, %v1895
      %v1945 = vadd.f32 %v1944, %v1900
      %v1946 = vadd.f32 %v1945, %v1905
      %v1947 = vadd.f32 %v1946, %v1910
      %v1948 = vadd.f32 %v1947, %v1915
      %v1949 = vrot.slane %v1948, 4
      %v1950 = vadd.f32 %v1948, %v1949
      %v1951 = vrot.slane %v1950, 2
      %v1952 = vadd.f32 %v1950, %v1951
      %v1953 = vrot.slane %v1952, 1
      %v1954 = vadd.f32 %v1952, %v1953
      %v1955 = vmul.f32 %v1840, %v1840
      %v1956 = vmul.f32 %v1845, %v1845
      %v1957 = vmul.f32 %v1850, %v1850
      %v1958 = vmul.f32 %v1855, %v1855
      %v1959 = vmul.f32 %v1860, %v1860
      %v1960 = vmul.f32 %v1865, %v1865
      %v1961 = vmul.f32 %v1870, %v1870
      %v1962 = vmul.f32 %v1875, %v1875
      %v1963 = vmul.f32 %v1880, %v1880
      %v1964 = vmul.f32 %v1885, %v1885
      %v1965 = vmul.f32 %v1890, %v1890
      %v1966 = vmul.f32 %v1895, %v1895
      %v1967 = vmul.f32 %v1900, %v1900
      %v1968 = vmul.f32 %v1905, %v1905
      %v1969 = vmul.f32 %v1910, %v1910
      %v1970 = vmul.f32 %v1915, %v1915
      %v1971 = vadd.f32 %v1955, %v1956
      %v1972 = vadd.f32 %v1971, %v1957
      %v1973 = vadd.f32 %v1972, %v1958
      %v1974 = vadd.f32 %v1973, %v1959
      %v1975 = vadd.f32 %v1974, %v1960
      %v1976 = vadd.f32 %v1975, %v1961
      %v1977 = vadd.f32 %v1976, %v1962
      %v1978 = vadd.f32 %v1977, %v1963
      %v1979 = vadd.f32 %v1978, %v1964
      %v1980 = vadd.f32 %v1979, %v1965
      %v1981 = vadd.f32 %v1980, %v1966
      %v1982 = vadd.f32 %v1981, %v1967
      %v1983 = vadd.f32 %v1982, %v1968
      %v1984 = vadd.f32 %v1983, %v1969
      %v1985 = vadd.f32 %v1984, %v1970
      %v1986 = vrot.slane %v1985, 4
      %v1987 = vadd.f32 %v1985, %v1986
      %v1988 = vrot.slane %v1987, 2
      %v1989 = vadd.f32 %v1987, %v1988
      %v1990 = vrot.slane %v1989, 1
      %v1991 = vadd.f32 %v1989, %v1990
      %vm1992 = vcmask 1040384
      %v1993 = vsel %vm1992, %v1954, %v1991
      %1994 = vst [vmem:[%s467] sm:$0x3] %v1993
      %s1995 = smul.u32 8, %s24
      %p1996 = scmp.lt.s32.totalorder %s23, 1
      %s1997 = scalar_select %p1996, %s23, 1
      %p1998 = scmp.lt.s32.totalorder %s1995, 15
      %s1999 = scalar_select %p1998, %s1995, 15
      %s2000 = smul.addr %s1999, 2
      %s2001 = smul.addr %s1997, 32
      %s2002 = sadd.s32 %s2000, %s2001
      %s2003 = smul.addr %s2002, 8
      %s2004 = scalar_lea.vmem %s6, %s2003
      %p2005 = scmp.lt.s32.totalorder %s23, 1
      %s2006 = scalar_select %p2005, %s23, 1
      %p2007 = scmp.lt.s32.totalorder %s24, 1
      %s2008 = scalar_select %p2007, %s24, 1
      %s2009 = smul.addr %s2006, 2
      %s2010 = sadd.s32 %s2008, %s2009
      %s2011 = smul.addr %s2010, 2
      %s2012 = scalar_lea.vmem %s7, %s2011
      // Predicated region
      $region45: #{basic_block_e.4} parent=43 // pred_check
        %p2013 = pneg %p214
      $region46: #{basic_block_e.4} parent=43 // pred_check_branch
        %2015 = sbr.rel (%p2013) target = $region48
      $region47: #{basic_block_e.4} parent=43 // pred_region
        %s2016 = smul.u32 8, %s24
      $region48: #{basic_block_e.4} parent=43 // pred_fallthru
        _
      // Predicated region
      $region49: #{basic_block_e.4} parent=43 // pred_check
        %p2017 = pneg %p242
      $region50: #{basic_block_e.4} parent=43 // pred_check_branch
        %2019 = sbr.rel (%p2017) target = $region52
      $region51: #{basic_block_e.4} parent=43 // pred_region
        _
      $region52: #{basic_block_e.4} parent=43 // pred_fallthru
        _
    $region44: #{basic_block_e.4} parent=5 // pred_fallthru
      _
    %p2020 = scmp.le.s32.totalorder 2, %s14
    // Predicated region
    $region53: #{basic_block_e.4} parent=5 // pred_check
      %p2021 = pneg %p2020
    $region54: #{basic_block_e.4} parent=5 // pred_check_branch
      %2023 = sbr.rel (%p2021) target = $region56
    $region55: #{basic_block_e.4} parent=5 // pred_region
      %s2024 = ssub.s32 %s14, 2
      // Predicated region
      $region57: #{basic_block_e.4} parent=55 // pred_check
        %p2025 = pneg %p220
      $region58: #{basic_block_e.4} parent=55 // pred_check_branch
        %2027 = sbr.rel (%p2025) target = $region60
      $region59: #{basic_block_e.4} parent=55 // pred_region
        %s2028 = smul.u32 8, %s26
        %p2029 = scmp.lt.s32.totalorder %s25, 1
        %s2030 = scalar_select %p2029, %s25, 1
        %p2031 = scmp.lt.s32.totalorder %s2028, 15
        %s2032 = scalar_select %p2031, %s2028, 15
        %s2033 = smul.addr %s2032, 2
        %s2034 = smul.addr %s2030, 32
        %s2035 = sadd.s32 %s2033, %s2034
        %s2036 = smul.addr %s2035, 8
        %s2037 = scalar_lea.vmem %s6, %s2036
      $region60: #{basic_block_e.4} parent=55 // pred_fallthru
        _
      // Predicated region
      $region61: #{basic_block_e.4} parent=55 // pred_check
        %p2038 = pneg %p248
      $region62: #{basic_block_e.4} parent=55 // pred_check_branch
        %2040 = sbr.rel (%p2038) target = $region64
      $region63: #{basic_block_e.4} parent=55 // pred_region
        %p2041 = scmp.lt.s32.totalorder %s25, 1
        %s2042 = scalar_select %p2041, %s25, 1
        %p2043 = scmp.lt.s32.totalorder %s26, 1
        %s2044 = scalar_select %p2043, %s26, 1
        %s2045 = smul.addr %s2042, 2
        %s2046 = sadd.s32 %s2044, %s2045
        %s2047 = smul.addr %s2046, 2
        %s2048 = scalar_lea.vmem %s7, %s2047
      $region64: #{basic_block_e.4} parent=55 // pred_fallthru
        _
    $region56: #{basic_block_e.4} parent=5 // pred_fallthru
      _
  $region6: #{basic_block_e.4} parent=0 // loop_footer
    %s18 = sadd.s32 1, %s14
  $region7: #{basic_block_e.4} parent=0 // loop_footer_branch
    %13 = sbr.rel target = $region3
  $region8: #{basic_block_e.4} parent=0 // loop_exit
    _

</llo_original>
